<compile_context>
chip_gen: v7x
topology: tpu7x:2x2x1
jax: 0.10.0
libtpu: 0.0.40
codegen_flags: <defaults>
</compile_context>

<pallas_src>
import functools
import math

import jax
import jax.numpy as jnp
import numpy as np
from jax import lax
from jax.experimental import pallas as pl
from jax.experimental.pallas import tpu as pltpu


def _round_up(x, m):
    return (x + m - 1) // m * m


# ---------------------------------------------------------------------------
# VMEM budgeting helpers
# ---------------------------------------------------------------------------
_FALLBACK_VMEM = 64 * (1 << 20)          # v7x per-core physical VMEM (most restrictive)


def _vmem_capacity_bytes():
    try:
        return int(pltpu.get_tpu_info().vmem_capacity_bytes)
    except Exception:
        return _FALLBACK_VMEM


def _vmem_budget_bytes():
    # Leave ~40% of physical VMEM for pipeline buffers / compiler internals.
    return (_vmem_capacity_bytes() * 3) // 5


def _vmem_limit_bytes(needed):
    cap = max(_vmem_capacity_bytes() - (16 << 20), 32 << 20)
    return int(min(max(needed + (8 << 20), 32 << 20), cap))


def _stage_a_bytes(t_chunk, bb, ep, hp):
    fixed = (ep * 4 * hp * 2          # W_ih  bf16 (single-buffered)
             + hp * 4 * hp * 2        # W_hh  bf16 (single-buffered)
             + 4 * hp * 4             # bias  f32
             + bb * hp * 4            # c scratch f32
             + 2 * bb * hp * 2)       # h output bf16 (assume double-buffered)
    per_t = (2 * bb * ep * 2          # x chunk bf16 (double-buffered)
             + bb * 4 * hp * 4)       # xp scratch f32
    return fixed + t_chunk * per_t


def _pick_t_chunk(s, bb, ep, hp):
    budget = _vmem_budget_bytes()
    best = 1
    for cand in (64, 48, 32, 24, 16, 8, 4, 2, 1):
        if _stage_a_bytes(cand, bb, ep, hp) <= budget:
            best = cand
            break
    # If the whole sequence fits in one chunk, use it exactly (zero padding).
    return s if s <= best else best


# ---------------------------------------------------------------------------
# Single-buffering (pl.Buffered(1)) support probe for grid-invariant operands
# ---------------------------------------------------------------------------
@functools.lru_cache(maxsize=1)
def _single_buffer_supported():
    def k(x_ref, w_ref, o_ref):
        o_ref[...] = x_ref[...] + w_ref[...]

    try:
        f = pl.pallas_call(
            k,
            out_shape=jax.ShapeDtypeStruct((16, 128), jnp.float32),
            grid=(2,),
            in_specs=[
                pl.BlockSpec((8, 128), lambda i: (i, 0)),
                pl.BlockSpec((8, 128), lambda i: (0, 0),
                             pipeline_mode=pl.Buffered(1)),
            ],
            out_specs=pl.BlockSpec((8, 128), lambda i: (i, 0)),
        )
        out = jax.block_until_ready(
            f(jnp.ones((16, 128), jnp.float32), 2.0 * jnp.ones((8, 128), jnp.float32)))
        return bool(jnp.all(out == 3.0))
    except Exception:
        return False


def _invariant_spec(block_shape, index_map):
    if _single_buffer_supported():
        return pl.BlockSpec(block_shape, index_map, pipeline_mode=pl.Buffered(1))
    return pl.BlockSpec(block_shape, index_map)


# ---------------------------------------------------------------------------
# Stage A: fused input projection + serial LSTM recurrence over time chunks
# ---------------------------------------------------------------------------
def lstm_chunk_kernel(x_ref, wih_ref, whh_ref, b_ref, h_ref, xp_ref, c_ref,
                      *, t_chunk, bb, s_actual, unroll):
    # x_ref:   (t_chunk*bb, Ep)  bf16  embedded tokens for this (batch-block, time-chunk)
    # wih_ref: (Ep, 4Hp)         bf16  invariant
    # whh_ref: (Hp, 4Hp)         bf16  invariant
    # b_ref:   (1, 4Hp)          f32   bias_ih + bias_hh, invariant
    # h_ref:   (bb, Hp)          bf16  OUTPUT block; doubles as the recurrent h carry
    # xp_ref:  (t_chunk*bb, 4Hp) f32   scratch: x @ W_ih + bias for the whole chunk
    # c_ref:   (bb, Hp)          f32   scratch: cell state
    hp = whh_ref.shape[0]
    t = pl.program_id(1)

    @pl.when(t == 0)
    def _():
        h_ref[...] = jnp.zeros_like(h_ref)
        c_ref[...] = jnp.zeros_like(c_ref)

    # Hoisted chunk input projection: one big MXU matmul (off the serial chain),
    # with the bias folded in once per chunk instead of once per timestep.
    xp_ref[...] = (jnp.dot(x_ref[...], wih_ref[...],
                           preferred_element_type=jnp.float32)
                   + b_ref[...])

    def step(i, carry):
        row = pl.multiple_of(i * bb, bb)
        xp_t = xp_ref[pl.ds(row, bb), :]                        # (bb, 4Hp) f32
        # h is already bf16 (output ref is the carry): no cast ahead of the MXU push.
        gates = xp_t + jnp.dot(h_ref[...], whh_ref[...],
                               preferred_element_type=jnp.float32)
        # Lane-aligned gate blocks (Hp is a multiple of 128); PyTorch order i, f, g, o.
        i_g = jax.nn.sigmoid(gates[:, 0 * hp:1 * hp])
        f_g = jax.nn.sigmoid(gates[:, 1 * hp:2 * hp])
        g_g = jnp.tanh(gates[:, 2 * hp:3 * hp])
        o_g = jax.nn.sigmoid(gates[:, 3 * hp:4 * hp])
        c_new = f_g * c_ref[...] + i_g * g_g
        h_new = (o_g * jnp.tanh(c_new)).astype(h_ref.dtype)
        if s_actual is None:                       # S is a multiple of t_chunk
            c_ref[...] = c_new
            h_ref[...] = h_new
        else:                                      # masked tail timesteps (padded S)
            @pl.when(t * t_chunk + i < s_actual)
            def _():
                c_ref[...] = c_new
                h_ref[...] = h_new
        return carry

    lax.fori_loop(0, t_chunk, step, 0, unroll=unroll)


# ---------------------------------------------------------------------------
# Stage B: last-step linear head, tiled lane-dense over the padded vocab axis
# ---------------------------------------------------------------------------
def head_kernel(h_ref, wout_ref, bout_ref, out_ref):
    # h_ref: (Bp, Hp) bf16 (already bf16 from stage A), wout_ref: (Hp, v_tile) bf16
    out_ref[...] = (jnp.dot(h_ref[...], wout_ref[...],
                            preferred_element_type=jnp.float32)
                    + bout_ref[...])


# ---------------------------------------------------------------------------
# Parameter preparation: pad / transpose / cast PyTorch-layout params
# ---------------------------------------------------------------------------
def prepare_params(params, *, hidden_size):
    H = hidden_size
    Hp = _round_up(H, 128)                      # lane-aligned gate blocks
    emb = params["embedding"]                   # (V, E)
    V, E = emb.shape
    Ep = _round_up(E, 128)                      # lane-aligned x blocks / MXU K dim
    Vp = _round_up(V, 128)                      # lane-dense head output

    def pad_gates(w, in_dim, in_pad):
        # w: (in_dim, 4*H) -> (in_pad, 4*Hp), zero-padded, gate-block aligned.
        w4 = w.reshape(in_dim, 4, H)
        w4 = jnp.pad(w4, ((0, in_pad - in_dim), (0, 0), (0, Hp - H)))
        return w4.reshape(in_pad, 4 * Hp)

    emb_p = jnp.pad(emb, ((0, 0), (0, Ep - E))).astype(jnp.float32)      # (V, Ep)
    w_ih = pad_gates(params["w_ih"], E, Ep).astype(jnp.bfloat16)         # (Ep, 4Hp)
    w_hh = pad_gates(params["w_hh"], H, Hp).astype(jnp.bfloat16)         # (Hp, 4Hp)
    bias = params["bias"].reshape(4, H)
    bias = jnp.pad(bias, ((0, 0), (0, Hp - H))).reshape(1, 4 * Hp).astype(jnp.float32)
    w_out = jnp.pad(params["w_out"], ((0, Hp - H), (0, Vp - V))).astype(jnp.bfloat16)
    b_out = jnp.pad(params["b_out"], ((0, 0), (0, Vp - V))).astype(jnp.float32)

    return dict(embedding=emb_p, w_ih=w_ih, w_hh=w_hh, bias=bias,
                w_out=w_out, b_out=b_out, E=E, Ep=Ep, H=H, Hp=Hp, V=V, Vp=Vp)


# ---------------------------------------------------------------------------
# Forward pass
# ---------------------------------------------------------------------------
def text_lstm_forward(x_tokens, kp, *, t_chunk=None, batch_block=None):
    """x_tokens: (batch, seq) int32 token ids. Returns logits (batch, vocab)."""
    Ep, Hp, V, Vp = kp["Ep"], kp["Hp"], kp["V"], kp["Vp"]
    B, S = x_tokens.shape
    assert S >= 1
    Bp = _round_up(B, 8)                         # sublane-aligned batch

    # Batch blocking (v7x: pass batch_block=Bp//2 to split the recurrence across
    # both TensorCores via the leading "parallel" grid axis). Default: one block.
    bb = Bp if batch_block is None else min(_round_up(batch_block, 8), Bp)
    assert Bp % bb == 0
    n_bblocks = Bp // bb

    if t_chunk is None:
        t_chunk = _pick_t_chunk(S, bb, Ep, Hp)   # VMEM-budgeted chunk length
    t_chunk = max(1, min(int(t_chunk), S))
    S_pad = _round_up(S, t_chunk)
    n_chunks = S_pad // t_chunk
    rows = t_chunk * bb
    s_actual = None if S_pad == S else S         # mask tail timesteps only if ragged

    # Embedding gather (XLA glue): transpose/reshape the tiny int token matrix, not the
    # embedded activations. Layout is batch-block-major, then time, then within-block
    # batch, so every (batch-block, time-chunk) region is one contiguous 2D block.
    # TODO(synk): fuse this gather into stage A with scalar-prefetched token ids.
    tok = jnp.pad(x_tokens, ((0, Bp - B), (0, S_pad - S)))           # (Bp, S_pad)
    tok = tok.reshape(n_bblocks, bb, S_pad).transpose(0, 2, 1)       # (nb, S_pad, bb)
    tok = tok.reshape(-1)
    x_flat = jnp.take(kp["embedding"], tok, axis=0).astype(jnp.bfloat16)  # (nb*S_pad*bb, Ep)

    unroll = min(t_chunk, 8)

    # ---- stage A: fused input projection + recurrence ----
    h_last = pl.pallas_call(
        functools.partial(lstm_chunk_kernel, t_chunk=t_chunk, bb=bb,
                          s_actual=s_actual, unroll=unroll),
        out_shape=jax.ShapeDtypeStruct((Bp, Hp), jnp.bfloat16),
        grid_spec=pltpu.PrefetchScalarGridSpec(
            num_scalar_prefetch=0,
            grid=(n_bblocks, n_chunks),
            in_specs=[
                pl.BlockSpec((rows, Ep), lambda b, t: (b * n_chunks + t, 0)),
                _invariant_spec((Ep, 4 * Hp), lambda b, t: (0, 0)),
                _invariant_spec((Hp, 4 * Hp), lambda b, t: (0, 0)),
                _invariant_spec((1, 4 * Hp), lambda b, t: (0, 0)),
            ],
            out_specs=pl.BlockSpec((bb, Hp), lambda b, t: (b, 0)),
            scratch_shapes=[
                pltpu.VMEM((rows, 4 * Hp), jnp.float32),   # x @ W_ih + bias (per chunk)
                pltpu.VMEM((bb, Hp), jnp.float32),         # cell state
            ],
        ),
        compiler_params=pltpu.CompilerParams(
            dimension_semantics=("parallel", "arbitrary"),
            vmem_limit_bytes=_vmem_limit_bytes(_stage_a_bytes(t_chunk, bb, Ep, Hp))),
    )(x_flat, kp["w_ih"], kp["w_hh"], kp["bias"])

    # ---- stage B: last-step linear head, tiled over padded vocab ----
    v_tile = Vp if Vp <= 2048 else math.gcd(Vp, 2048)
    head_bytes = (Bp * Hp * 2 + 2 * Hp * v_tile * 2 + 2 * v_tile * 4
                  + 2 * Bp * v_tile * 4)
    logits_p = pl.pallas_call(
        head_kernel,
        out_shape=jax.ShapeDtypeStruct((Bp, Vp), jnp.float32),
        grid_spec=pltpu.PrefetchScalarGridSpec(
            num_scalar_prefetch=0,
            grid=(Vp // v_tile,),
            in_specs=[
                _invariant_spec((Bp, Hp), lambda j: (0, 0)),
                pl.BlockSpec((Hp, v_tile), lambda j: (0, j)),
                pl.BlockSpec((1, v_tile), lambda j: (0, j)),
            ],
            out_specs=pl.BlockSpec((Bp, v_tile), lambda j: (0, j)),
        ),
        compiler_params=pltpu.CompilerParams(
            dimension_semantics=("parallel",),
            vmem_limit_bytes=_vmem_limit_bytes(head_bytes)),
    )(h_last, kp["w_out"], kp["b_out"])

    return logits_p[:B, :V]


# ---------------------------------------------------------------------------
# Pure-JAX reference (mirrors the kernel's bf16 matmul inputs / f32 accumulate)
# ---------------------------------------------------------------------------
def reference_forward(x_tokens, params):
    emb = params["embedding"]
    w_ih = params["w_ih"].astype(jnp.bfloat16)
    w_hh = params["w_hh"].astype(jnp.bfloat16)
    bias = params["bias"][0].astype(jnp.float32)
    w_out = params["w_out"].astype(jnp.bfloat16)
    b_out = params["b_out"][0].astype(jnp.float32)

    B, S = x_tokens.shape
    H = params["w_hh"].shape[0]
    x = jnp.take(emb, x_tokens, axis=0)                       # (B, S, E)
    x = jnp.transpose(x, (1, 0, 2)).astype(jnp.bfloat16)      # (S, B, E)

    def step(carry, x_t):
        h, c = carry
        gates = ((jnp.dot(x_t, w_ih, preferred_element_type=jnp.float32) + bias)
                 + jnp.dot(h, w_hh, preferred_element_type=jnp.float32))
        i = jax.nn.sigmoid(gates[:, 0 * H:1 * H])
        f = jax.nn.sigmoid(gates[:, 1 * H:2 * H])
        g = jnp.tanh(gates[:, 2 * H:3 * H])
        o = jax.nn.sigmoid(gates[:, 3 * H:4 * H])
        c = f * c + i * g
        h = (o * jnp.tanh(c)).astype(jnp.bfloat16)            # h carried in bf16 (as kernel)
        return (h, c), None

    h0 = jnp.zeros((B, H), jnp.bfloat16)
    c0 = jnp.zeros((B, H), jnp.float32)
    (h_last, _), _ = jax.lax.scan(step, (h0, c0), x)
    return jnp.dot(h_last, w_out, preferred_element_type=jnp.float32) + b_out


if __name__ == "__main__":
    # Small shapes consistent with the module's forward.
    vocab_size = 64
    embedding_size = 16
    hidden_size = 32
    batch = 2
    seq = 8

    key = jax.random.PRNGKey(0)
    k_emb, k_ih, k_hh, k_bih, k_bhh, k_w, k_x, k_x2 = jax.random.split(key, 8)

    # PyTorch-shaped parameters, stored transposed for right-matmuls.
    params = {
        "embedding": jax.random.normal(k_emb, (vocab_size, embedding_size), jnp.float32),
        # PyTorch weight_ih_l0: (4H, E) -> stored as (E, 4H)
        "w_ih": (0.1 * jax.random.normal(k_ih, (4 * hidden_size, embedding_size), jnp.float32)).T,
        # PyTorch weight_hh_l0: (4H, H) -> stored as (H, 4H)
        "w_hh": (0.1 * jax.random.normal(k_hh, (4 * hidden_size, hidden_size), jnp.float32)).T,
        # bias_ih_l0 + bias_hh_l0
        "bias": (0.1 * jax.random.normal(k_bih, (4 * hidden_size,), jnp.float32)
                 + 0.1 * jax.random.normal(k_bhh, (4 * hidden_size,), jnp.float32))[None, :],
        # PyTorch W.weight: (V, H) -> stored as (H, V); self.b initialized to zeros
        "w_out": (0.1 * jax.random.normal(k_w, (vocab_size, hidden_size), jnp.float32)).T,
        "b_out": jnp.zeros((1, vocab_size), jnp.float32),
    }

    kparams = prepare_params(params, hidden_size=hidden_size)

    # Test 1: S a multiple of the chosen chunk (no masking path).
    x_tokens = jax.random.randint(k_x, (batch, seq), 0, vocab_size, dtype=jnp.int32)
    logits = jax.block_until_ready(text_lstm_forward(x_tokens, kparams))
    ref = jax.block_until_ready(reference_forward(x_tokens, params))
    assert logits.shape == (batch, vocab_size)
    np.testing.assert_allclose(np.asarray(logits), np.asarray(ref), rtol=5e-3, atol=5e-3)

    # Test 2: ragged S (not a multiple of t_chunk) -> padded + masked tail timesteps,
    # and multiple time chunks so the h/c carry across grid steps is exercised.
    seq2 = 6
    x_tokens2 = jax.random.randint(k_x2, (batch, seq2), 0, vocab_size, dtype=jnp.int32)
    logits2 = jax.block_until_ready(text_lstm_forward(x_tokens2, kparams, t_chunk=4))
    ref2 = jax.block_until_ready(reference_forward(x_tokens2, params))
    np.testing.assert_allclose(np.asarray(logits2), np.asarray(ref2), rtol=5e-3, atol=5e-3)

    print("KERNEL_OK")
</pallas_src>

<mosaic_0001>
module attributes {stable_mosaic.version = 11 : i64} {
  func.func @k(%arg0: i32, %arg1: memref<8x128xf32, #tpu.memory_space<vmem>>, %arg2: memref<8x128xf32, #tpu.memory_space<vmem>>, %arg3: memref<8x128xf32, #tpu.memory_space<vmem>>) attributes {dimension_semantics = [#tpu.dimension_semantics<arbitrary>], iteration_bounds = array<i64: 2>, scalar_prefetch = 0 : i64, scratch_operands = 0 : i64, tpu.core_type = #tpu.core_type<tc>, window_params = [{transform_indices = @transform_0, window_bounds = array<i64: 8, 128>}, {pipeline_mode = #tpu.pipeline_mode<synchronous>, transform_indices = @transform_1, window_bounds = array<i64: 8, 128>}, {transform_indices = @transform_2, window_bounds = array<i64: 8, 128>}]} {
    %c0 = arith.constant 0 : index
    %c0_0 = arith.constant 0 : index
    %0 = vector.load %arg1[%c0, %c0_0] : memref<8x128xf32, #tpu.memory_space<vmem>>, vector<8x128xf32>
    %c0_1 = arith.constant 0 : index
    %c0_2 = arith.constant 0 : index
    %1 = vector.load %arg2[%c0_1, %c0_2] : memref<8x128xf32, #tpu.memory_space<vmem>>, vector<8x128xf32>
    %2 = arith.addf %0, %1 : vector<8x128xf32>
    %c0_3 = arith.constant 0 : index
    %c0_4 = arith.constant 0 : index
    %3 = vector.load %arg3[%c0_3, %c0_4] : memref<8x128xf32, #tpu.memory_space<vmem>>, vector<8x128xf32>
    tpu.vector_store %arg3[%c0_3, %c0_4], %2 {strides = array<i32>} : memref<8x128xf32, #tpu.memory_space<vmem>>, vector<8x128xf32>,
    return
  }
  func.func @transform_0(%arg0: i32) -> (i32, i32) {
    %c0_i32 = arith.constant 0 : i32
    %c0_i32_0 = arith.constant 0 : i32
    return %arg0, %c0_i32 : i32, i32
  }
  func.func @transform_1(%arg0: i32) -> (i32, i32) {
    %c0_i32 = arith.constant 0 : i32
    %c0_i32_0 = arith.constant 0 : i32
    %c0_i32_1 = arith.constant 0 : i32
    return %c0_i32, %c0_i32_0 : i32, i32
  }
  func.func @transform_2(%arg0: i32) -> (i32, i32) {
    %c0_i32 = arith.constant 0 : i32
    %c0_i32_0 = arith.constant 0 : i32
    return %arg0, %c0_i32 : i32, i32
  }
}

module attributes {stable_mosaic.version = 11 : i64} {
  func.func @lstm_chunk_kernel(%arg0: i32, %arg1: i32, %arg2: memref<64x128xbf16, #tpu.memory_space<vmem>>, %arg3: memref<128x512xbf16, #tpu.memory_space<vmem>>, %arg4: memref<128x512xbf16, #tpu.memory_space<vmem>>, %arg5: memref<1x512xf32, #tpu.memory_space<vmem>>, %arg6: memref<8x128xbf16, #tpu.memory_space<vmem>>, %arg7: memref<64x512xf32, #tpu.memory_space<vmem>>, %arg8: memref<8x128xf32, #tpu.memory_space<vmem>>) attributes {dimension_semantics = [#tpu.dimension_semantics<parallel>, #tpu.dimension_semantics<arbitrary>], iteration_bounds = array<i64: 1, 1>, scalar_prefetch = 0 : i64, scratch_operands = 2 : i64, tpu.core_type = #tpu.core_type<tc>, window_params = [{transform_indices = @transform_0, window_bounds = array<i64: 64, 128>}, {pipeline_mode = #tpu.pipeline_mode<synchronous>, transform_indices = @transform_1, window_bounds = array<i64: 128, 512>}, {pipeline_mode = #tpu.pipeline_mode<synchronous>, transform_indices = @transform_2, window_bounds = array<i64: 128, 512>}, {pipeline_mode = #tpu.pipeline_mode<synchronous>, transform_indices = @transform_3, window_bounds = array<i64: 1, 512>}, {transform_indices = @transform_4, window_bounds = array<i64: 8, 128>}]} {
    %c0_i32 = arith.constant 0 : i32
    %0 = arith.cmpi eq, %arg1, %c0_i32 : i32
    %1 = arith.extui %0 : i1 to i32
    %c0_i32_0 = arith.constant 0 : i32
    %2 = arith.cmpi ne, %1, %c0_i32_0 : i32
    scf.if %2 {
      %cst_137 = arith.constant 0.000000e+00 : bf16
      %306 = vector.broadcast %cst_137 : bf16 to vector<8x128xbf16>
      %c0_138 = arith.constant 0 : index
      %c0_139 = arith.constant 0 : index
      %307 = vector.load %arg6[%c0_138, %c0_139] : memref<8x128xbf16, #tpu.memory_space<vmem>>, vector<8x128xbf16>
      tpu.vector_store %arg6[%c0_138, %c0_139], %306 {strides = array<i32>} : memref<8x128xbf16, #tpu.memory_space<vmem>>, vector<8x128xbf16>,
      %cst_140 = arith.constant 0.000000e+00 : f32
      %308 = vector.broadcast %cst_140 : f32 to vector<8x128xf32>
      %c0_141 = arith.constant 0 : index
      %c0_142 = arith.constant 0 : index
      %309 = vector.load %arg8[%c0_141, %c0_142] : memref<8x128xf32, #tpu.memory_space<vmem>>, vector<8x128xf32>
      tpu.vector_store %arg8[%c0_141, %c0_142], %308 {strides = array<i32>} : memref<8x128xf32, #tpu.memory_space<vmem>>, vector<8x128xf32>,
    } else {
    }
    %c0 = arith.constant 0 : index
    %c0_1 = arith.constant 0 : index
    %3 = vector.load %arg2[%c0, %c0_1] : memref<64x128xbf16, #tpu.memory_space<vmem>>, vector<64x128xbf16>
    %c0_2 = arith.constant 0 : index
    %c0_3 = arith.constant 0 : index
    %4 = vector.load %arg3[%c0_2, %c0_3] : memref<128x512xbf16, #tpu.memory_space<vmem>>, vector<128x512xbf16>
    %cst = arith.constant dense<0.000000e+00> : vector<64x512xf32>
    %5 = tpu.matmul %3, %4, %cst {dimension_numbers = #tpu.dot_dimension_numbers<[1], [0], [0], [1], [0, 0, 1, 1], [], []>} : vector<64x128xbf16>, vector<128x512xbf16>, vector<64x512xf32> -> vector<64x512xf32>
    %c0_4 = arith.constant 0 : index
    %c0_5 = arith.constant 0 : index
    %6 = vector.load %arg5[%c0_4, %c0_5] : memref<1x512xf32, #tpu.memory_space<vmem>>, vector<1x512xf32>
    %7 = vector.broadcast %6 : vector<1x512xf32> to vector<64x512xf32>
    %8 = arith.addf %5, %7 : vector<64x512xf32>
    %c0_6 = arith.constant 0 : index
    %c0_7 = arith.constant 0 : index
    %9 = vector.load %arg7[%c0_6, %c0_7] : memref<64x512xf32, #tpu.memory_space<vmem>>, vector<64x512xf32>
    tpu.vector_store %arg7[%c0_6, %c0_7], %8 {strides = array<i32>} : memref<64x512xf32, #tpu.memory_space<vmem>>, vector<64x512xf32>,
    %c0_i32_8 = arith.constant 0 : i32
    %c8_i32 = arith.constant 8 : i32
    %10 = arith.muli %c0_i32_8, %c8_i32 : i32
    %11 = tpu.assume_multiple %10, 8 : i32
    %12 = arith.index_cast %11 : i32 to index
    %c0_9 = arith.constant 0 : index
    %13 = vector.load %arg7[%12, %c0_9] : memref<64x512xf32, #tpu.memory_space<vmem>>, vector<8x512xf32>
    %c0_10 = arith.constant 0 : index
    %c0_11 = arith.constant 0 : index
    %14 = vector.load %arg6[%c0_10, %c0_11] : memref<8x128xbf16, #tpu.memory_space<vmem>>, vector<8x128xbf16>
    %c0_12 = arith.constant 0 : index
    %c0_13 = arith.constant 0 : index
    %15 = vector.load %arg4[%c0_12, %c0_13] : memref<128x512xbf16, #tpu.memory_space<vmem>>, vector<128x512xbf16>
    %cst_14 = arith.constant dense<0.000000e+00> : vector<8x512xf32>
    %16 = tpu.matmul %14, %15, %cst_14 {dimension_numbers = #tpu.dot_dimension_numbers<[1], [0], [0], [1], [0, 0, 1, 1], [], []>} : vector<8x128xbf16>, vector<128x512xbf16>, vector<8x512xf32> -> vector<8x512xf32>
    %17 = arith.addf %13, %16 : vector<8x512xf32>
    %18 = vector.extract_strided_slice %17 {offsets = [0, 0], sizes = [8, 128], strides = [1, 1]} : vector<8x512xf32> to vector<8x128xf32>
    %19 = arith.negf %18 : vector<8x128xf32>
    %20 = math.exp %19 : vector<8x128xf32>
    %cst_15 = arith.constant 1.000000e+00 : f32
    %21 = vector.broadcast %cst_15 : f32 to vector<8x128xf32>
    %22 = arith.addf %21, %20 : vector<8x128xf32>
    %23 = arith.divf %21, %22 : vector<8x128xf32>
    %24 = vector.extract_strided_slice %17 {offsets = [0, 128], sizes = [8, 128], strides = [1, 1]} : vector<8x512xf32> to vector<8x128xf32>
    %25 = arith.negf %24 : vector<8x128xf32>
    %26 = math.exp %25 : vector<8x128xf32>
    %cst_16 = arith.constant 1.000000e+00 : f32
    %27 = vector.broadcast %cst_16 : f32 to vector<8x128xf32>
    %28 = arith.addf %27, %26 : vector<8x128xf32>
    %29 = arith.divf %27, %28 : vector<8x128xf32>
    %30 = vector.extract_strided_slice %17 {offsets = [0, 256], sizes = [8, 128], strides = [1, 1]} : vector<8x512xf32> to vector<8x128xf32>
    %31 = math.tanh %30 : vector<8x128xf32>
    %32 = vector.extract_strided_slice %17 {offsets = [0, 384], sizes = [8, 128], strides = [1, 1]} : vector<8x512xf32> to vector<8x128xf32>
    %33 = arith.negf %32 : vector<8x128xf32>
    %34 = math.exp %33 : vector<8x128xf32>
    %cst_17 = arith.constant 1.000000e+00 : f32
    %35 = vector.broadcast %cst_17 : f32 to vector<8x128xf32>
    %36 = arith.addf %35, %34 : vector<8x128xf32>
    %37 = arith.divf %35, %36 : vector<8x128xf32>
    %c0_18 = arith.constant 0 : index
    %c0_19 = arith.constant 0 : index
    %38 = vector.load %arg8[%c0_18, %c0_19] : memref<8x128xf32, #tpu.memory_space<vmem>>, vector<8x128xf32>
    %39 = arith.mulf %29, %38 : vector<8x128xf32>
    %40 = arith.mulf %23, %31 : vector<8x128xf32>
    %41 = arith.addf %39, %40 : vector<8x128xf32>
    %42 = math.tanh %41 : vector<8x128xf32>
    %43 = arith.mulf %37, %42 : vector<8x128xf32>
    %44 = arith.truncf %43 : vector<8x128xf32> to vector<8x128xbf16>
    %c0_20 = arith.constant 0 : index
    %c0_21 = arith.constant 0 : index
    %45 = vector.load %arg8[%c0_20, %c0_21] : memref<8x128xf32, #tpu.memory_space<vmem>>, vector<8x128xf32>
    tpu.vector_store %arg8[%c0_20, %c0_21], %41 {strides = array<i32>} : memref<8x128xf32, #tpu.memory_space<vmem>>, vector<8x128xf32>,
    %c0_22 = arith.constant 0 : index
    %c0_23 = arith.constant 0 : index
    %46 = vector.load %arg6[%c0_22, %c0_23] : memref<8x128xbf16, #tpu.memory_space<vmem>>, vector<8x128xbf16>
    tpu.vector_store %arg6[%c0_22, %c0_23], %44 {strides = array<i32>} : memref<8x128xbf16, #tpu.memory_space<vmem>>, vector<8x128xbf16>,
    %c1_i32 = arith.constant 1 : i32
    %c8_i32_24 = arith.constant 8 : i32
    %47 = arith.muli %c1_i32, %c8_i32_24 : i32
    %48 = tpu.assume_multiple %47, 8 : i32
    %49 = arith.index_cast %48 : i32 to index
    %c0_25 = arith.constant 0 : index
    %50 = vector.load %arg7[%49, %c0_25] : memref<64x512xf32, #tpu.memory_space<vmem>>, vector<8x512xf32>
    %c0_26 = arith.constant 0 : index
    %c0_27 = arith.constant 0 : index
    %51 = vector.load %arg6[%c0_26, %c0_27] : memref<8x128xbf16, #tpu.memory_space<vmem>>, vector<8x128xbf16>
    %c0_28 = arith.constant 0 : index
    %c0_29 = arith.constant 0 : index
    %52 = vector.load %arg4[%c0_28, %c0_29] : memref<128x512xbf16, #tpu.memory_space<vmem>>, vector<128x512xbf16>
    %cst_30 = arith.constant dense<0.000000e+00> : vector<8x512xf32>
    %53 = tpu.matmul %51, %52, %cst_30 {dimension_numbers = #tpu.dot_dimension_numbers<[1], [0], [0], [1], [0, 0, 1, 1], [], []>} : vector<8x128xbf16>, vector<128x512xbf16>, vector<8x512xf32> -> vector<8x512xf32>
    %54 = arith.addf %50, %53 : vector<8x512xf32>
    %55 = vector.extract_strided_slice %54 {offsets = [0, 0], sizes = [8, 128], strides = [1, 1]} : vector<8x512xf32> to vector<8x128xf32>
    %56 = arith.negf %55 : vector<8x128xf32>
    %57 = math.exp %56 : vector<8x128xf32>
    %cst_31 = arith.constant 1.000000e+00 : f32
    %58 = vector.broadcast %cst_31 : f32 to vector<8x128xf32>
    %59 = arith.addf %58, %57 : vector<8x128xf32>
    %60 = arith.divf %58, %59 : vector<8x128xf32>
    %61 = vector.extract_strided_slice %54 {offsets = [0, 128], sizes = [8, 128], strides = [1, 1]} : vector<8x512xf32> to vector<8x128xf32>
    %62 = arith.negf %61 : vector<8x128xf32>
    %63 = math.exp %62 : vector<8x128xf32>
    %cst_32 = arith.constant 1.000000e+00 : f32
    %64 = vector.broadcast %cst_32 : f32 to vector<8x128xf32>
    %65 = arith.addf %64, %63 : vector<8x128xf32>
    %66 = arith.divf %64, %65 : vector<8x128xf32>
    %67 = vector.extract_strided_slice %54 {offsets = [0, 256], sizes = [8, 128], strides = [1, 1]} : vector<8x512xf32> to vector<8x128xf32>
    %68 = math.tanh %67 : vector<8x128xf32>
    %69 = vector.extract_strided_slice %54 {offsets = [0, 384], sizes = [8, 128], strides = [1, 1]} : vector<8x512xf32> to vector<8x128xf32>
    %70 = arith.negf %69 : vector<8x128xf32>
    %71 = math.exp %70 : vector<8x128xf32>
    %cst_33 = arith.constant 1.000000e+00 : f32
    %72 = vector.broadcast %cst_33 : f32 to vector<8x128xf32>
    %73 = arith.addf %72, %71 : vector<8x128xf32>
    %74 = arith.divf %72, %73 : vector<8x128xf32>
    %c0_34 = arith.constant 0 : index
    %c0_35 = arith.constant 0 : index
    %75 = vector.load %arg8[%c0_34, %c0_35] : memref<8x128xf32, #tpu.memory_space<vmem>>, vector<8x128xf32>
    %76 = arith.mulf %66, %75 : vector<8x128xf32>
    %77 = arith.mulf %60, %68 : vector<8x128xf32>
    %78 = arith.addf %76, %77 : vector<8x128xf32>
    %79 = math.tanh %78 : vector<8x128xf32>
    %80 = arith.mulf %74, %79 : vector<8x128xf32>
    %81 = arith.truncf %80 : vector<8x128xf32> to vector<8x128xbf16>
    %c0_36 = arith.constant 0 : index
    %c0_37 = arith.constant 0 : index
    %82 = vector.load %arg8[%c0_36, %c0_37] : memref<8x128xf32, #tpu.memory_space<vmem>>, vector<8x128xf32>
    tpu.vector_store %arg8[%c0_36, %c0_37], %78 {strides = array<i32>} : memref<8x128xf32, #tpu.memory_space<vmem>>, vector<8x128xf32>,
    %c0_38 = arith.constant 0 : index
    %c0_39 = arith.constant 0 : index
    %83 = vector.load %arg6[%c0_38, %c0_39] : memref<8x128xbf16, #tpu.memory_space<vmem>>, vector<8x128xbf16>
    tpu.vector_store %arg6[%c0_38, %c0_39], %81 {strides = array<i32>} : memref<8x128xbf16, #tpu.memory_space<vmem>>, vector<8x128xbf16>,
    %c2_i32 = arith.constant 2 : i32
    %c8_i32_40 = arith.constant 8 : i32
    %84 = arith.muli %c2_i32, %c8_i32_40 : i32
    %85 = tpu.assume_multiple %84, 8 : i32
    %86 = arith.index_cast %85 : i32 to index
    %c0_41 = arith.constant 0 : index
    %87 = vector.load %arg7[%86, %c0_41] : memref<64x512xf32, #tpu.memory_space<vmem>>, vector<8x512xf32>
    %c0_42 = arith.constant 0 : index
    %c0_43 = arith.constant 0 : index
    %88 = vector.load %arg6[%c0_42, %c0_43] : memref<8x128xbf16, #tpu.memory_space<vmem>>, vector<8x128xbf16>
    %c0_44 = arith.constant 0 : index
    %c0_45 = arith.constant 0 : index
    %89 = vector.load %arg4[%c0_44, %c0_45] : memref<128x512xbf16, #tpu.memory_space<vmem>>, vector<128x512xbf16>
    %cst_46 = arith.constant dense<0.000000e+00> : vector<8x512xf32>
    %90 = tpu.matmul %88, %89, %cst_46 {dimension_numbers = #tpu.dot_dimension_numbers<[1], [0], [0], [1], [0, 0, 1, 1], [], []>} : vector<8x128xbf16>, vector<128x512xbf16>, vector<8x512xf32> -> vector<8x512xf32>
    %91 = arith.addf %87, %90 : vector<8x512xf32>
    %92 = vector.extract_strided_slice %91 {offsets = [0, 0], sizes = [8, 128], strides = [1, 1]} : vector<8x512xf32> to vector<8x128xf32>
    %93 = arith.negf %92 : vector<8x128xf32>
    %94 = math.exp %93 : vector<8x128xf32>
    %cst_47 = arith.constant 1.000000e+00 : f32
    %95 = vector.broadcast %cst_47 : f32 to vector<8x128xf32>
    %96 = arith.addf %95, %94 : vector<8x128xf32>
    %97 = arith.divf %95, %96 : vector<8x128xf32>
    %98 = vector.extract_strided_slice %91 {offsets = [0, 128], sizes = [8, 128], strides = [1, 1]} : vector<8x512xf32> to vector<8x128xf32>
    %99 = arith.negf %98 : vector<8x128xf32>
    %100 = math.exp %99 : vector<8x128xf32>
    %cst_48 = arith.constant 1.000000e+00 : f32
    %101 = vector.broadcast %cst_48 : f32 to vector<8x128xf32>
    %102 = arith.addf %101, %100 : vector<8x128xf32>
    %103 = arith.divf %101, %102 : vector<8x128xf32>
    %104 = vector.extract_strided_slice %91 {offsets = [0, 256], sizes = [8, 128], strides = [1, 1]} : vector<8x512xf32> to vector<8x128xf32>
    %105 = math.tanh %104 : vector<8x128xf32>
    %106 = vector.extract_strided_slice %91 {offsets = [0, 384], sizes = [8, 128], strides = [1, 1]} : vector<8x512xf32> to vector<8x128xf32>
    %107 = arith.negf %106 : vector<8x128xf32>
    %108 = math.exp %107 : vector<8x128xf32>
    %cst_49 = arith.constant 1.000000e+00 : f32
    %109 = vector.broadcast %cst_49 : f32 to vector<8x128xf32>
    %110 = arith.addf %109, %108 : vector<8x128xf32>
    %111 = arith.divf %109, %110 : vector<8x128xf32>
    %c0_50 = arith.constant 0 : index
    %c0_51 = arith.constant 0 : index
    %112 = vector.load %arg8[%c0_50, %c0_51] : memref<8x128xf32, #tpu.memory_space<vmem>>, vector<8x128xf32>
    %113 = arith.mulf %103, %112 : vector<8x128xf32>
    %114 = arith.mulf %97, %105 : vector<8x128xf32>
    %115 = arith.addf %113, %114 : vector<8x128xf32>
    %116 = math.tanh %115 : vector<8x128xf32>
    %117 = arith.mulf %111, %116 : vector<8x128xf32>
    %118 = arith.truncf %117 : vector<8x128xf32> to vector<8x128xbf16>
    %c0_52 = arith.constant 0 : index
    %c0_53 = arith.constant 0 : index
    %119 = vector.load %arg8[%c0_52, %c0_53] : memref<8x128xf32, #tpu.memory_space<vmem>>, vector<8x128xf32>
    tpu.vector_store %arg8[%c0_52, %c0_53], %115 {strides = array<i32>} : memref<8x128xf32, #tpu.memory_space<vmem>>, vector<8x128xf32>,
    %c0_54 = arith.constant 0 : index
    %c0_55 = arith.constant 0 : index
    %120 = vector.load %arg6[%c0_54, %c0_55] : memref<8x128xbf16, #tpu.memory_space<vmem>>, vector<8x128xbf16>
    tpu.vector_store %arg6[%c0_54, %c0_55], %118 {strides = array<i32>} : memref<8x128xbf16, #tpu.memory_space<vmem>>, vector<8x128xbf16>,
    %c3_i32 = arith.constant 3 : i32
    %c8_i32_56 = arith.constant 8 : i32
    %121 = arith.muli %c3_i32, %c8_i32_56 : i32
    %122 = tpu.assume_multiple %121, 8 : i32
    %123 = arith.index_cast %122 : i32 to index
    %c0_57 = arith.constant 0 : index
    %124 = vector.load %arg7[%123, %c0_57] : memref<64x512xf32, #tpu.memory_space<vmem>>, vector<8x512xf32>
    %c0_58 = arith.constant 0 : index
    %c0_59 = arith.constant 0 : index
    %125 = vector.load %arg6[%c0_58, %c0_59] : memref<8x128xbf16, #tpu.memory_space<vmem>>, vector<8x128xbf16>
    %c0_60 = arith.constant 0 : index
    %c0_61 = arith.constant 0 : index
    %126 = vector.load %arg4[%c0_60, %c0_61] : memref<128x512xbf16, #tpu.memory_space<vmem>>, vector<128x512xbf16>
    %cst_62 = arith.constant dense<0.000000e+00> : vector<8x512xf32>
    %127 = tpu.matmul %125, %126, %cst_62 {dimension_numbers = #tpu.dot_dimension_numbers<[1], [0], [0], [1], [0, 0, 1, 1], [], []>} : vector<8x128xbf16>, vector<128x512xbf16>, vector<8x512xf32> -> vector<8x512xf32>
    %128 = arith.addf %124, %127 : vector<8x512xf32>
    %129 = vector.extract_strided_slice %128 {offsets = [0, 0], sizes = [8, 128], strides = [1, 1]} : vector<8x512xf32> to vector<8x128xf32>
    %130 = arith.negf %129 : vector<8x128xf32>
    %131 = math.exp %130 : vector<8x128xf32>
    %cst_63 = arith.constant 1.000000e+00 : f32
    %132 = vector.broadcast %cst_63 : f32 to vector<8x128xf32>
    %133 = arith.addf %132, %131 : vector<8x128xf32>
    %134 = arith.divf %132, %133 : vector<8x128xf32>
    %135 = vector.extract_strided_slice %128 {offsets = [0, 128], sizes = [8, 128], strides = [1, 1]} : vector<8x512xf32> to vector<8x128xf32>
    %136 = arith.negf %135 : vector<8x128xf32>
    %137 = math.exp %136 : vector<8x128xf32>
    %cst_64 = arith.constant 1.000000e+00 : f32
    %138 = vector.broadcast %cst_64 : f32 to vector<8x128xf32>
    %139 = arith.addf %138, %137 : vector<8x128xf32>
    %140 = arith.divf %138, %139 : vector<8x128xf32>
    %141 = vector.extract_strided_slice %128 {offsets = [0, 256], sizes = [8, 128], strides = [1, 1]} : vector<8x512xf32> to vector<8x128xf32>
    %142 = math.tanh %141 : vector<8x128xf32>
    %143 = vector.extract_strided_slice %128 {offsets = [0, 384], sizes = [8, 128], strides = [1, 1]} : vector<8x512xf32> to vector<8x128xf32>
    %144 = arith.negf %143 : vector<8x128xf32>
    %145 = math.exp %144 : vector<8x128xf32>
    %cst_65 = arith.constant 1.000000e+00 : f32
    %146 = vector.broadcast %cst_65 : f32 to vector<8x128xf32>
    %147 = arith.addf %146, %145 : vector<8x128xf32>
    %148 = arith.divf %146, %147 : vector<8x128xf32>
    %c0_66 = arith.constant 0 : index
    %c0_67 = arith.constant 0 : index
    %149 = vector.load %arg8[%c0_66, %c0_67] : memref<8x128xf32, #tpu.memory_space<vmem>>, vector<8x128xf32>
    %150 = arith.mulf %140, %149 : vector<8x128xf32>
    %151 = arith.mulf %134, %142 : vector<8x128xf32>
    %152 = arith.addf %150, %151 : vector<8x128xf32>
    %153 = math.tanh %152 : vector<8x128xf32>
    %154 = arith.mulf %148, %153 : vector<8x128xf32>
    %155 = arith.truncf %154 : vector<8x128xf32> to vector<8x128xbf16>
    %c0_68 = arith.constant 0 : index
    %c0_69 = arith.constant 0 : index
    %156 = vector.load %arg8[%c0_68, %c0_69] : memref<8x128xf32, #tpu.memory_space<vmem>>, vector<8x128xf32>
    tpu.vector_store %arg8[%c0_68, %c0_69], %152 {strides = array<i32>} : memref<8x128xf32, #tpu.memory_space<vmem>>, vector<8x128xf32>,
    %c0_70 = arith.constant 0 : index
    %c0_71 = arith.constant 0 : index
    %157 = vector.load %arg6[%c0_70, %c0_71] : memref<8x128xbf16, #tpu.memory_space<vmem>>, vector<8x128xbf16>
    tpu.vector_store %arg6[%c0_70, %c0_71], %155 {strides = array<i32>} : memref<8x128xbf16, #tpu.memory_space<vmem>>, vector<8x128xbf16>,
    %c4_i32 = arith.constant 4 : i32
    %c8_i32_72 = arith.constant 8 : i32
    %158 = arith.muli %c4_i32, %c8_i32_72 : i32
    %159 = tpu.assume_multiple %158, 8 : i32
    %160 = arith.index_cast %159 : i32 to index
    %c0_73 = arith.constant 0 : index
    %161 = vector.load %arg7[%160, %c0_73] : memref<64x512xf32, #tpu.memory_space<vmem>>, vector<8x512xf32>
    %c0_74 = arith.constant 0 : index
    %c0_75 = arith.constant 0 : index
    %162 = vector.load %arg6[%c0_74, %c0_75] : memref<8x128xbf16, #tpu.memory_space<vmem>>, vector<8x128xbf16>
    %c0_76 = arith.constant 0 : index
    %c0_77 = arith.constant 0 : index
    %163 = vector.load %arg4[%c0_76, %c0_77] : memref<128x512xbf16, #tpu.memory_space<vmem>>, vector<128x512xbf16>
    %cst_78 = arith.constant dense<0.000000e+00> : vector<8x512xf32>
    %164 = tpu.matmul %162, %163, %cst_78 {dimension_numbers = #tpu.dot_dimension_numbers<[1], [0], [0], [1], [0, 0, 1, 1], [], []>} : vector<8x128xbf16>, vector<128x512xbf16>, vector<8x512xf32> -> vector<8x512xf32>
    %165 = arith.addf %161, %164 : vector<8x512xf32>
    %166 = vector.extract_strided_slice %165 {offsets = [0, 0], sizes = [8, 128], strides = [1, 1]} : vector<8x512xf32> to vector<8x128xf32>
    %167 = arith.negf %166 : vector<8x128xf32>
    %168 = math.exp %167 : vector<8x128xf32>
    %cst_79 = arith.constant 1.000000e+00 : f32
    %169 = vector.broadcast %cst_79 : f32 to vector<8x128xf32>
    %170 = arith.addf %169, %168 : vector<8x128xf32>
    %171 = arith.divf %169, %170 : vector<8x128xf32>
    %172 = vector.extract_strided_slice %165 {offsets = [0, 128], sizes = [8, 128], strides = [1, 1]} : vector<8x512xf32> to vector<8x128xf32>
    %173 = arith.negf %172 : vector<8x128xf32>
    %174 = math.exp %173 : vector<8x128xf32>
    %cst_80 = arith.constant 1.000000e+00 : f32
    %175 = vector.broadcast %cst_80 : f32 to vector<8x128xf32>
    %176 = arith.addf %175, %174 : vector<8x128xf32>
    %177 = arith.divf %175, %176 : vector<8x128xf32>
    %178 = vector.extract_strided_slice %165 {offsets = [0, 256], sizes = [8, 128], strides = [1, 1]} : vector<8x512xf32> to vector<8x128xf32>
    %179 = math.tanh %178 : vector<8x128xf32>
    %180 = vector.extract_strided_slice %165 {offsets = [0, 384], sizes = [8, 128], strides = [1, 1]} : vector<8x512xf32> to vector<8x128xf32>
    %181 = arith.negf %180 : vector<8x128xf32>
    %182 = math.exp %181 : vector<8x128xf32>
    %cst_81 = arith.constant 1.000000e+00 : f32
    %183 = vector.broadcast %cst_81 : f32 to vector<8x128xf32>
    %184 = arith.addf %183, %182 : vector<8x128xf32>
    %185 = arith.divf %183, %184 : vector<8x128xf32>
    %c0_82 = arith.constant 0 : index
    %c0_83 = arith.constant 0 : index
    %186 = vector.load %arg8[%c0_82, %c0_83] : memref<8x128xf32, #tpu.memory_space<vmem>>, vector<8x128xf32>
    %187 = arith.mulf %177, %186 : vector<8x128xf32>
    %188 = arith.mulf %171, %179 : vector<8x128xf32>
    %189 = arith.addf %187, %188 : vector<8x128xf32>
    %190 = math.tanh %189 : vector<8x128xf32>
    %191 = arith.mulf %185, %190 : vector<8x128xf32>
    %192 = arith.truncf %191 : vector<8x128xf32> to vector<8x128xbf16>
    %c0_84 = arith.constant 0 : index
    %c0_85 = arith.constant 0 : index
    %193 = vector.load %arg8[%c0_84, %c0_85] : memref<8x128xf32, #tpu.memory_space<vmem>>, vector<8x128xf32>
    tpu.vector_store %arg8[%c0_84, %c0_85], %189 {strides = array<i32>} : memref<8x128xf32, #tpu.memory_space<vmem>>, vector<8x128xf32>,
    %c0_86 = arith.constant 0 : index
    %c0_87 = arith.constant 0 : index
    %194 = vector.load %arg6[%c0_86, %c0_87] : memref<8x128xbf16, #tpu.memory_space<vmem>>, vector<8x128xbf16>
    tpu.vector_store %arg6[%c0_86, %c0_87], %192 {strides = array<i32>} : memref<8x128xbf16, #tpu.memory_space<vmem>>, vector<8x128xbf16>,
    %c5_i32 = arith.constant 5 : i32
    %c8_i32_88 = arith.constant 8 : i32
    %195 = arith.muli %c5_i32, %c8_i32_88 : i32
    %196 = tpu.assume_multiple %195, 8 : i32
    %197 = arith.index_cast %196 : i32 to index
    %c0_89 = arith.constant 0 : index
    %198 = vector.load %arg7[%197, %c0_89] : memref<64x512xf32, #tpu.memory_space<vmem>>, vector<8x512xf32>
    %c0_90 = arith.constant 0 : index
    %c0_91 = arith.constant 0 : index
    %199 = vector.load %arg6[%c0_90, %c0_91] : memref<8x128xbf16, #tpu.memory_space<vmem>>, vector<8x128xbf16>
    %c0_92 = arith.constant 0 : index
    %c0_93 = arith.constant 0 : index
    %200 = vector.load %arg4[%c0_92, %c0_93] : memref<128x512xbf16, #tpu.memory_space<vmem>>, vector<128x512xbf16>
    %cst_94 = arith.constant dense<0.000000e+00> : vector<8x512xf32>
    %201 = tpu.matmul %199, %200, %cst_94 {dimension_numbers = #tpu.dot_dimension_numbers<[1], [0], [0], [1], [0, 0, 1, 1], [], []>} : vector<8x128xbf16>, vector<128x512xbf16>, vector<8x512xf32> -> vector<8x512xf32>
    %202 = arith.addf %198, %201 : vector<8x512xf32>
    %203 = vector.extract_strided_slice %202 {offsets = [0, 0], sizes = [8, 128], strides = [1, 1]} : vector<8x512xf32> to vector<8x128xf32>
    %204 = arith.negf %203 : vector<8x128xf32>
    %205 = math.exp %204 : vector<8x128xf32>
    %cst_95 = arith.constant 1.000000e+00 : f32
    %206 = vector.broadcast %cst_95 : f32 to vector<8x128xf32>
    %207 = arith.addf %206, %205 : vector<8x128xf32>
    %208 = arith.divf %206, %207 : vector<8x128xf32>
    %209 = vector.extract_strided_slice %202 {offsets = [0, 128], sizes = [8, 128], strides = [1, 1]} : vector<8x512xf32> to vector<8x128xf32>
    %210 = arith.negf %209 : vector<8x128xf32>
    %211 = math.exp %210 : vector<8x128xf32>
    %cst_96 = arith.constant 1.000000e+00 : f32
    %212 = vector.broadcast %cst_96 : f32 to vector<8x128xf32>
    %213 = arith.addf %212, %211 : vector<8x128xf32>
    %214 = arith.divf %212, %213 : vector<8x128xf32>
    %215 = vector.extract_strided_slice %202 {offsets = [0, 256], sizes = [8, 128], strides = [1, 1]} : vector<8x512xf32> to vector<8x128xf32>
    %216 = math.tanh %215 : vector<8x128xf32>
    %217 = vector.extract_strided_slice %202 {offsets = [0, 384], sizes = [8, 128], strides = [1, 1]} : vector<8x512xf32> to vector<8x128xf32>
    %218 = arith.negf %217 : vector<8x128xf32>
    %219 = math.exp %218 : vector<8x128xf32>
    %cst_97 = arith.constant 1.000000e+00 : f32
    %220 = vector.broadcast %cst_97 : f32 to vector<8x128xf32>
    %221 = arith.addf %220, %219 : vector<8x128xf32>
    %222 = arith.divf %220, %221 : vector<8x128xf32>
    %c0_98 = arith.constant 0 : index
    %c0_99 = arith.constant 0 : index
    %223 = vector.load %arg8[%c0_98, %c0_99] : memref<8x128xf32, #tpu.memory_space<vmem>>, vector<8x128xf32>
    %224 = arith.mulf %214, %223 : vector<8x128xf32>
    %225 = arith.mulf %208, %216 : vector<8x128xf32>
    %226 = arith.addf %224, %225 : vector<8x128xf32>
    %227 = math.tanh %226 : vector<8x128xf32>
    %228 = arith.mulf %222, %227 : vector<8x128xf32>
    %229 = arith.truncf %228 : vector<8x128xf32> to vector<8x128xbf16>
    %c0_100 = arith.constant 0 : index
    %c0_101 = arith.constant 0 : index
    %230 = vector.load %arg8[%c0_100, %c0_101] : memref<8x128xf32, #tpu.memory_space<vmem>>, vector<8x128xf32>
    tpu.vector_store %arg8[%c0_100, %c0_101], %226 {strides = array<i32>} : memref<8x128xf32, #tpu.memory_space<vmem>>, vector<8x128xf32>,
    %c0_102 = arith.constant 0 : index
    %c0_103 = arith.constant 0 : index
    %231 = vector.load %arg6[%c0_102, %c0_103] : memref<8x128xbf16, #tpu.memory_space<vmem>>, vector<8x128xbf16>
    tpu.vector_store %arg6[%c0_102, %c0_103], %229 {strides = array<i32>} : memref<8x128xbf16, #tpu.memory_space<vmem>>, vector<8x128xbf16>,
    %c6_i32 = arith.constant 6 : i32
    %c8_i32_104 = arith.constant 8 : i32
    %232 = arith.muli %c6_i32, %c8_i32_104 : i32
    %233 = tpu.assume_multiple %232, 8 : i32
    %234 = arith.index_cast %233 : i32 to index
    %c0_105 = arith.constant 0 : index
    %235 = vector.load %arg7[%234, %c0_105] : memref<64x512xf32, #tpu.memory_space<vmem>>, vector<8x512xf32>
    %c0_106 = arith.constant 0 : index
    %c0_107 = arith.constant 0 : index
    %236 = vector.load %arg6[%c0_106, %c0_107] : memref<8x128xbf16, #tpu.memory_space<vmem>>, vector<8x128xbf16>
    %c0_108 = arith.constant 0 : index
    %c0_109 = arith.constant 0 : index
    %237 = vector.load %arg4[%c0_108, %c0_109] : memref<128x512xbf16, #tpu.memory_space<vmem>>, vector<128x512xbf16>
    %cst_110 = arith.constant dense<0.000000e+00> : vector<8x512xf32>
    %238 = tpu.matmul %236, %237, %cst_110 {dimension_numbers = #tpu.dot_dimension_numbers<[1], [0], [0], [1], [0, 0, 1, 1], [], []>} : vector<8x128xbf16>, vector<128x512xbf16>, vector<8x512xf32> -> vector<8x512xf32>
    %239 = arith.addf %235, %238 : vector<8x512xf32>
    %240 = vector.extract_strided_slice %239 {offsets = [0, 0], sizes = [8, 128], strides = [1, 1]} : vector<8x512xf32> to vector<8x128xf32>
    %241 = arith.negf %240 : vector<8x128xf32>
    %242 = math.exp %241 : vector<8x128xf32>
    %cst_111 = arith.constant 1.000000e+00 : f32
    %243 = vector.broadcast %cst_111 : f32 to vector<8x128xf32>
    %244 = arith.addf %243, %242 : vector<8x128xf32>
    %245 = arith.divf %243, %244 : vector<8x128xf32>
    %246 = vector.extract_strided_slice %239 {offsets = [0, 128], sizes = [8, 128], strides = [1, 1]} : vector<8x512xf32> to vector<8x128xf32>
    %247 = arith.negf %246 : vector<8x128xf32>
    %248 = math.exp %247 : vector<8x128xf32>
    %cst_112 = arith.constant 1.000000e+00 : f32
    %249 = vector.broadcast %cst_112 : f32 to vector<8x128xf32>
    %250 = arith.addf %249, %248 : vector<8x128xf32>
    %251 = arith.divf %249, %250 : vector<8x128xf32>
    %252 = vector.extract_strided_slice %239 {offsets = [0, 256], sizes = [8, 128], strides = [1, 1]} : vector<8x512xf32> to vector<8x128xf32>
    %253 = math.tanh %252 : vector<8x128xf32>
    %254 = vector.extract_strided_slice %239 {offsets = [0, 384], sizes = [8, 128], strides = [1, 1]} : vector<8x512xf32> to vector<8x128xf32>
    %255 = arith.negf %254 : vector<8x128xf32>
    %256 = math.exp %255 : vector<8x128xf32>
    %cst_113 = arith.constant 1.000000e+00 : f32
    %257 = vector.broadcast %cst_113 : f32 to vector<8x128xf32>
    %258 = arith.addf %257, %256 : vector<8x128xf32>
    %259 = arith.divf %257, %258 : vector<8x128xf32>
    %c0_114 = arith.constant 0 : index
    %c0_115 = arith.constant 0 : index
    %260 = vector.load %arg8[%c0_114, %c0_115] : memref<8x128xf32, #tpu.memory_space<vmem>>, vector<8x128xf32>
    %261 = arith.mulf %251, %260 : vector<8x128xf32>
    %262 = arith.mulf %245, %253 : vector<8x128xf32>
    %263 = arith.addf %261, %262 : vector<8x128xf32>
    %264 = math.tanh %263 : vector<8x128xf32>
    %265 = arith.mulf %259, %264 : vector<8x128xf32>
    %266 = arith.truncf %265 : vector<8x128xf32> to vector<8x128xbf16>
    %c0_116 = arith.constant 0 : index
    %c0_117 = arith.constant 0 : index
    %267 = vector.load %arg8[%c0_116, %c0_117] : memref<8x128xf32, #tpu.memory_space<vmem>>, vector<8x128xf32>
    tpu.vector_store %arg8[%c0_116, %c0_117], %263 {strides = array<i32>} : memref<8x128xf32, #tpu.memory_space<vmem>>, vector<8x128xf32>,
    %c0_118 = arith.constant 0 : index
    %c0_119 = arith.constant 0 : index
    %268 = vector.load %arg6[%c0_118, %c0_119] : memref<8x128xbf16, #tpu.memory_space<vmem>>, vector<8x128xbf16>
    tpu.vector_store %arg6[%c0_118, %c0_119], %266 {strides = array<i32>} : memref<8x128xbf16, #tpu.memory_space<vmem>>, vector<8x128xbf16>,
    %c7_i32 = arith.constant 7 : i32
    %c8_i32_120 = arith.constant 8 : i32
    %269 = arith.muli %c7_i32, %c8_i32_120 : i32
    %270 = tpu.assume_multiple %269, 8 : i32
    %271 = arith.index_cast %270 : i32 to index
    %c0_121 = arith.constant 0 : index
    %272 = vector.load %arg7[%271, %c0_121] : memref<64x512xf32, #tpu.memory_space<vmem>>, vector<8x512xf32>
    %c0_122 = arith.constant 0 : index
    %c0_123 = arith.constant 0 : index
    %273 = vector.load %arg6[%c0_122, %c0_123] : memref<8x128xbf16, #tpu.memory_space<vmem>>, vector<8x128xbf16>
    %c0_124 = arith.constant 0 : index
    %c0_125 = arith.constant 0 : index
    %274 = vector.load %arg4[%c0_124, %c0_125] : memref<128x512xbf16, #tpu.memory_space<vmem>>, vector<128x512xbf16>
    %cst_126 = arith.constant dense<0.000000e+00> : vector<8x512xf32>
    %275 = tpu.matmul %273, %274, %cst_126 {dimension_numbers = #tpu.dot_dimension_numbers<[1], [0], [0], [1], [0, 0, 1, 1], [], []>} : vector<8x128xbf16>, vector<128x512xbf16>, vector<8x512xf32> -> vector<8x512xf32>
    %276 = arith.addf %272, %275 : vector<8x512xf32>
    %277 = vector.extract_strided_slice %276 {offsets = [0, 0], sizes = [8, 128], strides = [1, 1]} : vector<8x512xf32> to vector<8x128xf32>
    %278 = arith.negf %277 : vector<8x128xf32>
    %279 = math.exp %278 : vector<8x128xf32>
    %cst_127 = arith.constant 1.000000e+00 : f32
    %280 = vector.broadcast %cst_127 : f32 to vector<8x128xf32>
    %281 = arith.addf %280, %279 : vector<8x128xf32>
    %282 = arith.divf %280, %281 : vector<8x128xf32>
    %283 = vector.extract_strided_slice %276 {offsets = [0, 128], sizes = [8, 128], strides = [1, 1]} : vector<8x512xf32> to vector<8x128xf32>
    %284 = arith.negf %283 : vector<8x128xf32>
    %285 = math.exp %284 : vector<8x128xf32>
    %cst_128 = arith.constant 1.000000e+00 : f32
    %286 = vector.broadcast %cst_128 : f32 to vector<8x128xf32>
    %287 = arith.addf %286, %285 : vector<8x128xf32>
    %288 = arith.divf %286, %287 : vector<8x128xf32>
    %289 = vector.extract_strided_slice %276 {offsets = [0, 256], sizes = [8, 128], strides = [1, 1]} : vector<8x512xf32> to vector<8x128xf32>
    %290 = math.tanh %289 : vector<8x128xf32>
    %291 = vector.extract_strided_slice %276 {offsets = [0, 384], sizes = [8, 128], strides = [1, 1]} : vector<8x512xf32> to vector<8x128xf32>
    %292 = arith.negf %291 : vector<8x128xf32>
    %293 = math.exp %292 : vector<8x128xf32>
    %cst_129 = arith.constant 1.000000e+00 : f32
    %294 = vector.broadcast %cst_129 : f32 to vector<8x128xf32>
    %295 = arith.addf %294, %293 : vector<8x128xf32>
    %296 = arith.divf %294, %295 : vector<8x128xf32>
    %c0_130 = arith.constant 0 : index
    %c0_131 = arith.constant 0 : index
    %297 = vector.load %arg8[%c0_130, %c0_131] : memref<8x128xf32, #tpu.memory_space<vmem>>, vector<8x128xf32>
    %298 = arith.mulf %288, %297 : vector<8x128xf32>
    %299 = arith.mulf %282, %290 : vector<8x128xf32>
    %300 = arith.addf %298, %299 : vector<8x128xf32>
    %301 = math.tanh %300 : vector<8x128xf32>
    %302 = arith.mulf %296, %301 : vector<8x128xf32>
    %303 = arith.truncf %302 : vector<8x128xf32> to vector<8x128xbf16>
    %c0_132 = arith.constant 0 : index
    %c0_133 = arith.constant 0 : index
    %304 = vector.load %arg8[%c0_132, %c0_133] : memref<8x128xf32, #tpu.memory_space<vmem>>, vector<8x128xf32>
    tpu.vector_store %arg8[%c0_132, %c0_133], %300 {strides = array<i32>} : memref<8x128xf32, #tpu.memory_space<vmem>>, vector<8x128xf32>,
    %c0_134 = arith.constant 0 : index
    %c0_135 = arith.constant 0 : index
    %305 = vector.load %arg6[%c0_134, %c0_135] : memref<8x128xbf16, #tpu.memory_space<vmem>>, vector<8x128xbf16>
    tpu.vector_store %arg6[%c0_134, %c0_135], %303 {strides = array<i32>} : memref<8x128xbf16, #tpu.memory_space<vmem>>, vector<8x128xbf16>,
    %c8_i32_136 = arith.constant 8 : i32
    return
  }
  func.func @transform_0(%arg0: i32, %arg1: i32) -> (i32, i32) {
    %c1_i32 = arith.constant 1 : i32
    %0 = arith.muli %arg0, %c1_i32 : i32
    %1 = arith.addi %0, %arg1 : i32
    %c0_i32 = arith.constant 0 : i32
    %c0_i32_0 = arith.constant 0 : i32
    return %1, %c0_i32 : i32, i32
  }
  func.func @transform_1(%arg0: i32, %arg1: i32) -> (i32, i32) {
    %c0_i32 = arith.constant 0 : i32
    %c0_i32_0 = arith.constant 0 : i32
    %c0_i32_1 = arith.constant 0 : i32
    return %c0_i32, %c0_i32_0 : i32, i32
  }
  func.func @transform_2(%arg0: i32, %arg1: i32) -> (i32, i32) {
    %c0_i32 = arith.constant 0 : i32
    %c0_i32_0 = arith.constant 0 : i32
    %c0_i32_1 = arith.constant 0 : i32
    return %c0_i32, %c0_i32_0 : i32, i32
  }
  func.func @transform_3(%arg0: i32, %arg1: i32) -> (i32, i32) {
    %c0_i32 = arith.constant 0 : i32
    %c0_i32_0 = arith.constant 0 : i32
    %c0_i32_1 = arith.constant 0 : i32
    return %c0_i32, %c0_i32_0 : i32, i32
  }
  func.func @transform_4(%arg0: i32, %arg1: i32) -> (i32, i32) {
    %c0_i32 = arith.constant 0 : i32
    %c0_i32_0 = arith.constant 0 : i32
    return %arg0, %c0_i32 : i32, i32
  }
}

</mosaic_0001>

<llo_original>
// kernel: tpu_custom_call.1
$region0: #{tpu_custom_call.1}
  #allocation0 [shape = 'u32[]', space=smem, size = 0x4, offset = 0x4, fixed_abs, tag = 'smem constant byte address 0x4 - core index']
  #allocation1 [shape = 'u32[144,128]{1,0:T(1,128)}', space=vmem, size = 0x12000, scoped, tag = 'internal scratch']
  %s0 = inlined_call_operand.hbm [shape: f32[16,128], index: 0, kind: input, shape index: {}]
  %s1 = inlined_call_operand.hbm [shape: f32[8,128], index: 1, kind: input, shape index: {}]
  %s2 = inlined_call_operand.hbm [shape: f32[16,128], index: 2, kind: output, shape index: {}]
  %s3 = sld [smem:[#allocation0]]
  $region49: #{tpu_custom_call.1} parent=0
    _
  %s5 = ssub.s32 1, %s3
  %s6 = scalar_select 0, %s5, %s3
  $region1: #{tpu_custom_call.1} parent=0
    #allocation2 [shape = 'u8[8192]{0}', space=vmem, size = 0x2000, scoped, tag = 'input window, operand 0']
    #allocation3 [shape = 's32[2]{0}', space=sflag, size = 0x8, scoped, tag = 'scoped memory for tpu_custom_call.1']
    #allocation4 [shape = 's32[2]{0}', space=sflag, size = 0x8, scoped, tag = 'scoped memory for tpu_custom_call.1']
    #allocation5 [shape = 'u8[4096]{0}', space=vmem, size = 0x1000, scoped, tag = 'input window, operand 1, single buffered']
    #allocation6 [shape = 's32[1]{0}', space=sflag, size = 0x4, scoped, tag = 'scoped memory for tpu_custom_call.1']
    #allocation7 [shape = 'u8[8192]{0}', space=vmem, size = 0x2000, scoped, tag = 'output window, operand 0']
    %7 = vsyncpa [#allocation3], 0
    %s8 = scalar_lea.sflag [#allocation3], 1
    %9 = vsyncpa %s8, 0
    %10 = vsyncpa [#allocation6], 0
    %11 = vsyncpa [#allocation4], 0
    %s12 = scalar_lea.sflag [#allocation4], 1
    %13 = vsyncpa %s12, 0
    loop: start=0, step=1, limit=4
    $region2: #{tpu_custom_call.1} parent=1 // loop_pre_header
      _
    $region3: #{tpu_custom_call.1} parent=1 // loop_header
      %s15 = sphi 0, %s19
      %p16 = scmp.ge.s32.totalorder %s15, 4
      %s25 = sphi 0, %s27
      %s28 = sphi 0, %s25
      %s29 = sphi 0, %s28
      %s45 = sphi 0, %s29
      %s49 = sphi 0, %s49
      %s51 = sphi 0, %s49
      %s52 = sphi 0, %s51
      %s66 = sphi 0, %s52
      %s72 = sphi 0, %s74
      %s75 = sphi 0, %s72
      %s76 = sphi 0, %s75
      %s92 = sphi 0, %s76
    $region4: #{tpu_custom_call.1} parent=1 // loop_header_branch
      %18 = sbr.rel (%p16) target = $region8
    $region5: #{tpu_custom_call.1} parent=1 // loop_body
      %s20 = ssub.s32 %s15, 1
      %s21 = ssub.s32 %s15, 2
      %s22 = sadd.s32 %s15, 1
      %s23 = ssub.s32 %s15, %s22
      %p24 = scmp.eq.s32.totalorder %s23, 0
      %s26 = sadd.s32 %s25, 1
      %s27 = scalar_select %p24, %s25, %s26
      %p30 = pneg %p24
      %p31 = scmp.eq.s32.totalorder %s15, 1
      %p32 = por %p30, %p31
      %p33 = scmp.ne.s32.totalorder %s25, %s28
      %p34 = scmp.eq.s32.totalorder %s15, 0
      %p35 = por %p33, %p34
      %p36 = scmp.ne.s32.totalorder %s25, %s28
      %p37 = scmp.eq.s32.totalorder %s20, 1
      %p38 = por %p36, %p37
      %p39 = scmp.ne.s32.totalorder %s28, %s29
      %p40 = scmp.eq.s32.totalorder %s20, 0
      %p41 = por %p39, %p40
      %p42 = scmp.ne.s32.totalorder %s28, %s29
      %p43 = scmp.eq.s32.totalorder %s21, 1
      %p44 = por %p42, %p43
      %p46 = scmp.ne.s32.totalorder %s29, %s45
      %p47 = scmp.eq.s32.totalorder %s21, 0
      %p48 = por %p46, %p47
      %s50 = sadd.s32 %s49, 1
      %p53 = scmp.eq.s32.totalorder %s15, 1
      %p54 = scmp.ne.s32.totalorder %s49, %s51
      %p55 = scmp.eq.s32.totalorder %s15, 0
      %p56 = por %p54, %p55
      %p57 = scmp.ne.s32.totalorder %s49, %s51
      %p58 = scmp.eq.s32.totalorder %s20, 1
      %p59 = por %p57, %p58
      %p60 = scmp.ne.s32.totalorder %s51, %s52
      %p61 = scmp.eq.s32.totalorder %s20, 0
      %p62 = por %p60, %p61
      %p63 = scmp.ne.s32.totalorder %s51, %s52
      %p64 = scmp.eq.s32.totalorder %s21, 1
      %p65 = por %p63, %p64
      %p67 = scmp.ne.s32.totalorder %s52, %s66
      %p68 = scmp.eq.s32.totalorder %s21, 0
      %p69 = por %p67, %p68
      %s70 = ssub.s32 %s15, %s22
      %p71 = scmp.eq.s32.totalorder %s70, 0
      %s73 = sadd.s32 %s72, 1
      %s74 = scalar_select %p71, %s72, %s73
      %p77 = pneg %p71
      %p78 = scmp.eq.s32.totalorder %s15, 1
      %p79 = por %p77, %p78
      %p80 = scmp.ne.s32.totalorder %s72, %s75
      %p81 = scmp.eq.s32.totalorder %s15, 0
      %p82 = por %p80, %p81
      %p83 = scmp.ne.s32.totalorder %s72, %s75
      %p84 = scmp.eq.s32.totalorder %s20, 1
      %p85 = por %p83, %p84
      %p86 = scmp.ne.s32.totalorder %s75, %s76
      %p87 = scmp.eq.s32.totalorder %s20, 0
      %p88 = por %p86, %p87
      %p89 = scmp.ne.s32.totalorder %s75, %s76
      %p90 = scmp.eq.s32.totalorder %s21, 1
      %p91 = por %p89, %p90
      %p93 = scmp.ne.s32.totalorder %s76, %s92
      %p94 = scmp.eq.s32.totalorder %s21, 0
      %p95 = por %p93, %p94
      %p96 = scmp.le.s32.totalorder 1, %s15
      %p97 = scmp.lt.s32.totalorder %s15, 3
      %p98 = pnand %p96, %p97
      %p99 = pneg %p98
      // Predicated region
      $region9: #{tpu_custom_call.1} parent=5 // pred_check
        _
      $region10: #{tpu_custom_call.1} parent=5 // pred_check_branch
        %101 = sbr.rel (%p98) target = $region12
      $region11: #{tpu_custom_call.1} parent=5 // pred_region
        %s102 = ssub.s32 %s15, 1
        // Predicated region
        $region13: #{tpu_custom_call.1} parent=11 // pred_check
          %p103 = pneg %p62
        $region14: #{tpu_custom_call.1} parent=11 // pred_check_branch
          %105 = sbr.rel (%p103) target = $region16
        $region15: #{tpu_custom_call.1} parent=11 // pred_region
          %s107 = ssub.s32 128, 128
          %108 = vsyncadd [#allocation6], %s107
          %s110 = sshll.u32 [#allocation5], 4
          %s111 = int_to_ptr.vmem [resolvable:$true] %s110
          %113 = dma.hbm_to_vmem [thread:$0]  %s1, 128, %s111, [#allocation6]
        $region16: #{tpu_custom_call.1} parent=11 // pred_fallthru
          _
      $region12: #{tpu_custom_call.1} parent=5 // pred_fallthru
        _
      %p114 = scmp.lt.s32.totalorder %s15, 2
      // Predicated region
      $region17: #{tpu_custom_call.1} parent=5 // pred_check
        %p115 = pneg %p114
      $region18: #{tpu_custom_call.1} parent=5 // pred_check_branch
        %117 = sbr.rel (%p115) target = $region20
      $region19: #{tpu_custom_call.1} parent=5 // pred_region
        // Predicated region
        $region21: #{tpu_custom_call.1} parent=19 // pred_check
          %p118 = pneg %p35
        $region22: #{tpu_custom_call.1} parent=19 // pred_check_branch
          %120 = sbr.rel (%p118) target = $region24
        $region23: #{tpu_custom_call.1} parent=19 // pred_region
          %s121 = sand.u32 %s25, 1
          %s122 = scalar_lea.sflag [#allocation3], %s121
          %s123 = sand.u32 %s25, 1
          %s124 = smul.addr %s123, 8
          %s125 = scalar_lea.vmem [#allocation2], %s124
          %s127 = ssub.s32 128, 128
          %128 = vsyncadd %s122, %s127
          %s129 = smul.addr %s15, 128
          %s130 = scalar_lea.hbm %s0, %s129
          %s132 = sshll.u32 %s125, 4
          %s133 = int_to_ptr.vmem [resolvable:$true] %s132
          %135 = dma.hbm_to_vmem [thread:$0]  %s130, 128, %s133, %s122
        $region24: #{tpu_custom_call.1} parent=19 // pred_fallthru
          _
      $region20: #{tpu_custom_call.1} parent=5 // pred_fallthru
        _
      %p136 = scmp.le.s32.totalorder 1, %s15
      %p137 = scmp.lt.s32.totalorder %s15, 3
      %p138 = pnand %p136, %p137
      %p139 = pneg %p138
      // Predicated region
      $region25: #{tpu_custom_call.1} parent=5 // pred_check
        _
      $region26: #{tpu_custom_call.1} parent=5 // pred_check_branch
        %141 = sbr.rel (%p138) target = $region28
      $region27: #{tpu_custom_call.1} parent=5 // pred_region
        %s142 = ssub.s32 %s15, 1
        %s143 = sand.u32 %s28, 1
        %s144 = scalar_lea.sflag [#allocation3], %s143
        %s145 = sand.u32 %s28, 1
        %s146 = smul.addr %s145, 8
        %s147 = scalar_lea.vmem [#allocation2], %s146
        // Predicated region
        $region29: #{tpu_custom_call.1} parent=27 // pred_check
          %p148 = pneg %p41
        $region30: #{tpu_custom_call.1} parent=27 // pred_check_branch
          %150 = sbr.rel (%p148) target = $region32
        $region31: #{tpu_custom_call.1} parent=27 // pred_region
          %151 = dma.done %s144, 128
        $region32: #{tpu_custom_call.1} parent=27 // pred_fallthru
          _
        // Predicated region
        $region33: #{tpu_custom_call.1} parent=27 // pred_check
          %p152 = pneg %p62
        $region34: #{tpu_custom_call.1} parent=27 // pred_check_branch
          %154 = sbr.rel (%p152) target = $region36
        $region35: #{tpu_custom_call.1} parent=27 // pred_region
          %155 = dma.done [#allocation6], 128
        $region36: #{tpu_custom_call.1} parent=27 // pred_fallthru
          _
        %s156 = sand.u32 %s28, 1
        %s157 = scalar_lea.sflag [#allocation3], %s156
        %s158 = sand.u32 %s28, 1
        %s159 = smul.addr %s158, 8
        %s160 = scalar_lea.vmem [#allocation2], %s159
        %p161 = pneg %p41
        %p162 = pneg %p38
        %p163 = pneg %p62
        %p164 = pneg %p59
        %p165 = pneg %p88
        %p166 = pneg %p85
        %s167 = sand.u32 %s75, 1
        %s168 = scalar_lea.sflag [#allocation4], %s167
        %s169 = sand.u32 %s75, 1
        %s170 = smul.addr %s169, 8
        %s171 = scalar_lea.vmem [#allocation7], %s170
        %v172 = vld [vmem:[%s147] sm:$0xff]
        %v173 = vld [vmem:[#allocation5] sm:$0xff]
        %v174 = vadd.f32 %v172, %v173
        %175 = vst [vmem:[%s171] sm:$0xff] %v174
        %s176 = sand.u32 %s75, 1
        %s177 = scalar_lea.sflag [#allocation4], %s176
        %s178 = sand.u32 %s75, 1
        %s179 = smul.addr %s178, 8
        %s180 = scalar_lea.vmem [#allocation7], %s179
        // Predicated region
        $region37: #{tpu_custom_call.1} parent=27 // pred_check
          %p181 = pneg %p85
        $region38: #{tpu_custom_call.1} parent=27 // pred_check_branch
          %183 = sbr.rel (%p181) target = $region40
        $region39: #{tpu_custom_call.1} parent=27 // pred_region
          %s185 = ssub.s32 128, 128
          %186 = vsyncadd %s177, %s185
          %s187 = smul.addr %s20, 128
          %s188 = scalar_lea.hbm %s2, %s187
          %s190 = sshll.u32 %s180, 4
          %s191 = int_to_ptr.vmem [resolvable:$true] %s190
          %193 = dma.vmem_to_hbm [thread:$0]  %s191, 128, %s188, %s177
        $region40: #{tpu_custom_call.1} parent=27 // pred_fallthru
          _
      $region28: #{tpu_custom_call.1} parent=5 // pred_fallthru
        _
      %p194 = scmp.le.s32.totalorder 2, %s15
      // Predicated region
      $region41: #{tpu_custom_call.1} parent=5 // pred_check
        %p195 = pneg %p194
      $region42: #{tpu_custom_call.1} parent=5 // pred_check_branch
        %197 = sbr.rel (%p195) target = $region44
      $region43: #{tpu_custom_call.1} parent=5 // pred_region
        %s198 = ssub.s32 %s15, 2
        // Predicated region
        $region45: #{tpu_custom_call.1} parent=43 // pred_check
          %p199 = pneg %p91
        $region46: #{tpu_custom_call.1} parent=43 // pred_check_branch
          %201 = sbr.rel (%p199) target = $region48
        $region47: #{tpu_custom_call.1} parent=43 // pred_region
          %s202 = sand.u32 %s76, 1
          %s203 = scalar_lea.sflag [#allocation4], %s202
          %s204 = sand.u32 %s76, 1
          %s205 = smul.addr %s204, 8
          %s206 = scalar_lea.vmem [#allocation7], %s205
          %207 = dma.done %s203, 128
        $region48: #{tpu_custom_call.1} parent=43 // pred_fallthru
          _
      $region44: #{tpu_custom_call.1} parent=5 // pred_fallthru
        _
    $region6: #{tpu_custom_call.1} parent=1 // loop_footer
      %s19 = sadd.s32 1, %s15
    $region7: #{tpu_custom_call.1} parent=1 // loop_footer_branch
      %14 = sbr.rel target = $region3
    $region8: #{tpu_custom_call.1} parent=1 // loop_exit
      _
    %208 = vsyncpa [#allocation3], 1
    %s209 = scalar_lea.sflag [#allocation3], 1
    %210 = vsyncpa %s209, 1
    %211 = vsyncpa [#allocation6], 1
    %212 = vsyncpa [#allocation4], 1
    %s213 = scalar_lea.sflag [#allocation4], 1
    %214 = vsyncpa %s213, 1

// kernel: tpu_custom_call.1
$region0: #{tpu_custom_call.1}
  #allocation0 [shape = 'u32[]', space=smem, size = 0x4, offset = 0x4, fixed_abs, tag = 'smem constant byte address 0x4 - core index']
  #allocation1 [shape = 'u32[144,128]{1,0:T(1,128)}', space=vmem, size = 0x12000, scoped, tag = 'internal scratch']
  #allocation2 [shape = 'f32[64,512]{1,0:T(8,128)}', space=vmem, size = 0x20000, scoped, tag = 'scratch operand']
  #allocation3 [shape = 'f32[8,128]{1,0:T(8,128)}', space=vmem, size = 0x1000, scoped, tag = 'scratch operand']
  %s0 = inlined_call_operand.hbm [shape: bf16[64,128], index: 0, kind: input, shape index: {}]
  %s1 = inlined_call_operand.hbm [shape: bf16[128,512], index: 1, kind: input, shape index: {}]
  %s2 = inlined_call_operand.hbm [shape: bf16[128,512], index: 2, kind: input, shape index: {}]
  %s3 = inlined_call_operand.vmem [shape: f32[1,512], index: 3, kind: input, shape index: {}]
  %s4 = inlined_call_operand.hbm [shape: bf16[8,128], index: 4, kind: output, shape index: {}]
  %s5 = sld [smem:[#allocation0]]
  $region42: #{tpu_custom_call.1} parent=0
    _
  %s7 = ssub.s32 1, %s5
  %s8 = scalar_select 0, %s7, %s5
  $region1: #{tpu_custom_call.1} parent=0
    #allocation4 [shape = 'u8[16384]{0}', space=vmem, size = 0x4000, scoped, tag = 'input window, operand 0, single buffered']
    #allocation5 [shape = 's32[1]{0}', space=sflag, size = 0x4, scoped, tag = 'scoped memory for tpu_custom_call.1']
    #allocation6 [shape = 's32[1]{0}', space=sflag, size = 0x4, scoped, tag = 'scoped memory for tpu_custom_call.1']
    #allocation7 [shape = 'u8[131072]{0}', space=vmem, size = 0x20000, scoped, tag = 'input window, operand 1, single buffered']
    #allocation8 [shape = 's32[1]{0}', space=sflag, size = 0x4, scoped, tag = 'scoped memory for tpu_custom_call.1']
    #allocation9 [shape = 'u8[131072]{0}', space=vmem, size = 0x20000, scoped, tag = 'input window, operand 2, single buffered']
    #allocation10 [shape = 'u8[2048]{0}', space=vmem, size = 0x800, scoped, tag = 'output window, operand 0, single buffered']
    %9 = vsyncpa [#allocation5], 0
    %10 = vsyncpa [#allocation8], 0
    %11 = vsyncpa [#allocation6], 0
    // Predicated region
    $region2: #{tpu_custom_call.1} parent=1 // pred_check
      _
    $region3: #{tpu_custom_call.1} parent=1 // pred_check_branch
      %13 = sbr.rel (0) target = $region5
    $region4: #{tpu_custom_call.1} parent=1 // pred_region
      %s14 = sadd.s32 0, 0
      %s15 = smul.u32 8, %s14
      %s17 = ssub.s32 512, 512
      %18 = vsyncadd [#allocation5], %s17
      %s19 = smul.addr %s15, 64
      %s20 = scalar_lea.hbm %s0, %s19
      %s21 = sshll.u32 [#allocation4], 4
      %s22 = int_to_ptr.vmem [resolvable:$true] %s21
      %27 = dma.hbm_to_vmem [thread:$0]  %s20, 512, %s22, [#allocation5], 64, 64, 4
    $region5: #{tpu_custom_call.1} parent=1 // pred_fallthru
      _
    // Predicated region
    $region6: #{tpu_custom_call.1} parent=1 // pred_check
      _
    $region7: #{tpu_custom_call.1} parent=1 // pred_check_branch
      %29 = sbr.rel (0) target = $region9
    $region8: #{tpu_custom_call.1} parent=1 // pred_region
      %s31 = ssub.s32 4096, 4096
      %32 = vsyncadd [#allocation8], %s31
      %s33 = sshll.u32 [#allocation7], 4
      %s34 = int_to_ptr.vmem [resolvable:$true] %s33
      %39 = dma.hbm_to_vmem [thread:$0]  %s1, 4096, %s34, [#allocation8], 256, 256, 16
    $region9: #{tpu_custom_call.1} parent=1 // pred_fallthru
      _
    // Predicated region
    $region10: #{tpu_custom_call.1} parent=1 // pred_check
      _
    $region11: #{tpu_custom_call.1} parent=1 // pred_check_branch
      %41 = sbr.rel (0) target = $region13
    $region12: #{tpu_custom_call.1} parent=1 // pred_region
      %s43 = ssub.s32 4096, 4096
      %44 = vsyncadd [#allocation8], %s43
      %s45 = sshll.u32 [#allocation9], 4
      %s46 = int_to_ptr.vmem [resolvable:$true] %s45
      %51 = dma.hbm_to_vmem [thread:$0]  %s2, 4096, %s46, [#allocation8], 256, 256, 16
    $region13: #{tpu_custom_call.1} parent=1 // pred_fallthru
      _
    // Predicated region
    $region14: #{tpu_custom_call.1} parent=1 // pred_check
      _
    $region15: #{tpu_custom_call.1} parent=1 // pred_check_branch
      %53 = sbr.rel (0) target = $region17
    $region16: #{tpu_custom_call.1} parent=1 // pred_region
      _
    $region17: #{tpu_custom_call.1} parent=1 // pred_fallthru
      _
    // Predicated region
    $region18: #{tpu_custom_call.1} parent=1 // pred_check
      _
    $region19: #{tpu_custom_call.1} parent=1 // pred_check_branch
      %55 = sbr.rel (0) target = $region21
    $region20: #{tpu_custom_call.1} parent=1 // pred_region
      %56 = dma.done [#allocation5], 512
    $region21: #{tpu_custom_call.1} parent=1 // pred_fallthru
      _
    // Predicated region
    $region22: #{tpu_custom_call.1} parent=1 // pred_check
      _
    $region23: #{tpu_custom_call.1} parent=1 // pred_check_branch
      %58 = sbr.rel (0) target = $region25
    $region24: #{tpu_custom_call.1} parent=1 // pred_region
      %59 = dma.done [#allocation8], 4096
    $region25: #{tpu_custom_call.1} parent=1 // pred_fallthru
      _
    // Predicated region
    $region26: #{tpu_custom_call.1} parent=1 // pred_check
      _
    $region27: #{tpu_custom_call.1} parent=1 // pred_check_branch
      %61 = sbr.rel (0) target = $region29
    $region28: #{tpu_custom_call.1} parent=1 // pred_region
      %62 = dma.done [#allocation8], 4096
    $region29: #{tpu_custom_call.1} parent=1 // pred_fallthru
      _
    %s63 = sadd.s32 0, 0
    %s64 = smul.u32 8, %s63
    %p66 = scmp.eq.s32.totalorder 0, 0
    // Predicated region
    $region30: #{tpu_custom_call.1} parent=1 // pred_check
      %p67 = pneg %p66
    $region31: #{tpu_custom_call.1} parent=1 // pred_check_branch
      %69 = sbr.rel (%p67) target = $region33
    $region32: #{tpu_custom_call.1} parent=1 // pred_region
      %70 = vst [vmem:[#allocation10] sm:$0xf] 0
      %71 = vst [vmem:[#allocation3] sm:$0xff] 0.0
    $region33: #{tpu_custom_call.1} parent=1 // pred_fallthru
      _
    %v72 = vld [vmem:[#allocation4] sm:$0xf]
    %v73 = vld [vmem:[#allocation4 + $0x4] sm:$0xf]
    %v74 = vld [vmem:[#allocation4 + $0x8] sm:$0xf]
    %v75 = vld [vmem:[#allocation4 + $0xc] sm:$0xf]
    %v76 = vld [vmem:[#allocation4 + $0x10] sm:$0xf]
    %v77 = vld [vmem:[#allocation4 + $0x14] sm:$0xf]
    %v78 = vld [vmem:[#allocation4 + $0x18] sm:$0xf]
    %v79 = vld [vmem:[#allocation4 + $0x1c] sm:$0xf]
    %v80 = vld [vmem:[#allocation7] sm:$0xff]
    %v81 = vld [vmem:[#allocation7 + $0x8] sm:$0xff]
    %v82 = vld [vmem:[#allocation7 + $0x10] sm:$0xff]
    %v83 = vld [vmem:[#allocation7 + $0x18] sm:$0xff]
    %v84 = vld [vmem:[#allocation7 + $0x20] sm:$0xff]
    %v85 = vld [vmem:[#allocation7 + $0x28] sm:$0xff]
    %v86 = vld [vmem:[#allocation7 + $0x30] sm:$0xff]
    %v87 = vld [vmem:[#allocation7 + $0x38] sm:$0xff]
    %v88 = vld [vmem:[#allocation7 + $0x40] sm:$0xff]
    %v89 = vld [vmem:[#allocation7 + $0x48] sm:$0xff]
    %v90 = vld [vmem:[#allocation7 + $0x50] sm:$0xff]
    %v91 = vld [vmem:[#allocation7 + $0x58] sm:$0xff]
    %v92 = vld [vmem:[#allocation7 + $0x60] sm:$0xff]
    %v93 = vld [vmem:[#allocation7 + $0x68] sm:$0xff]
    %v94 = vld [vmem:[#allocation7 + $0x70] sm:$0xff]
    %v95 = vld [vmem:[#allocation7 + $0x78] sm:$0xff]
    %v96 = vld [vmem:[#allocation7 + $0x80] sm:$0xff]
    %v97 = vld [vmem:[#allocation7 + $0x88] sm:$0xff]
    %v98 = vld [vmem:[#allocation7 + $0x90] sm:$0xff]
    %v99 = vld [vmem:[#allocation7 + $0x98] sm:$0xff]
    %v100 = vld [vmem:[#allocation7 + $0xa0] sm:$0xff]
    %v101 = vld [vmem:[#allocation7 + $0xa8] sm:$0xff]
    %v102 = vld [vmem:[#allocation7 + $0xb0] sm:$0xff]
    %v103 = vld [vmem:[#allocation7 + $0xb8] sm:$0xff]
    %v104 = vld [vmem:[#allocation7 + $0xc0] sm:$0xff]
    %v105 = vld [vmem:[#allocation7 + $0xc8] sm:$0xff]
    %v106 = vld [vmem:[#allocation7 + $0xd0] sm:$0xff]
    %v107 = vld [vmem:[#allocation7 + $0xd8] sm:$0xff]
    %v108 = vld [vmem:[#allocation7 + $0xe0] sm:$0xff]
    %v109 = vld [vmem:[#allocation7 + $0xe8] sm:$0xff]
    %v110 = vld [vmem:[#allocation7 + $0xf0] sm:$0xff]
    %v111 = vld [vmem:[#allocation7 + $0xf8] sm:$0xff]
    %v112 = vld [vmem:[%s3] sm:$0xf]
    %v114 = vlaneseq
    %v115 = vshrl.u32 %v114, 7
    %v116 = vsub.s32 0, %v115
    %v117 = vrot.slane %v112, %v116
    %v118 = vlaneseq
    %v119 = vshrl.u32 %v118, 7
    %v120 = vsub.s32 1, %v119
    %v121 = vrot.slane %v112, %v120
    %v122 = vlaneseq
    %v123 = vshrl.u32 %v122, 7
    %v124 = vsub.s32 2, %v123
    %v125 = vrot.slane %v112, %v124
    %v126 = vlaneseq
    %v127 = vshrl.u32 %v126, 7
    %v128 = vsub.s32 3, %v127
    %v129 = vrot.slane %v112, %v128
    %v142 = vunpack.c.l.b16 %v72
    %v143 = vunpack.c.l.b16 %v73
    %v144 = vunpack.c.l.b16 %v74
    %v145 = vunpack.c.l.b16 %v75
    %v146 = vunpack.c.l.b16 %v76
    %v147 = vunpack.c.l.b16 %v77
    %v148 = vunpack.c.l.b16 %v78
    %v149 = vunpack.c.l.b16 %v79
    %v150 = vpack.c.b16 %v143, %v142
    %v151 = vpack.c.b16 %v145, %v144
    %v152 = vpack.c.b16 %v147, %v146
    %v153 = vpack.c.b16 %v149, %v148
    %v190 = vunpack.c.l.b16 %v80
    %v191 = vunpack.c.h.b16 %v80
    %v192 = vunpack.c.l.b16 %v81
    %v193 = vunpack.c.h.b16 %v81
    %v194 = vunpack.c.l.b16 %v82
    %v195 = vunpack.c.h.b16 %v82
    %v196 = vunpack.c.l.b16 %v83
    %v197 = vunpack.c.h.b16 %v83
    %v198 = vunpack.c.l.b16 %v84
    %v199 = vunpack.c.h.b16 %v84
    %v200 = vunpack.c.l.b16 %v85
    %v201 = vunpack.c.h.b16 %v85
    %v202 = vunpack.c.l.b16 %v86
    %v203 = vunpack.c.h.b16 %v86
    %v204 = vunpack.c.l.b16 %v87
    %v205 = vunpack.c.h.b16 %v87
    %v206 = vunpack.c.l.b16 %v88
    %v207 = vunpack.c.h.b16 %v88
    %v208 = vunpack.c.l.b16 %v89
    %v209 = vunpack.c.h.b16 %v89
    %v210 = vunpack.c.l.b16 %v90
    %v211 = vunpack.c.h.b16 %v90
    %v212 = vunpack.c.l.b16 %v91
    %v213 = vunpack.c.h.b16 %v91
    %v214 = vunpack.c.l.b16 %v92
    %v215 = vunpack.c.h.b16 %v92
    %v216 = vunpack.c.l.b16 %v93
    %v217 = vunpack.c.h.b16 %v93
    %v218 = vunpack.c.l.b16 %v94
    %v219 = vunpack.c.h.b16 %v94
    %v220 = vunpack.c.l.b16 %v95
    %v221 = vunpack.c.h.b16 %v95
    %v222 = vunpack.c.l.b16 %v96
    %v223 = vunpack.c.h.b16 %v96
    %v224 = vunpack.c.l.b16 %v97
    %v225 = vunpack.c.h.b16 %v97
    %v226 = vunpack.c.l.b16 %v98
    %v227 = vunpack.c.h.b16 %v98
    %v228 = vunpack.c.l.b16 %v99
    %v229 = vunpack.c.h.b16 %v99
    %v230 = vunpack.c.l.b16 %v100
    %v231 = vunpack.c.h.b16 %v100
    %v232 = vunpack.c.l.b16 %v101
    %v233 = vunpack.c.h.b16 %v101
    %v234 = vunpack.c.l.b16 %v102
    %v235 = vunpack.c.h.b16 %v102
    %v236 = vunpack.c.l.b16 %v103
    %v237 = vunpack.c.h.b16 %v103
    %v238 = vunpack.c.l.b16 %v104
    %v239 = vunpack.c.h.b16 %v104
    %v240 = vunpack.c.l.b16 %v105
    %v241 = vunpack.c.h.b16 %v105
    %v242 = vunpack.c.l.b16 %v106
    %v243 = vunpack.c.h.b16 %v106
    %v244 = vunpack.c.l.b16 %v107
    %v245 = vunpack.c.h.b16 %v107
    %v246 = vunpack.c.l.b16 %v108
    %v247 = vunpack.c.h.b16 %v108
    %v248 = vunpack.c.l.b16 %v109
    %v249 = vunpack.c.h.b16 %v109
    %v250 = vunpack.c.l.b16 %v110
    %v251 = vunpack.c.h.b16 %v110
    %v252 = vunpack.c.l.b16 %v111
    %v253 = vunpack.c.h.b16 %v111
    %v254 = vpack.c.b16 %v194, %v190
    %v255 = vpack.c.b16 %v195, %v191
    %v256 = vpack.c.b16 %v196, %v192
    %v257 = vpack.c.b16 %v197, %v193
    %v258 = vpack.c.b16 %v202, %v198
    %v259 = vpack.c.b16 %v203, %v199
    %v260 = vpack.c.b16 %v204, %v200
    %v261 = vpack.c.b16 %v205, %v201
    %v262 = vpack.c.b16 %v210, %v206
    %v263 = vpack.c.b16 %v211, %v207
    %v264 = vpack.c.b16 %v212, %v208
    %v265 = vpack.c.b16 %v213, %v209
    %v266 = vpack.c.b16 %v218, %v214
    %v267 = vpack.c.b16 %v219, %v215
    %v268 = vpack.c.b16 %v220, %v216
    %v269 = vpack.c.b16 %v221, %v217
    %v270 = vpack.c.b16 %v226, %v222
    %v271 = vpack.c.b16 %v227, %v223
    %v272 = vpack.c.b16 %v228, %v224
    %v273 = vpack.c.b16 %v229, %v225
    %v274 = vpack.c.b16 %v234, %v230
    %v275 = vpack.c.b16 %v235, %v231
    %v276 = vpack.c.b16 %v236, %v232
    %v277 = vpack.c.b16 %v237, %v233
    %v278 = vpack.c.b16 %v242, %v238
    %v279 = vpack.c.b16 %v243, %v239
    %v280 = vpack.c.b16 %v244, %v240
    %v281 = vpack.c.b16 %v245, %v241
    %v282 = vpack.c.b16 %v250, %v246
    %v283 = vpack.c.b16 %v251, %v247
    %v284 = vpack.c.b16 %v252, %v248
    %v285 = vpack.c.b16 %v253, %v249
    %318 = vmatprep.subr.bf16.mxu0 %v255
    %319 = vmatpush1.bf16.msra.mxu0 %v254
    %320 = vmatprep.subr.bf16.mxu0 %v259
    %321 = vmatpush1.bf16.msra.mxu0 %v258
    %322 = vmatprep.subr.bf16.mxu0 %v263
    %323 = vmatpush1.bf16.msra.mxu0 %v262
    %324 = vmatprep.subr.bf16.mxu0 %v267
    %325 = vmatpush1.bf16.msra.mxu0 %v266
    %326 = vmatprep.subr.bf16.mxu0 %v271
    %327 = vmatpush1.bf16.msra.mxu0 %v270
    %328 = vmatprep.subr.bf16.mxu0 %v275
    %329 = vmatpush1.bf16.msra.mxu0 %v274
    %330 = vmatprep.subr.bf16.mxu0 %v279
    %331 = vmatpush1.bf16.msra.mxu0 %v278
    %332 = vmatprep.subr.bf16.mxu0 %v283
    %333 = vmatpush1.bf16.msra.mxu0 %v282
    %334 = vmatprep.subr.bf16.mxu0 0
    %335 = vmatpush1.bf16.msra.mxu0 0
    %336 = vmatprep.subr.bf16.mxu0 0
    %337 = vmatpush1.bf16.msra.mxu0 0
    %338 = vmatprep.subr.bf16.mxu0 0
    %339 = vmatpush1.bf16.msra.mxu0 0
    %340 = vmatprep.subr.bf16.mxu0 0
    %341 = vmatpush1.bf16.msra.mxu0 0
    %342 = vmatprep.subr.bf16.mxu0 0
    %343 = vmatpush1.bf16.msra.mxu0 0
    %344 = vmatprep.subr.bf16.mxu0 0
    %345 = vmatpush1.bf16.msra.mxu0 0
    %346 = vmatprep.subr.bf16.mxu0 0
    %347 = vmatpush1.bf16.msra.mxu0 0
    %348 = vmatprep.subr.bf16.mxu0 0
    %349 = vmatpush1.bf16.msra.mxu0 0
    %350 = vmatprep.mubr.bf16.mxu0 0
    %351 = vmatmul.mubr.bf16.gmra.mrb[0].mxu0 %v150
    %v352 = vpop.f32.mrb[0].mxu0
    %v353 = vadd.f32 %v117, %v352
    %v354 = vpop.f32.mrb[0].mxu0
    %v355 = vadd.f32 %v121, %v354
    %v356 = vpop.f32.mrb[0].mxu0
    %v357 = vadd.f32 %v117, %v356
    %v358 = vpop.f32.mrb[0].mxu0
    %v359 = vadd.f32 %v121, %v358
    %360 = vmatprep.mubr.bf16.mxu0 0
    %361 = vmatmul.mubr.bf16.gmra.mrb[0].mxu0 %v151
    %v362 = vpop.f32.mrb[0].mxu0
    %v363 = vadd.f32 %v117, %v362
    %v364 = vpop.f32.mrb[0].mxu0
    %v365 = vadd.f32 %v121, %v364
    %v366 = vpop.f32.mrb[0].mxu0
    %v367 = vadd.f32 %v117, %v366
    %v368 = vpop.f32.mrb[0].mxu0
    %v369 = vadd.f32 %v121, %v368
    %370 = vmatprep.mubr.bf16.mxu0 0
    %371 = vmatmul.mubr.bf16.gmra.mrb[0].mxu0 %v152
    %v372 = vpop.f32.mrb[0].mxu0
    %v373 = vadd.f32 %v117, %v372
    %v374 = vpop.f32.mrb[0].mxu0
    %v375 = vadd.f32 %v121, %v374
    %v376 = vpop.f32.mrb[0].mxu0
    %v377 = vadd.f32 %v117, %v376
    %v378 = vpop.f32.mrb[0].mxu0
    %v379 = vadd.f32 %v121, %v378
    %380 = vmatprep.mubr.bf16.mxu0 0
    %381 = vmatmul.mubr.bf16.gmra.mrb[0].mxu0 %v153
    %v382 = vpop.f32.mrb[0].mxu0
    %v383 = vadd.f32 %v117, %v382
    %v384 = vpop.f32.mrb[0].mxu0
    %v385 = vadd.f32 %v121, %v384
    %v386 = vpop.f32.mrb[0].mxu0
    %v387 = vadd.f32 %v117, %v386
    %v388 = vpop.f32.mrb[0].mxu0
    %v389 = vadd.f32 %v121, %v388
    %390 = vdwg.mxu0
    %391 = vmatprep.subr.bf16.mxu0 %v257
    %392 = vmatpush1.bf16.msra.mxu0 %v256
    %393 = vmatprep.subr.bf16.mxu0 %v261
    %394 = vmatpush1.bf16.msra.mxu0 %v260
    %395 = vmatprep.subr.bf16.mxu0 %v265
    %396 = vmatpush1.bf16.msra.mxu0 %v264
    %397 = vmatprep.subr.bf16.mxu0 %v269
    %398 = vmatpush1.bf16.msra.mxu0 %v268
    %399 = vmatprep.subr.bf16.mxu0 %v273
    %400 = vmatpush1.bf16.msra.mxu0 %v272
    %401 = vmatprep.subr.bf16.mxu0 %v277
    %402 = vmatpush1.bf16.msra.mxu0 %v276
    %403 = vmatprep.subr.bf16.mxu0 %v281
    %404 = vmatpush1.bf16.msra.mxu0 %v280
    %405 = vmatprep.subr.bf16.mxu0 %v285
    %406 = vmatpush1.bf16.msra.mxu0 %v284
    %407 = vmatprep.subr.bf16.mxu0 0
    %408 = vmatpush1.bf16.msra.mxu0 0
    %409 = vmatprep.subr.bf16.mxu0 0
    %410 = vmatpush1.bf16.msra.mxu0 0
    %411 = vmatprep.subr.bf16.mxu0 0
    %412 = vmatpush1.bf16.msra.mxu0 0
    %413 = vmatprep.subr.bf16.mxu0 0
    %414 = vmatpush1.bf16.msra.mxu0 0
    %415 = vmatprep.subr.bf16.mxu0 0
    %416 = vmatpush1.bf16.msra.mxu0 0
    %417 = vmatprep.subr.bf16.mxu0 0
    %418 = vmatpush1.bf16.msra.mxu0 0
    %419 = vmatprep.subr.bf16.mxu0 0
    %420 = vmatpush1.bf16.msra.mxu0 0
    %421 = vmatprep.subr.bf16.mxu0 0
    %422 = vmatpush1.bf16.msra.mxu0 0
    %423 = vmatprep.mubr.bf16.mxu0 0
    %424 = vmatmul.mubr.bf16.gmra.mrb[0].mxu0 %v150
    %v425 = vpop.f32.mrb[0].mxu0
    %v426 = vadd.f32 %v125, %v425
    %v427 = vpop.f32.mrb[0].mxu0
    %v428 = vadd.f32 %v129, %v427
    %v429 = vpop.f32.mrb[0].mxu0
    %v430 = vadd.f32 %v125, %v429
    %v431 = vpop.f32.mrb[0].mxu0
    %v432 = vadd.f32 %v129, %v431
    %433 = vmatprep.mubr.bf16.mxu0 0
    %434 = vmatmul.mubr.bf16.gmra.mrb[0].mxu0 %v151
    %v435 = vpop.f32.mrb[0].mxu0
    %v436 = vadd.f32 %v125, %v435
    %v437 = vpop.f32.mrb[0].mxu0
    %v438 = vadd.f32 %v129, %v437
    %v439 = vpop.f32.mrb[0].mxu0
    %v440 = vadd.f32 %v125, %v439
    %v441 = vpop.f32.mrb[0].mxu0
    %v442 = vadd.f32 %v129, %v441
    %443 = vmatprep.mubr.bf16.mxu0 0
    %444 = vmatmul.mubr.bf16.gmra.mrb[0].mxu0 %v152
    %v445 = vpop.f32.mrb[0].mxu0
    %v446 = vadd.f32 %v125, %v445
    %v447 = vpop.f32.mrb[0].mxu0
    %v448 = vadd.f32 %v129, %v447
    %v449 = vpop.f32.mrb[0].mxu0
    %v450 = vadd.f32 %v125, %v449
    %v451 = vpop.f32.mrb[0].mxu0
    %v452 = vadd.f32 %v129, %v451
    %453 = vmatprep.mubr.bf16.mxu0 0
    %454 = vmatmul.mubr.bf16.gmra.mrb[0].mxu0 %v153
    %v455 = vpop.f32.mrb[0].mxu0
    %v456 = vadd.f32 %v125, %v455
    %v457 = vpop.f32.mrb[0].mxu0
    %v458 = vadd.f32 %v129, %v457
    %v459 = vpop.f32.mrb[0].mxu0
    %v460 = vadd.f32 %v125, %v459
    %v461 = vpop.f32.mrb[0].mxu0
    %v462 = vadd.f32 %v129, %v461
    %463 = vdwg.mxu0
    %464 = vst [vmem:[#allocation2] sm:$0xff] %v353
    %465 = vst [vmem:[#allocation2 + $0x8] sm:$0xff] %v355
    %466 = vst [vmem:[#allocation2 + $0x10] sm:$0xff] %v426
    %467 = vst [vmem:[#allocation2 + $0x18] sm:$0xff] %v428
    %468 = vst [vmem:[#allocation2 + $0x20] sm:$0xff] %v357
    %469 = vst [vmem:[#allocation2 + $0x28] sm:$0xff] %v359
    %470 = vst [vmem:[#allocation2 + $0x30] sm:$0xff] %v430
    %471 = vst [vmem:[#allocation2 + $0x38] sm:$0xff] %v432
    %472 = vst [vmem:[#allocation2 + $0x40] sm:$0xff] %v363
    %473 = vst [vmem:[#allocation2 + $0x48] sm:$0xff] %v365
    %474 = vst [vmem:[#allocation2 + $0x50] sm:$0xff] %v436
    %475 = vst [vmem:[#allocation2 + $0x58] sm:$0xff] %v438
    %476 = vst [vmem:[#allocation2 + $0x60] sm:$0xff] %v367
    %477 = vst [vmem:[#allocation2 + $0x68] sm:$0xff] %v369
    %478 = vst [vmem:[#allocation2 + $0x70] sm:$0xff] %v440
    %479 = vst [vmem:[#allocation2 + $0x78] sm:$0xff] %v442
    %480 = vst [vmem:[#allocation2 + $0x80] sm:$0xff] %v373
    %481 = vst [vmem:[#allocation2 + $0x88] sm:$0xff] %v375
    %482 = vst [vmem:[#allocation2 + $0x90] sm:$0xff] %v446
    %483 = vst [vmem:[#allocation2 + $0x98] sm:$0xff] %v448
    %484 = vst [vmem:[#allocation2 + $0xa0] sm:$0xff] %v377
    %485 = vst [vmem:[#allocation2 + $0xa8] sm:$0xff] %v379
    %486 = vst [vmem:[#allocation2 + $0xb0] sm:$0xff] %v450
    %487 = vst [vmem:[#allocation2 + $0xb8] sm:$0xff] %v452
    %488 = vst [vmem:[#allocation2 + $0xc0] sm:$0xff] %v383
    %489 = vst [vmem:[#allocation2 + $0xc8] sm:$0xff] %v385
    %490 = vst [vmem:[#allocation2 + $0xd0] sm:$0xff] %v456
    %491 = vst [vmem:[#allocation2 + $0xd8] sm:$0xff] %v458
    %492 = vst [vmem:[#allocation2 + $0xe0] sm:$0xff] %v387
    %493 = vst [vmem:[#allocation2 + $0xe8] sm:$0xff] %v389
    %494 = vst [vmem:[#allocation2 + $0xf0] sm:$0xff] %v460
    %495 = vst [vmem:[#allocation2 + $0xf8] sm:$0xff] %v462
    %s496 = smul.u32 0, 4
    %s497 = smul.addr %s496, 8
    %s498 = scalar_lea.vmem [#allocation2], %s497
    %v499 = vld [vmem:[%s498] sm:$0xff]
    %v500 = vld [vmem:[%s498 + $0x8] sm:$0xff]
    %v501 = vld [vmem:[%s498 + $0x10] sm:$0xff]
    %v502 = vld [vmem:[%s498 + $0x18] sm:$0xff]
    %v503 = vld [vmem:[#allocation10] sm:$0xf]
    %v504 = vld [vmem:[#allocation9] sm:$0xff]
    %v505 = vld [vmem:[#allocation9 + $0x8] sm:$0xff]
    %v506 = vld [vmem:[#allocation9 + $0x10] sm:$0xff]
    %v507 = vld [vmem:[#allocation9 + $0x18] sm:$0xff]
    %v508 = vld [vmem:[#allocation9 + $0x20] sm:$0xff]
    %v509 = vld [vmem:[#allocation9 + $0x28] sm:$0xff]
    %v510 = vld [vmem:[#allocation9 + $0x30] sm:$0xff]
    %v511 = vld [vmem:[#allocation9 + $0x38] sm:$0xff]
    %v512 = vld [vmem:[#allocation9 + $0x40] sm:$0xff]
    %v513 = vld [vmem:[#allocation9 + $0x48] sm:$0xff]
    %v514 = vld [vmem:[#allocation9 + $0x50] sm:$0xff]
    %v515 = vld [vmem:[#allocation9 + $0x58] sm:$0xff]
    %v516 = vld [vmem:[#allocation9 + $0x60] sm:$0xff]
    %v517 = vld [vmem:[#allocation9 + $0x68] sm:$0xff]
    %v518 = vld [vmem:[#allocation9 + $0x70] sm:$0xff]
    %v519 = vld [vmem:[#allocation9 + $0x78] sm:$0xff]
    %v520 = vld [vmem:[#allocation9 + $0x80] sm:$0xff]
    %v521 = vld [vmem:[#allocation9 + $0x88] sm:$0xff]
    %v522 = vld [vmem:[#allocation9 + $0x90] sm:$0xff]
    %v523 = vld [vmem:[#allocation9 + $0x98] sm:$0xff]
    %v524 = vld [vmem:[#allocation9 + $0xa0] sm:$0xff]
    %v525 = vld [vmem:[#allocation9 + $0xa8] sm:$0xff]
    %v526 = vld [vmem:[#allocation9 + $0xb0] sm:$0xff]
    %v527 = vld [vmem:[#allocation9 + $0xb8] sm:$0xff]
    %v528 = vld [vmem:[#allocation9 + $0xc0] sm:$0xff]
    %v529 = vld [vmem:[#allocation9 + $0xc8] sm:$0xff]
    %v530 = vld [vmem:[#allocation9 + $0xd0] sm:$0xff]
    %v531 = vld [vmem:[#allocation9 + $0xd8] sm:$0xff]
    %v532 = vld [vmem:[#allocation9 + $0xe0] sm:$0xff]
    %v533 = vld [vmem:[#allocation9 + $0xe8] sm:$0xff]
    %v534 = vld [vmem:[#allocation9 + $0xf0] sm:$0xff]
    %v535 = vld [vmem:[#allocation9 + $0xf8] sm:$0xff]
    %v568 = vunpack.c.l.b16 %v504
    %v569 = vunpack.c.h.b16 %v504
    %v570 = vunpack.c.l.b16 %v505
    %v571 = vunpack.c.h.b16 %v505
    %v572 = vunpack.c.l.b16 %v506
    %v573 = vunpack.c.h.b16 %v506
    %v574 = vunpack.c.l.b16 %v507
    %v575 = vunpack.c.h.b16 %v507
    %v576 = vunpack.c.l.b16 %v508
    %v577 = vunpack.c.h.b16 %v508
    %v578 = vunpack.c.l.b16 %v509
    %v579 = vunpack.c.h.b16 %v509
    %v580 = vunpack.c.l.b16 %v510
    %v581 = vunpack.c.h.b16 %v510
    %v582 = vunpack.c.l.b16 %v511
    %v583 = vunpack.c.h.b16 %v511
    %v584 = vunpack.c.l.b16 %v512
    %v585 = vunpack.c.h.b16 %v512
    %v586 = vunpack.c.l.b16 %v513
    %v587 = vunpack.c.h.b16 %v513
    %v588 = vunpack.c.l.b16 %v514
    %v589 = vunpack.c.h.b16 %v514
    %v590 = vunpack.c.l.b16 %v515
    %v591 = vunpack.c.h.b16 %v515
    %v592 = vunpack.c.l.b16 %v516
    %v593 = vunpack.c.h.b16 %v516
    %v594 = vunpack.c.l.b16 %v517
    %v595 = vunpack.c.h.b16 %v517
    %v596 = vunpack.c.l.b16 %v518
    %v597 = vunpack.c.h.b16 %v518
    %v598 = vunpack.c.l.b16 %v519
    %v599 = vunpack.c.h.b16 %v519
    %v600 = vunpack.c.l.b16 %v520
    %v601 = vunpack.c.h.b16 %v520
    %v602 = vunpack.c.l.b16 %v521
    %v603 = vunpack.c.h.b16 %v521
    %v604 = vunpack.c.l.b16 %v522
    %v605 = vunpack.c.h.b16 %v522
    %v606 = vunpack.c.l.b16 %v523
    %v607 = vunpack.c.h.b16 %v523
    %v608 = vunpack.c.l.b16 %v524
    %v609 = vunpack.c.h.b16 %v524
    %v610 = vunpack.c.l.b16 %v525
    %v611 = vunpack.c.h.b16 %v525
    %v612 = vunpack.c.l.b16 %v526
    %v613 = vunpack.c.h.b16 %v526
    %v614 = vunpack.c.l.b16 %v527
    %v615 = vunpack.c.h.b16 %v527
    %v616 = vunpack.c.l.b16 %v528
    %v617 = vunpack.c.h.b16 %v528
    %v618 = vunpack.c.l.b16 %v529
    %v619 = vunpack.c.h.b16 %v529
    %v620 = vunpack.c.l.b16 %v530
    %v621 = vunpack.c.h.b16 %v530
    %v622 = vunpack.c.l.b16 %v531
    %v623 = vunpack.c.h.b16 %v531
    %v624 = vunpack.c.l.b16 %v532
    %v625 = vunpack.c.h.b16 %v532
    %v626 = vunpack.c.l.b16 %v533
    %v627 = vunpack.c.h.b16 %v533
    %v628 = vunpack.c.l.b16 %v534
    %v629 = vunpack.c.h.b16 %v534
    %v630 = vunpack.c.l.b16 %v535
    %v631 = vunpack.c.h.b16 %v535
    %v632 = vpack.c.b16 %v572, %v568
    %v633 = vpack.c.b16 %v573, %v569
    %v634 = vpack.c.b16 %v574, %v570
    %v635 = vpack.c.b16 %v575, %v571
    %v636 = vpack.c.b16 %v580, %v576
    %v637 = vpack.c.b16 %v581, %v577
    %v638 = vpack.c.b16 %v582, %v578
    %v639 = vpack.c.b16 %v583, %v579
    %v640 = vpack.c.b16 %v588, %v584
    %v641 = vpack.c.b16 %v589, %v585
    %v642 = vpack.c.b16 %v590, %v586
    %v643 = vpack.c.b16 %v591, %v587
    %v644 = vpack.c.b16 %v596, %v592
    %v645 = vpack.c.b16 %v597, %v593
    %v646 = vpack.c.b16 %v598, %v594
    %v647 = vpack.c.b16 %v599, %v595
    %v648 = vpack.c.b16 %v604, %v600
    %v649 = vpack.c.b16 %v605, %v601
    %v650 = vpack.c.b16 %v606, %v602
    %v651 = vpack.c.b16 %v607, %v603
    %v652 = vpack.c.b16 %v612, %v608
    %v653 = vpack.c.b16 %v613, %v609
    %v654 = vpack.c.b16 %v614, %v610
    %v655 = vpack.c.b16 %v615, %v611
    %v656 = vpack.c.b16 %v620, %v616
    %v657 = vpack.c.b16 %v621, %v617
    %v658 = vpack.c.b16 %v622, %v618
    %v659 = vpack.c.b16 %v623, %v619
    %v660 = vpack.c.b16 %v628, %v624
    %v661 = vpack.c.b16 %v629, %v625
    %v662 = vpack.c.b16 %v630, %v626
    %v663 = vpack.c.b16 %v631, %v627
    %696 = vmatprep.subr.bf16.mxu0 %v633
    %697 = vmatpush1.bf16.msra.mxu0 %v632
    %698 = vmatprep.subr.bf16.mxu0 %v637
    %699 = vmatpush1.bf16.msra.mxu0 %v636
    %700 = vmatprep.subr.bf16.mxu0 %v641
    %701 = vmatpush1.bf16.msra.mxu0 %v640
    %702 = vmatprep.subr.bf16.mxu0 %v645
    %703 = vmatpush1.bf16.msra.mxu0 %v644
    %704 = vmatprep.subr.bf16.mxu0 %v649
    %705 = vmatpush1.bf16.msra.mxu0 %v648
    %706 = vmatprep.subr.bf16.mxu0 %v653
    %707 = vmatpush1.bf16.msra.mxu0 %v652
    %708 = vmatprep.subr.bf16.mxu0 %v657
    %709 = vmatpush1.bf16.msra.mxu0 %v656
    %710 = vmatprep.subr.bf16.mxu0 %v661
    %711 = vmatpush1.bf16.msra.mxu0 %v660
    %712 = vmatprep.subr.bf16.mxu0 0
    %713 = vmatpush1.bf16.msra.mxu0 0
    %714 = vmatprep.subr.bf16.mxu0 0
    %715 = vmatpush1.bf16.msra.mxu0 0
    %716 = vmatprep.subr.bf16.mxu0 0
    %717 = vmatpush1.bf16.msra.mxu0 0
    %718 = vmatprep.subr.bf16.mxu0 0
    %719 = vmatpush1.bf16.msra.mxu0 0
    %720 = vmatprep.subr.bf16.mxu0 0
    %721 = vmatpush1.bf16.msra.mxu0 0
    %722 = vmatprep.subr.bf16.mxu0 0
    %723 = vmatpush1.bf16.msra.mxu0 0
    %724 = vmatprep.subr.bf16.mxu0 0
    %725 = vmatpush1.bf16.msra.mxu0 0
    %726 = vmatprep.subr.bf16.mxu0 0
    %727 = vmatpush1.bf16.msra.mxu0 0
    %728 = vmatprep.mubr.bf16.mxu0 0
    %729 = vmatmul.mubr.bf16.gmra.mrb[0].mxu0 %v503
    %v730 = vpop.f32.mrb[0].mxu0
    %v731 = vadd.f32 0.0, %v730
    %v732 = vpop.f32.mrb[0].mxu0
    %v733 = vadd.f32 0.0, %v732
    %v734 = vpop.f32.mrb[0].mxu0
    %v735 = vpop.f32.mrb[0].mxu0
    %736 = vdwg.mxu0
    %737 = vmatprep.subr.bf16.mxu0 %v635
    %738 = vmatpush1.bf16.msra.mxu0 %v634
    %739 = vmatprep.subr.bf16.mxu0 %v639
    %740 = vmatpush1.bf16.msra.mxu0 %v638
    %741 = vmatprep.subr.bf16.mxu0 %v643
    %742 = vmatpush1.bf16.msra.mxu0 %v642
    %743 = vmatprep.subr.bf16.mxu0 %v647
    %744 = vmatpush1.bf16.msra.mxu0 %v646
    %745 = vmatprep.subr.bf16.mxu0 %v651
    %746 = vmatpush1.bf16.msra.mxu0 %v650
    %747 = vmatprep.subr.bf16.mxu0 %v655
    %748 = vmatpush1.bf16.msra.mxu0 %v654
    %749 = vmatprep.subr.bf16.mxu0 %v659
    %750 = vmatpush1.bf16.msra.mxu0 %v658
    %751 = vmatprep.subr.bf16.mxu0 %v663
    %752 = vmatpush1.bf16.msra.mxu0 %v662
    %753 = vmatprep.subr.bf16.mxu0 0
    %754 = vmatpush1.bf16.msra.mxu0 0
    %755 = vmatprep.subr.bf16.mxu0 0
    %756 = vmatpush1.bf16.msra.mxu0 0
    %757 = vmatprep.subr.bf16.mxu0 0
    %758 = vmatpush1.bf16.msra.mxu0 0
    %759 = vmatprep.subr.bf16.mxu0 0
    %760 = vmatpush1.bf16.msra.mxu0 0
    %761 = vmatprep.subr.bf16.mxu0 0
    %762 = vmatpush1.bf16.msra.mxu0 0
    %763 = vmatprep.subr.bf16.mxu0 0
    %764 = vmatpush1.bf16.msra.mxu0 0
    %765 = vmatprep.subr.bf16.mxu0 0
    %766 = vmatpush1.bf16.msra.mxu0 0
    %767 = vmatprep.subr.bf16.mxu0 0
    %768 = vmatpush1.bf16.msra.mxu0 0
    %769 = vmatprep.mubr.bf16.mxu0 0
    %770 = vmatmul.mubr.bf16.gmra.mrb[0].mxu0 %v503
    %v771 = vpop.f32.mrb[0].mxu0
    %v772 = vadd.f32 0.0, %v771
    %v773 = vpop.f32.mrb[0].mxu0
    %v774 = vadd.f32 0.0, %v773
    %v775 = vpop.f32.mrb[0].mxu0
    %v776 = vpop.f32.mrb[0].mxu0
    %777 = vdwg.mxu0
    %v778 = vadd.f32 %v499, %v731
    %v779 = vadd.f32 %v500, %v733
    %v780 = vadd.f32 %v501, %v772
    %v781 = vadd.f32 %v502, %v774
    %v782 = vxor.u32 %v778, 2147483648
    %v783 = vmul.f32 %v782, 1.442695
    %v784 = vpow.pop %v783
    %v785 = vadd.f32 %v784, 1.0
    %v786 = vrcp.pop %v785
    %v787 = vmul.f32 1.0, %v786
    %v788 = vxor.u32 %v779, 2147483648
    %v789 = vmul.f32 %v788, 1.442695
    %v790 = vpow.pop %v789
    %v791 = vadd.f32 %v790, 1.0
    %v792 = vrcp.pop %v791
    %v793 = vmul.f32 1.0, %v792
    %v794 = vtanh.pop %v780
    %v795 = vxor.u32 %v781, 2147483648
    %v796 = vmul.f32 %v795, 1.442695
    %v797 = vpow.pop %v796
    %v798 = vadd.f32 %v797, 1.0
    %v799 = vrcp.pop %v798
    %v800 = vmul.f32 1.0, %v799
    %v801 = vld [vmem:[#allocation3] sm:$0xff]
    %v802 = vmul.f32 %v793, %v801
    %v803 = vmul.f32 %v787, %v794
    %v804 = vadd.f32 %v802, %v803
    %v805 = vtanh.pop %v804
    %v806 = vmul.f32 %v800, %v805
    %v807 = vpack.c.bf16 %v806, %v806
    %808 = vst [vmem:[#allocation3] sm:$0xff] %v804
    %809 = vst [vmem:[#allocation10] sm:$0xf] %v807
    %s810 = smul.u32 1, 4
    %s811 = smul.addr %s810, 8
    %s812 = scalar_lea.vmem [#allocation2], %s811
    %v813 = vld [vmem:[%s812] sm:$0xff]
    %v814 = vld [vmem:[%s812 + $0x8] sm:$0xff]
    %v815 = vld [vmem:[%s812 + $0x10] sm:$0xff]
    %v816 = vld [vmem:[%s812 + $0x18] sm:$0xff]
    %v817 = vld [vmem:[#allocation10] sm:$0xf]
    %v818 = vld [vmem:[#allocation9] sm:$0xff]
    %v819 = vld [vmem:[#allocation9 + $0x8] sm:$0xff]
    %v820 = vld [vmem:[#allocation9 + $0x10] sm:$0xff]
    %v821 = vld [vmem:[#allocation9 + $0x18] sm:$0xff]
    %v822 = vld [vmem:[#allocation9 + $0x20] sm:$0xff]
    %v823 = vld [vmem:[#allocation9 + $0x28] sm:$0xff]
    %v824 = vld [vmem:[#allocation9 + $0x30] sm:$0xff]
    %v825 = vld [vmem:[#allocation9 + $0x38] sm:$0xff]
    %v826 = vld [vmem:[#allocation9 + $0x40] sm:$0xff]
    %v827 = vld [vmem:[#allocation9 + $0x48] sm:$0xff]
    %v828 = vld [vmem:[#allocation9 + $0x50] sm:$0xff]
    %v829 = vld [vmem:[#allocation9 + $0x58] sm:$0xff]
    %v830 = vld [vmem:[#allocation9 + $0x60] sm:$0xff]
    %v831 = vld [vmem:[#allocation9 + $0x68] sm:$0xff]
    %v832 = vld [vmem:[#allocation9 + $0x70] sm:$0xff]
    %v833 = vld [vmem:[#allocation9 + $0x78] sm:$0xff]
    %v834 = vld [vmem:[#allocation9 + $0x80] sm:$0xff]
    %v835 = vld [vmem:[#allocation9 + $0x88] sm:$0xff]
    %v836 = vld [vmem:[#allocation9 + $0x90] sm:$0xff]
    %v837 = vld [vmem:[#allocation9 + $0x98] sm:$0xff]
    %v838 = vld [vmem:[#allocation9 + $0xa0] sm:$0xff]
    %v839 = vld [vmem:[#allocation9 + $0xa8] sm:$0xff]
    %v840 = vld [vmem:[#allocation9 + $0xb0] sm:$0xff]
    %v841 = vld [vmem:[#allocation9 + $0xb8] sm:$0xff]
    %v842 = vld [vmem:[#allocation9 + $0xc0] sm:$0xff]
    %v843 = vld [vmem:[#allocation9 + $0xc8] sm:$0xff]
    %v844 = vld [vmem:[#allocation9 + $0xd0] sm:$0xff]
    %v845 = vld [vmem:[#allocation9 + $0xd8] sm:$0xff]
    %v846 = vld [vmem:[#allocation9 + $0xe0] sm:$0xff]
    %v847 = vld [vmem:[#allocation9 + $0xe8] sm:$0xff]
    %v848 = vld [vmem:[#allocation9 + $0xf0] sm:$0xff]
    %v849 = vld [vmem:[#allocation9 + $0xf8] sm:$0xff]
    %v882 = vunpack.c.l.b16 %v818
    %v883 = vunpack.c.h.b16 %v818
    %v884 = vunpack.c.l.b16 %v819
    %v885 = vunpack.c.h.b16 %v819
    %v886 = vunpack.c.l.b16 %v820
    %v887 = vunpack.c.h.b16 %v820
    %v888 = vunpack.c.l.b16 %v821
    %v889 = vunpack.c.h.b16 %v821
    %v890 = vunpack.c.l.b16 %v822
    %v891 = vunpack.c.h.b16 %v822
    %v892 = vunpack.c.l.b16 %v823
    %v893 = vunpack.c.h.b16 %v823
    %v894 = vunpack.c.l.b16 %v824
    %v895 = vunpack.c.h.b16 %v824
    %v896 = vunpack.c.l.b16 %v825
    %v897 = vunpack.c.h.b16 %v825
    %v898 = vunpack.c.l.b16 %v826
    %v899 = vunpack.c.h.b16 %v826
    %v900 = vunpack.c.l.b16 %v827
    %v901 = vunpack.c.h.b16 %v827
    %v902 = vunpack.c.l.b16 %v828
    %v903 = vunpack.c.h.b16 %v828
    %v904 = vunpack.c.l.b16 %v829
    %v905 = vunpack.c.h.b16 %v829
    %v906 = vunpack.c.l.b16 %v830
    %v907 = vunpack.c.h.b16 %v830
    %v908 = vunpack.c.l.b16 %v831
    %v909 = vunpack.c.h.b16 %v831
    %v910 = vunpack.c.l.b16 %v832
    %v911 = vunpack.c.h.b16 %v832
    %v912 = vunpack.c.l.b16 %v833
    %v913 = vunpack.c.h.b16 %v833
    %v914 = vunpack.c.l.b16 %v834
    %v915 = vunpack.c.h.b16 %v834
    %v916 = vunpack.c.l.b16 %v835
    %v917 = vunpack.c.h.b16 %v835
    %v918 = vunpack.c.l.b16 %v836
    %v919 = vunpack.c.h.b16 %v836
    %v920 = vunpack.c.l.b16 %v837
    %v921 = vunpack.c.h.b16 %v837
    %v922 = vunpack.c.l.b16 %v838
    %v923 = vunpack.c.h.b16 %v838
    %v924 = vunpack.c.l.b16 %v839
    %v925 = vunpack.c.h.b16 %v839
    %v926 = vunpack.c.l.b16 %v840
    %v927 = vunpack.c.h.b16 %v840
    %v928 = vunpack.c.l.b16 %v841
    %v929 = vunpack.c.h.b16 %v841
    %v930 = vunpack.c.l.b16 %v842
    %v931 = vunpack.c.h.b16 %v842
    %v932 = vunpack.c.l.b16 %v843
    %v933 = vunpack.c.h.b16 %v843
    %v934 = vunpack.c.l.b16 %v844
    %v935 = vunpack.c.h.b16 %v844
    %v936 = vunpack.c.l.b16 %v845
    %v937 = vunpack.c.h.b16 %v845
    %v938 = vunpack.c.l.b16 %v846
    %v939 = vunpack.c.h.b16 %v846
    %v940 = vunpack.c.l.b16 %v847
    %v941 = vunpack.c.h.b16 %v847
    %v942 = vunpack.c.l.b16 %v848
    %v943 = vunpack.c.h.b16 %v848
    %v944 = vunpack.c.l.b16 %v849
    %v945 = vunpack.c.h.b16 %v849
    %v946 = vpack.c.b16 %v886, %v882
    %v947 = vpack.c.b16 %v887, %v883
    %v948 = vpack.c.b16 %v888, %v884
    %v949 = vpack.c.b16 %v889, %v885
    %v950 = vpack.c.b16 %v894, %v890
    %v951 = vpack.c.b16 %v895, %v891
    %v952 = vpack.c.b16 %v896, %v892
    %v953 = vpack.c.b16 %v897, %v893
    %v954 = vpack.c.b16 %v902, %v898
    %v955 = vpack.c.b16 %v903, %v899
    %v956 = vpack.c.b16 %v904, %v900
    %v957 = vpack.c.b16 %v905, %v901
    %v958 = vpack.c.b16 %v910, %v906
    %v959 = vpack.c.b16 %v911, %v907
    %v960 = vpack.c.b16 %v912, %v908
    %v961 = vpack.c.b16 %v913, %v909
    %v962 = vpack.c.b16 %v918, %v914
    %v963 = vpack.c.b16 %v919, %v915
    %v964 = vpack.c.b16 %v920, %v916
    %v965 = vpack.c.b16 %v921, %v917
    %v966 = vpack.c.b16 %v926, %v922
    %v967 = vpack.c.b16 %v927, %v923
    %v968 = vpack.c.b16 %v928, %v924
    %v969 = vpack.c.b16 %v929, %v925
    %v970 = vpack.c.b16 %v934, %v930
    %v971 = vpack.c.b16 %v935, %v931
    %v972 = vpack.c.b16 %v936, %v932
    %v973 = vpack.c.b16 %v937, %v933
    %v974 = vpack.c.b16 %v942, %v938
    %v975 = vpack.c.b16 %v943, %v939
    %v976 = vpack.c.b16 %v944, %v940
    %v977 = vpack.c.b16 %v945, %v941
    %1010 = vmatprep.subr.bf16.mxu0 %v947
    %1011 = vmatpush1.bf16.msra.mxu0 %v946
    %1012 = vmatprep.subr.bf16.mxu0 %v951
    %1013 = vmatpush1.bf16.msra.mxu0 %v950
    %1014 = vmatprep.subr.bf16.mxu0 %v955
    %1015 = vmatpush1.bf16.msra.mxu0 %v954
    %1016 = vmatprep.subr.bf16.mxu0 %v959
    %1017 = vmatpush1.bf16.msra.mxu0 %v958
    %1018 = vmatprep.subr.bf16.mxu0 %v963
    %1019 = vmatpush1.bf16.msra.mxu0 %v962
    %1020 = vmatprep.subr.bf16.mxu0 %v967
    %1021 = vmatpush1.bf16.msra.mxu0 %v966
    %1022 = vmatprep.subr.bf16.mxu0 %v971
    %1023 = vmatpush1.bf16.msra.mxu0 %v970
    %1024 = vmatprep.subr.bf16.mxu0 %v975
    %1025 = vmatpush1.bf16.msra.mxu0 %v974
    %1026 = vmatprep.subr.bf16.mxu0 0
    %1027 = vmatpush1.bf16.msra.mxu0 0
    %1028 = vmatprep.subr.bf16.mxu0 0
    %1029 = vmatpush1.bf16.msra.mxu0 0
    %1030 = vmatprep.subr.bf16.mxu0 0
    %1031 = vmatpush1.bf16.msra.mxu0 0
    %1032 = vmatprep.subr.bf16.mxu0 0
    %1033 = vmatpush1.bf16.msra.mxu0 0
    %1034 = vmatprep.subr.bf16.mxu0 0
    %1035 = vmatpush1.bf16.msra.mxu0 0
    %1036 = vmatprep.subr.bf16.mxu0 0
    %1037 = vmatpush1.bf16.msra.mxu0 0
    %1038 = vmatprep.subr.bf16.mxu0 0
    %1039 = vmatpush1.bf16.msra.mxu0 0
    %1040 = vmatprep.subr.bf16.mxu0 0
    %1041 = vmatpush1.bf16.msra.mxu0 0
    %1042 = vmatprep.mubr.bf16.mxu0 0
    %1043 = vmatmul.mubr.bf16.gmra.mrb[0].mxu0 %v817
    %v1044 = vpop.f32.mrb[0].mxu0
    %v1045 = vadd.f32 0.0, %v1044
    %v1046 = vpop.f32.mrb[0].mxu0
    %v1047 = vadd.f32 0.0, %v1046
    %v1048 = vpop.f32.mrb[0].mxu0
    %v1049 = vpop.f32.mrb[0].mxu0
    %1050 = vdwg.mxu0
    %1051 = vmatprep.subr.bf16.mxu0 %v949
    %1052 = vmatpush1.bf16.msra.mxu0 %v948
    %1053 = vmatprep.subr.bf16.mxu0 %v953
    %1054 = vmatpush1.bf16.msra.mxu0 %v952
    %1055 = vmatprep.subr.bf16.mxu0 %v957
    %1056 = vmatpush1.bf16.msra.mxu0 %v956
    %1057 = vmatprep.subr.bf16.mxu0 %v961
    %1058 = vmatpush1.bf16.msra.mxu0 %v960
    %1059 = vmatprep.subr.bf16.mxu0 %v965
    %1060 = vmatpush1.bf16.msra.mxu0 %v964
    %1061 = vmatprep.subr.bf16.mxu0 %v969
    %1062 = vmatpush1.bf16.msra.mxu0 %v968
    %1063 = vmatprep.subr.bf16.mxu0 %v973
    %1064 = vmatpush1.bf16.msra.mxu0 %v972
    %1065 = vmatprep.subr.bf16.mxu0 %v977
    %1066 = vmatpush1.bf16.msra.mxu0 %v976
    %1067 = vmatprep.subr.bf16.mxu0 0
    %1068 = vmatpush1.bf16.msra.mxu0 0
    %1069 = vmatprep.subr.bf16.mxu0 0
    %1070 = vmatpush1.bf16.msra.mxu0 0
    %1071 = vmatprep.subr.bf16.mxu0 0
    %1072 = vmatpush1.bf16.msra.mxu0 0
    %1073 = vmatprep.subr.bf16.mxu0 0
    %1074 = vmatpush1.bf16.msra.mxu0 0
    %1075 = vmatprep.subr.bf16.mxu0 0
    %1076 = vmatpush1.bf16.msra.mxu0 0
    %1077 = vmatprep.subr.bf16.mxu0 0
    %1078 = vmatpush1.bf16.msra.mxu0 0
    %1079 = vmatprep.subr.bf16.mxu0 0
    %1080 = vmatpush1.bf16.msra.mxu0 0
    %1081 = vmatprep.subr.bf16.mxu0 0
    %1082 = vmatpush1.bf16.msra.mxu0 0
    %1083 = vmatprep.mubr.bf16.mxu0 0
    %1084 = vmatmul.mubr.bf16.gmra.mrb[0].mxu0 %v817
    %v1085 = vpop.f32.mrb[0].mxu0
    %v1086 = vadd.f32 0.0, %v1085
    %v1087 = vpop.f32.mrb[0].mxu0
    %v1088 = vadd.f32 0.0, %v1087
    %v1089 = vpop.f32.mrb[0].mxu0
    %v1090 = vpop.f32.mrb[0].mxu0
    %1091 = vdwg.mxu0
    %v1092 = vadd.f32 %v813, %v1045
    %v1093 = vadd.f32 %v814, %v1047
    %v1094 = vadd.f32 %v815, %v1086
    %v1095 = vadd.f32 %v816, %v1088
    %v1096 = vxor.u32 %v1092, 2147483648
    %v1097 = vmul.f32 %v1096, 1.442695
    %v1098 = vpow.pop %v1097
    %v1099 = vadd.f32 %v1098, 1.0
    %v1100 = vrcp.pop %v1099
    %v1101 = vmul.f32 1.0, %v1100
    %v1102 = vxor.u32 %v1093, 2147483648
    %v1103 = vmul.f32 %v1102, 1.442695
    %v1104 = vpow.pop %v1103
    %v1105 = vadd.f32 %v1104, 1.0
    %v1106 = vrcp.pop %v1105
    %v1107 = vmul.f32 1.0, %v1106
    %v1108 = vtanh.pop %v1094
    %v1109 = vxor.u32 %v1095, 2147483648
    %v1110 = vmul.f32 %v1109, 1.442695
    %v1111 = vpow.pop %v1110
    %v1112 = vadd.f32 %v1111, 1.0
    %v1113 = vrcp.pop %v1112
    %v1114 = vmul.f32 1.0, %v1113
    %v1115 = vld [vmem:[#allocation3] sm:$0xff]
    %v1116 = vmul.f32 %v1107, %v1115
    %v1117 = vmul.f32 %v1101, %v1108
    %v1118 = vadd.f32 %v1116, %v1117
    %v1119 = vtanh.pop %v1118
    %v1120 = vmul.f32 %v1114, %v1119
    %v1121 = vpack.c.bf16 %v1120, %v1120
    %1122 = vst [vmem:[#allocation3] sm:$0xff] %v1118
    %1123 = vst [vmem:[#allocation10] sm:$0xf] %v1121
    %s1124 = smul.u32 2, 4
    %s1125 = smul.addr %s1124, 8
    %s1126 = scalar_lea.vmem [#allocation2], %s1125
    %v1127 = vld [vmem:[%s1126] sm:$0xff]
    %v1128 = vld [vmem:[%s1126 + $0x8] sm:$0xff]
    %v1129 = vld [vmem:[%s1126 + $0x10] sm:$0xff]
    %v1130 = vld [vmem:[%s1126 + $0x18] sm:$0xff]
    %v1131 = vld [vmem:[#allocation10] sm:$0xf]
    %v1132 = vld [vmem:[#allocation9] sm:$0xff]
    %v1133 = vld [vmem:[#allocation9 + $0x8] sm:$0xff]
    %v1134 = vld [vmem:[#allocation9 + $0x10] sm:$0xff]
    %v1135 = vld [vmem:[#allocation9 + $0x18] sm:$0xff]
    %v1136 = vld [vmem:[#allocation9 + $0x20] sm:$0xff]
    %v1137 = vld [vmem:[#allocation9 + $0x28] sm:$0xff]
    %v1138 = vld [vmem:[#allocation9 + $0x30] sm:$0xff]
    %v1139 = vld [vmem:[#allocation9 + $0x38] sm:$0xff]
    %v1140 = vld [vmem:[#allocation9 + $0x40] sm:$0xff]
    %v1141 = vld [vmem:[#allocation9 + $0x48] sm:$0xff]
    %v1142 = vld [vmem:[#allocation9 + $0x50] sm:$0xff]
    %v1143 = vld [vmem:[#allocation9 + $0x58] sm:$0xff]
    %v1144 = vld [vmem:[#allocation9 + $0x60] sm:$0xff]
    %v1145 = vld [vmem:[#allocation9 + $0x68] sm:$0xff]
    %v1146 = vld [vmem:[#allocation9 + $0x70] sm:$0xff]
    %v1147 = vld [vmem:[#allocation9 + $0x78] sm:$0xff]
    %v1148 = vld [vmem:[#allocation9 + $0x80] sm:$0xff]
    %v1149 = vld [vmem:[#allocation9 + $0x88] sm:$0xff]
    %v1150 = vld [vmem:[#allocation9 + $0x90] sm:$0xff]
    %v1151 = vld [vmem:[#allocation9 + $0x98] sm:$0xff]
    %v1152 = vld [vmem:[#allocation9 + $0xa0] sm:$0xff]
    %v1153 = vld [vmem:[#allocation9 + $0xa8] sm:$0xff]
    %v1154 = vld [vmem:[#allocation9 + $0xb0] sm:$0xff]
    %v1155 = vld [vmem:[#allocation9 + $0xb8] sm:$0xff]
    %v1156 = vld [vmem:[#allocation9 + $0xc0] sm:$0xff]
    %v1157 = vld [vmem:[#allocation9 + $0xc8] sm:$0xff]
    %v1158 = vld [vmem:[#allocation9 + $0xd0] sm:$0xff]
    %v1159 = vld [vmem:[#allocation9 + $0xd8] sm:$0xff]
    %v1160 = vld [vmem:[#allocation9 + $0xe0] sm:$0xff]
    %v1161 = vld [vmem:[#allocation9 + $0xe8] sm:$0xff]
    %v1162 = vld [vmem:[#allocation9 + $0xf0] sm:$0xff]
    %v1163 = vld [vmem:[#allocation9 + $0xf8] sm:$0xff]
    %v1196 = vunpack.c.l.b16 %v1132
    %v1197 = vunpack.c.h.b16 %v1132
    %v1198 = vunpack.c.l.b16 %v1133
    %v1199 = vunpack.c.h.b16 %v1133
    %v1200 = vunpack.c.l.b16 %v1134
    %v1201 = vunpack.c.h.b16 %v1134
    %v1202 = vunpack.c.l.b16 %v1135
    %v1203 = vunpack.c.h.b16 %v1135
    %v1204 = vunpack.c.l.b16 %v1136
    %v1205 = vunpack.c.h.b16 %v1136
    %v1206 = vunpack.c.l.b16 %v1137
    %v1207 = vunpack.c.h.b16 %v1137
    %v1208 = vunpack.c.l.b16 %v1138
    %v1209 = vunpack.c.h.b16 %v1138
    %v1210 = vunpack.c.l.b16 %v1139
    %v1211 = vunpack.c.h.b16 %v1139
    %v1212 = vunpack.c.l.b16 %v1140
    %v1213 = vunpack.c.h.b16 %v1140
    %v1214 = vunpack.c.l.b16 %v1141
    %v1215 = vunpack.c.h.b16 %v1141
    %v1216 = vunpack.c.l.b16 %v1142
    %v1217 = vunpack.c.h.b16 %v1142
    %v1218 = vunpack.c.l.b16 %v1143
    %v1219 = vunpack.c.h.b16 %v1143
    %v1220 = vunpack.c.l.b16 %v1144
    %v1221 = vunpack.c.h.b16 %v1144
    %v1222 = vunpack.c.l.b16 %v1145
    %v1223 = vunpack.c.h.b16 %v1145
    %v1224 = vunpack.c.l.b16 %v1146
    %v1225 = vunpack.c.h.b16 %v1146
    %v1226 = vunpack.c.l.b16 %v1147
    %v1227 = vunpack.c.h.b16 %v1147
    %v1228 = vunpack.c.l.b16 %v1148
    %v1229 = vunpack.c.h.b16 %v1148
    %v1230 = vunpack.c.l.b16 %v1149
    %v1231 = vunpack.c.h.b16 %v1149
    %v1232 = vunpack.c.l.b16 %v1150
    %v1233 = vunpack.c.h.b16 %v1150
    %v1234 = vunpack.c.l.b16 %v1151
    %v1235 = vunpack.c.h.b16 %v1151
    %v1236 = vunpack.c.l.b16 %v1152
    %v1237 = vunpack.c.h.b16 %v1152
    %v1238 = vunpack.c.l.b16 %v1153
    %v1239 = vunpack.c.h.b16 %v1153
    %v1240 = vunpack.c.l.b16 %v1154
    %v1241 = vunpack.c.h.b16 %v1154
    %v1242 = vunpack.c.l.b16 %v1155
    %v1243 = vunpack.c.h.b16 %v1155
    %v1244 = vunpack.c.l.b16 %v1156
    %v1245 = vunpack.c.h.b16 %v1156
    %v1246 = vunpack.c.l.b16 %v1157
    %v1247 = vunpack.c.h.b16 %v1157
    %v1248 = vunpack.c.l.b16 %v1158
    %v1249 = vunpack.c.h.b16 %v1158
    %v1250 = vunpack.c.l.b16 %v1159
    %v1251 = vunpack.c.h.b16 %v1159
    %v1252 = vunpack.c.l.b16 %v1160
    %v1253 = vunpack.c.h.b16 %v1160
    %v1254 = vunpack.c.l.b16 %v1161
    %v1255 = vunpack.c.h.b16 %v1161
    %v1256 = vunpack.c.l.b16 %v1162
    %v1257 = vunpack.c.h.b16 %v1162
    %v1258 = vunpack.c.l.b16 %v1163
    %v1259 = vunpack.c.h.b16 %v1163
    %v1260 = vpack.c.b16 %v1200, %v1196
    %v1261 = vpack.c.b16 %v1201, %v1197
    %v1262 = vpack.c.b16 %v1202, %v1198
    %v1263 = vpack.c.b16 %v1203, %v1199
    %v1264 = vpack.c.b16 %v1208, %v1204
    %v1265 = vpack.c.b16 %v1209, %v1205
    %v1266 = vpack.c.b16 %v1210, %v1206
    %v1267 = vpack.c.b16 %v1211, %v1207
    %v1268 = vpack.c.b16 %v1216, %v1212
    %v1269 = vpack.c.b16 %v1217, %v1213
    %v1270 = vpack.c.b16 %v1218, %v1214
    %v1271 = vpack.c.b16 %v1219, %v1215
    %v1272 = vpack.c.b16 %v1224, %v1220
    %v1273 = vpack.c.b16 %v1225, %v1221
    %v1274 = vpack.c.b16 %v1226, %v1222
    %v1275 = vpack.c.b16 %v1227, %v1223
    %v1276 = vpack.c.b16 %v1232, %v1228
    %v1277 = vpack.c.b16 %v1233, %v1229
    %v1278 = vpack.c.b16 %v1234, %v1230
    %v1279 = vpack.c.b16 %v1235, %v1231
    %v1280 = vpack.c.b16 %v1240, %v1236
    %v1281 = vpack.c.b16 %v1241, %v1237
    %v1282 = vpack.c.b16 %v1242, %v1238
    %v1283 = vpack.c.b16 %v1243, %v1239
    %v1284 = vpack.c.b16 %v1248, %v1244
    %v1285 = vpack.c.b16 %v1249, %v1245
    %v1286 = vpack.c.b16 %v1250, %v1246
    %v1287 = vpack.c.b16 %v1251, %v1247
    %v1288 = vpack.c.b16 %v1256, %v1252
    %v1289 = vpack.c.b16 %v1257, %v1253
    %v1290 = vpack.c.b16 %v1258, %v1254
    %v1291 = vpack.c.b16 %v1259, %v1255
    %1324 = vmatprep.subr.bf16.mxu0 %v1261
    %1325 = vmatpush1.bf16.msra.mxu0 %v1260
    %1326 = vmatprep.subr.bf16.mxu0 %v1265
    %1327 = vmatpush1.bf16.msra.mxu0 %v1264
    %1328 = vmatprep.subr.bf16.mxu0 %v1269
    %1329 = vmatpush1.bf16.msra.mxu0 %v1268
    %1330 = vmatprep.subr.bf16.mxu0 %v1273
    %1331 = vmatpush1.bf16.msra.mxu0 %v1272
    %1332 = vmatprep.subr.bf16.mxu0 %v1277
    %1333 = vmatpush1.bf16.msra.mxu0 %v1276
    %1334 = vmatprep.subr.bf16.mxu0 %v1281
    %1335 = vmatpush1.bf16.msra.mxu0 %v1280
    %1336 = vmatprep.subr.bf16.mxu0 %v1285
    %1337 = vmatpush1.bf16.msra.mxu0 %v1284
    %1338 = vmatprep.subr.bf16.mxu0 %v1289
    %1339 = vmatpush1.bf16.msra.mxu0 %v1288
    %1340 = vmatprep.subr.bf16.mxu0 0
    %1341 = vmatpush1.bf16.msra.mxu0 0
    %1342 = vmatprep.subr.bf16.mxu0 0
    %1343 = vmatpush1.bf16.msra.mxu0 0
    %1344 = vmatprep.subr.bf16.mxu0 0
    %1345 = vmatpush1.bf16.msra.mxu0 0
    %1346 = vmatprep.subr.bf16.mxu0 0
    %1347 = vmatpush1.bf16.msra.mxu0 0
    %1348 = vmatprep.subr.bf16.mxu0 0
    %1349 = vmatpush1.bf16.msra.mxu0 0
    %1350 = vmatprep.subr.bf16.mxu0 0
    %1351 = vmatpush1.bf16.msra.mxu0 0
    %1352 = vmatprep.subr.bf16.mxu0 0
    %1353 = vmatpush1.bf16.msra.mxu0 0
    %1354 = vmatprep.subr.bf16.mxu0 0
    %1355 = vmatpush1.bf16.msra.mxu0 0
    %1356 = vmatprep.mubr.bf16.mxu0 0
    %1357 = vmatmul.mubr.bf16.gmra.mrb[0].mxu0 %v1131
    %v1358 = vpop.f32.mrb[0].mxu0
    %v1359 = vadd.f32 0.0, %v1358
    %v1360 = vpop.f32.mrb[0].mxu0
    %v1361 = vadd.f32 0.0, %v1360
    %v1362 = vpop.f32.mrb[0].mxu0
    %v1363 = vpop.f32.mrb[0].mxu0
    %1364 = vdwg.mxu0
    %1365 = vmatprep.subr.bf16.mxu0 %v1263
    %1366 = vmatpush1.bf16.msra.mxu0 %v1262
    %1367 = vmatprep.subr.bf16.mxu0 %v1267
    %1368 = vmatpush1.bf16.msra.mxu0 %v1266
    %1369 = vmatprep.subr.bf16.mxu0 %v1271
    %1370 = vmatpush1.bf16.msra.mxu0 %v1270
    %1371 = vmatprep.subr.bf16.mxu0 %v1275
    %1372 = vmatpush1.bf16.msra.mxu0 %v1274
    %1373 = vmatprep.subr.bf16.mxu0 %v1279
    %1374 = vmatpush1.bf16.msra.mxu0 %v1278
    %1375 = vmatprep.subr.bf16.mxu0 %v1283
    %1376 = vmatpush1.bf16.msra.mxu0 %v1282
    %1377 = vmatprep.subr.bf16.mxu0 %v1287
    %1378 = vmatpush1.bf16.msra.mxu0 %v1286
    %1379 = vmatprep.subr.bf16.mxu0 %v1291
    %1380 = vmatpush1.bf16.msra.mxu0 %v1290
    %1381 = vmatprep.subr.bf16.mxu0 0
    %1382 = vmatpush1.bf16.msra.mxu0 0
    %1383 = vmatprep.subr.bf16.mxu0 0
    %1384 = vmatpush1.bf16.msra.mxu0 0
    %1385 = vmatprep.subr.bf16.mxu0 0
    %1386 = vmatpush1.bf16.msra.mxu0 0
    %1387 = vmatprep.subr.bf16.mxu0 0
    %1388 = vmatpush1.bf16.msra.mxu0 0
    %1389 = vmatprep.subr.bf16.mxu0 0
    %1390 = vmatpush1.bf16.msra.mxu0 0
    %1391 = vmatprep.subr.bf16.mxu0 0
    %1392 = vmatpush1.bf16.msra.mxu0 0
    %1393 = vmatprep.subr.bf16.mxu0 0
    %1394 = vmatpush1.bf16.msra.mxu0 0
    %1395 = vmatprep.subr.bf16.mxu0 0
    %1396 = vmatpush1.bf16.msra.mxu0 0
    %1397 = vmatprep.mubr.bf16.mxu0 0
    %1398 = vmatmul.mubr.bf16.gmra.mrb[0].mxu0 %v1131
    %v1399 = vpop.f32.mrb[0].mxu0
    %v1400 = vadd.f32 0.0, %v1399
    %v1401 = vpop.f32.mrb[0].mxu0
    %v1402 = vadd.f32 0.0, %v1401
    %v1403 = vpop.f32.mrb[0].mxu0
    %v1404 = vpop.f32.mrb[0].mxu0
    %1405 = vdwg.mxu0
    %v1406 = vadd.f32 %v1127, %v1359
    %v1407 = vadd.f32 %v1128, %v1361
    %v1408 = vadd.f32 %v1129, %v1400
    %v1409 = vadd.f32 %v1130, %v1402
    %v1410 = vxor.u32 %v1406, 2147483648
    %v1411 = vmul.f32 %v1410, 1.442695
    %v1412 = vpow.pop %v1411
    %v1413 = vadd.f32 %v1412, 1.0
    %v1414 = vrcp.pop %v1413
    %v1415 = vmul.f32 1.0, %v1414
    %v1416 = vxor.u32 %v1407, 2147483648
    %v1417 = vmul.f32 %v1416, 1.442695
    %v1418 = vpow.pop %v1417
    %v1419 = vadd.f32 %v1418, 1.0
    %v1420 = vrcp.pop %v1419
    %v1421 = vmul.f32 1.0, %v1420
    %v1422 = vtanh.pop %v1408
    %v1423 = vxor.u32 %v1409, 2147483648
    %v1424 = vmul.f32 %v1423, 1.442695
    %v1425 = vpow.pop %v1424
    %v1426 = vadd.f32 %v1425, 1.0
    %v1427 = vrcp.pop %v1426
    %v1428 = vmul.f32 1.0, %v1427
    %v1429 = vld [vmem:[#allocation3] sm:$0xff]
    %v1430 = vmul.f32 %v1421, %v1429
    %v1431 = vmul.f32 %v1415, %v1422
    %v1432 = vadd.f32 %v1430, %v1431
    %v1433 = vtanh.pop %v1432
    %v1434 = vmul.f32 %v1428, %v1433
    %v1435 = vpack.c.bf16 %v1434, %v1434
    %1436 = vst [vmem:[#allocation3] sm:$0xff] %v1432
    %1437 = vst [vmem:[#allocation10] sm:$0xf] %v1435
    %s1438 = smul.u32 3, 4
    %s1439 = smul.addr %s1438, 8
    %s1440 = scalar_lea.vmem [#allocation2], %s1439
    %v1441 = vld [vmem:[%s1440] sm:$0xff]
    %v1442 = vld [vmem:[%s1440 + $0x8] sm:$0xff]
    %v1443 = vld [vmem:[%s1440 + $0x10] sm:$0xff]
    %v1444 = vld [vmem:[%s1440 + $0x18] sm:$0xff]
    %v1445 = vld [vmem:[#allocation10] sm:$0xf]
    %v1446 = vld [vmem:[#allocation9] sm:$0xff]
    %v1447 = vld [vmem:[#allocation9 + $0x8] sm:$0xff]
    %v1448 = vld [vmem:[#allocation9 + $0x10] sm:$0xff]
    %v1449 = vld [vmem:[#allocation9 + $0x18] sm:$0xff]
    %v1450 = vld [vmem:[#allocation9 + $0x20] sm:$0xff]
    %v1451 = vld [vmem:[#allocation9 + $0x28] sm:$0xff]
    %v1452 = vld [vmem:[#allocation9 + $0x30] sm:$0xff]
    %v1453 = vld [vmem:[#allocation9 + $0x38] sm:$0xff]
    %v1454 = vld [vmem:[#allocation9 + $0x40] sm:$0xff]
    %v1455 = vld [vmem:[#allocation9 + $0x48] sm:$0xff]
    %v1456 = vld [vmem:[#allocation9 + $0x50] sm:$0xff]
    %v1457 = vld [vmem:[#allocation9 + $0x58] sm:$0xff]
    %v1458 = vld [vmem:[#allocation9 + $0x60] sm:$0xff]
    %v1459 = vld [vmem:[#allocation9 + $0x68] sm:$0xff]
    %v1460 = vld [vmem:[#allocation9 + $0x70] sm:$0xff]
    %v1461 = vld [vmem:[#allocation9 + $0x78] sm:$0xff]
    %v1462 = vld [vmem:[#allocation9 + $0x80] sm:$0xff]
    %v1463 = vld [vmem:[#allocation9 + $0x88] sm:$0xff]
    %v1464 = vld [vmem:[#allocation9 + $0x90] sm:$0xff]
    %v1465 = vld [vmem:[#allocation9 + $0x98] sm:$0xff]
    %v1466 = vld [vmem:[#allocation9 + $0xa0] sm:$0xff]
    %v1467 = vld [vmem:[#allocation9 + $0xa8] sm:$0xff]
    %v1468 = vld [vmem:[#allocation9 + $0xb0] sm:$0xff]
    %v1469 = vld [vmem:[#allocation9 + $0xb8] sm:$0xff]
    %v1470 = vld [vmem:[#allocation9 + $0xc0] sm:$0xff]
    %v1471 = vld [vmem:[#allocation9 + $0xc8] sm:$0xff]
    %v1472 = vld [vmem:[#allocation9 + $0xd0] sm:$0xff]
    %v1473 = vld [vmem:[#allocation9 + $0xd8] sm:$0xff]
    %v1474 = vld [vmem:[#allocation9 + $0xe0] sm:$0xff]
    %v1475 = vld [vmem:[#allocation9 + $0xe8] sm:$0xff]
    %v1476 = vld [vmem:[#allocation9 + $0xf0] sm:$0xff]
    %v1477 = vld [vmem:[#allocation9 + $0xf8] sm:$0xff]
    %v1510 = vunpack.c.l.b16 %v1446
    %v1511 = vunpack.c.h.b16 %v1446
    %v1512 = vunpack.c.l.b16 %v1447
    %v1513 = vunpack.c.h.b16 %v1447
    %v1514 = vunpack.c.l.b16 %v1448
    %v1515 = vunpack.c.h.b16 %v1448
    %v1516 = vunpack.c.l.b16 %v1449
    %v1517 = vunpack.c.h.b16 %v1449
    %v1518 = vunpack.c.l.b16 %v1450
    %v1519 = vunpack.c.h.b16 %v1450
    %v1520 = vunpack.c.l.b16 %v1451
    %v1521 = vunpack.c.h.b16 %v1451
    %v1522 = vunpack.c.l.b16 %v1452
    %v1523 = vunpack.c.h.b16 %v1452
    %v1524 = vunpack.c.l.b16 %v1453
    %v1525 = vunpack.c.h.b16 %v1453
    %v1526 = vunpack.c.l.b16 %v1454
    %v1527 = vunpack.c.h.b16 %v1454
    %v1528 = vunpack.c.l.b16 %v1455
    %v1529 = vunpack.c.h.b16 %v1455
    %v1530 = vunpack.c.l.b16 %v1456
    %v1531 = vunpack.c.h.b16 %v1456
    %v1532 = vunpack.c.l.b16 %v1457
    %v1533 = vunpack.c.h.b16 %v1457
    %v1534 = vunpack.c.l.b16 %v1458
    %v1535 = vunpack.c.h.b16 %v1458
    %v1536 = vunpack.c.l.b16 %v1459
    %v1537 = vunpack.c.h.b16 %v1459
    %v1538 = vunpack.c.l.b16 %v1460
    %v1539 = vunpack.c.h.b16 %v1460
    %v1540 = vunpack.c.l.b16 %v1461
    %v1541 = vunpack.c.h.b16 %v1461
    %v1542 = vunpack.c.l.b16 %v1462
    %v1543 = vunpack.c.h.b16 %v1462
    %v1544 = vunpack.c.l.b16 %v1463
    %v1545 = vunpack.c.h.b16 %v1463
    %v1546 = vunpack.c.l.b16 %v1464
    %v1547 = vunpack.c.h.b16 %v1464
    %v1548 = vunpack.c.l.b16 %v1465
    %v1549 = vunpack.c.h.b16 %v1465
    %v1550 = vunpack.c.l.b16 %v1466
    %v1551 = vunpack.c.h.b16 %v1466
    %v1552 = vunpack.c.l.b16 %v1467
    %v1553 = vunpack.c.h.b16 %v1467
    %v1554 = vunpack.c.l.b16 %v1468
    %v1555 = vunpack.c.h.b16 %v1468
    %v1556 = vunpack.c.l.b16 %v1469
    %v1557 = vunpack.c.h.b16 %v1469
    %v1558 = vunpack.c.l.b16 %v1470
    %v1559 = vunpack.c.h.b16 %v1470
    %v1560 = vunpack.c.l.b16 %v1471
    %v1561 = vunpack.c.h.b16 %v1471
    %v1562 = vunpack.c.l.b16 %v1472
    %v1563 = vunpack.c.h.b16 %v1472
    %v1564 = vunpack.c.l.b16 %v1473
    %v1565 = vunpack.c.h.b16 %v1473
    %v1566 = vunpack.c.l.b16 %v1474
    %v1567 = vunpack.c.h.b16 %v1474
    %v1568 = vunpack.c.l.b16 %v1475
    %v1569 = vunpack.c.h.b16 %v1475
    %v1570 = vunpack.c.l.b16 %v1476
    %v1571 = vunpack.c.h.b16 %v1476
    %v1572 = vunpack.c.l.b16 %v1477
    %v1573 = vunpack.c.h.b16 %v1477
    %v1574 = vpack.c.b16 %v1514, %v1510
    %v1575 = vpack.c.b16 %v1515, %v1511
    %v1576 = vpack.c.b16 %v1516, %v1512
    %v1577 = vpack.c.b16 %v1517, %v1513
    %v1578 = vpack.c.b16 %v1522, %v1518
    %v1579 = vpack.c.b16 %v1523, %v1519
    %v1580 = vpack.c.b16 %v1524, %v1520
    %v1581 = vpack.c.b16 %v1525, %v1521
    %v1582 = vpack.c.b16 %v1530, %v1526
    %v1583 = vpack.c.b16 %v1531, %v1527
    %v1584 = vpack.c.b16 %v1532, %v1528
    %v1585 = vpack.c.b16 %v1533, %v1529
    %v1586 = vpack.c.b16 %v1538, %v1534
    %v1587 = vpack.c.b16 %v1539, %v1535
    %v1588 = vpack.c.b16 %v1540, %v1536
    %v1589 = vpack.c.b16 %v1541, %v1537
    %v1590 = vpack.c.b16 %v1546, %v1542
    %v1591 = vpack.c.b16 %v1547, %v1543
    %v1592 = vpack.c.b16 %v1548, %v1544
    %v1593 = vpack.c.b16 %v1549, %v1545
    %v1594 = vpack.c.b16 %v1554, %v1550
    %v1595 = vpack.c.b16 %v1555, %v1551
    %v1596 = vpack.c.b16 %v1556, %v1552
    %v1597 = vpack.c.b16 %v1557, %v1553
    %v1598 = vpack.c.b16 %v1562, %v1558
    %v1599 = vpack.c.b16 %v1563, %v1559
    %v1600 = vpack.c.b16 %v1564, %v1560
    %v1601 = vpack.c.b16 %v1565, %v1561
    %v1602 = vpack.c.b16 %v1570, %v1566
    %v1603 = vpack.c.b16 %v1571, %v1567
    %v1604 = vpack.c.b16 %v1572, %v1568
    %v1605 = vpack.c.b16 %v1573, %v1569
    %1638 = vmatprep.subr.bf16.mxu0 %v1575
    %1639 = vmatpush1.bf16.msra.mxu0 %v1574
    %1640 = vmatprep.subr.bf16.mxu0 %v1579
    %1641 = vmatpush1.bf16.msra.mxu0 %v1578
    %1642 = vmatprep.subr.bf16.mxu0 %v1583
    %1643 = vmatpush1.bf16.msra.mxu0 %v1582
    %1644 = vmatprep.subr.bf16.mxu0 %v1587
    %1645 = vmatpush1.bf16.msra.mxu0 %v1586
    %1646 = vmatprep.subr.bf16.mxu0 %v1591
    %1647 = vmatpush1.bf16.msra.mxu0 %v1590
    %1648 = vmatprep.subr.bf16.mxu0 %v1595
    %1649 = vmatpush1.bf16.msra.mxu0 %v1594
    %1650 = vmatprep.subr.bf16.mxu0 %v1599
    %1651 = vmatpush1.bf16.msra.mxu0 %v1598
    %1652 = vmatprep.subr.bf16.mxu0 %v1603
    %1653 = vmatpush1.bf16.msra.mxu0 %v1602
    %1654 = vmatprep.subr.bf16.mxu0 0
    %1655 = vmatpush1.bf16.msra.mxu0 0
    %1656 = vmatprep.subr.bf16.mxu0 0
    %1657 = vmatpush1.bf16.msra.mxu0 0
    %1658 = vmatprep.subr.bf16.mxu0 0
    %1659 = vmatpush1.bf16.msra.mxu0 0
    %1660 = vmatprep.subr.bf16.mxu0 0
    %1661 = vmatpush1.bf16.msra.mxu0 0
    %1662 = vmatprep.subr.bf16.mxu0 0
    %1663 = vmatpush1.bf16.msra.mxu0 0
    %1664 = vmatprep.subr.bf16.mxu0 0
    %1665 = vmatpush1.bf16.msra.mxu0 0
    %1666 = vmatprep.subr.bf16.mxu0 0
    %1667 = vmatpush1.bf16.msra.mxu0 0
    %1668 = vmatprep.subr.bf16.mxu0 0
    %1669 = vmatpush1.bf16.msra.mxu0 0
    %1670 = vmatprep.mubr.bf16.mxu0 0
    %1671 = vmatmul.mubr.bf16.gmra.mrb[0].mxu0 %v1445
    %v1672 = vpop.f32.mrb[0].mxu0
    %v1673 = vadd.f32 0.0, %v1672
    %v1674 = vpop.f32.mrb[0].mxu0
    %v1675 = vadd.f32 0.0, %v1674
    %v1676 = vpop.f32.mrb[0].mxu0
    %v1677 = vpop.f32.mrb[0].mxu0
    %1678 = vdwg.mxu0
    %1679 = vmatprep.subr.bf16.mxu0 %v1577
    %1680 = vmatpush1.bf16.msra.mxu0 %v1576
    %1681 = vmatprep.subr.bf16.mxu0 %v1581
    %1682 = vmatpush1.bf16.msra.mxu0 %v1580
    %1683 = vmatprep.subr.bf16.mxu0 %v1585
    %1684 = vmatpush1.bf16.msra.mxu0 %v1584
    %1685 = vmatprep.subr.bf16.mxu0 %v1589
    %1686 = vmatpush1.bf16.msra.mxu0 %v1588
    %1687 = vmatprep.subr.bf16.mxu0 %v1593
    %1688 = vmatpush1.bf16.msra.mxu0 %v1592
    %1689 = vmatprep.subr.bf16.mxu0 %v1597
    %1690 = vmatpush1.bf16.msra.mxu0 %v1596
    %1691 = vmatprep.subr.bf16.mxu0 %v1601
    %1692 = vmatpush1.bf16.msra.mxu0 %v1600
    %1693 = vmatprep.subr.bf16.mxu0 %v1605
    %1694 = vmatpush1.bf16.msra.mxu0 %v1604
    %1695 = vmatprep.subr.bf16.mxu0 0
    %1696 = vmatpush1.bf16.msra.mxu0 0
    %1697 = vmatprep.subr.bf16.mxu0 0
    %1698 = vmatpush1.bf16.msra.mxu0 0
    %1699 = vmatprep.subr.bf16.mxu0 0
    %1700 = vmatpush1.bf16.msra.mxu0 0
    %1701 = vmatprep.subr.bf16.mxu0 0
    %1702 = vmatpush1.bf16.msra.mxu0 0
    %1703 = vmatprep.subr.bf16.mxu0 0
    %1704 = vmatpush1.bf16.msra.mxu0 0
    %1705 = vmatprep.subr.bf16.mxu0 0
    %1706 = vmatpush1.bf16.msra.mxu0 0
    %1707 = vmatprep.subr.bf16.mxu0 0
    %1708 = vmatpush1.bf16.msra.mxu0 0
    %1709 = vmatprep.subr.bf16.mxu0 0
    %1710 = vmatpush1.bf16.msra.mxu0 0
    %1711 = vmatprep.mubr.bf16.mxu0 0
    %1712 = vmatmul.mubr.bf16.gmra.mrb[0].mxu0 %v1445
    %v1713 = vpop.f32.mrb[0].mxu0
    %v1714 = vadd.f32 0.0, %v1713
    %v1715 = vpop.f32.mrb[0].mxu0
    %v1716 = vadd.f32 0.0, %v1715
    %v1717 = vpop.f32.mrb[0].mxu0
    %v1718 = vpop.f32.mrb[0].mxu0
    %1719 = vdwg.mxu0
    %v1720 = vadd.f32 %v1441, %v1673
    %v1721 = vadd.f32 %v1442, %v1675
    %v1722 = vadd.f32 %v1443, %v1714
    %v1723 = vadd.f32 %v1444, %v1716
    %v1724 = vxor.u32 %v1720, 2147483648
    %v1725 = vmul.f32 %v1724, 1.442695
    %v1726 = vpow.pop %v1725
    %v1727 = vadd.f32 %v1726, 1.0
    %v1728 = vrcp.pop %v1727
    %v1729 = vmul.f32 1.0, %v1728
    %v1730 = vxor.u32 %v1721, 2147483648
    %v1731 = vmul.f32 %v1730, 1.442695
    %v1732 = vpow.pop %v1731
    %v1733 = vadd.f32 %v1732, 1.0
    %v1734 = vrcp.pop %v1733
    %v1735 = vmul.f32 1.0, %v1734
    %v1736 = vtanh.pop %v1722
    %v1737 = vxor.u32 %v1723, 2147483648
    %v1738 = vmul.f32 %v1737, 1.442695
    %v1739 = vpow.pop %v1738
    %v1740 = vadd.f32 %v1739, 1.0
    %v1741 = vrcp.pop %v1740
    %v1742 = vmul.f32 1.0, %v1741
    %v1743 = vld [vmem:[#allocation3] sm:$0xff]
    %v1744 = vmul.f32 %v1735, %v1743
    %v1745 = vmul.f32 %v1729, %v1736
    %v1746 = vadd.f32 %v1744, %v1745
    %v1747 = vtanh.pop %v1746
    %v1748 = vmul.f32 %v1742, %v1747
    %v1749 = vpack.c.bf16 %v1748, %v1748
    %1750 = vst [vmem:[#allocation3] sm:$0xff] %v1746
    %1751 = vst [vmem:[#allocation10] sm:$0xf] %v1749
    %s1752 = smul.u32 4, 4
    %s1753 = smul.addr %s1752, 8
    %s1754 = scalar_lea.vmem [#allocation2], %s1753
    %v1755 = vld [vmem:[%s1754] sm:$0xff]
    %v1756 = vld [vmem:[%s1754 + $0x8] sm:$0xff]
    %v1757 = vld [vmem:[%s1754 + $0x10] sm:$0xff]
    %v1758 = vld [vmem:[%s1754 + $0x18] sm:$0xff]
    %v1759 = vld [vmem:[#allocation10] sm:$0xf]
    %v1760 = vld [vmem:[#allocation9] sm:$0xff]
    %v1761 = vld [vmem:[#allocation9 + $0x8] sm:$0xff]
    %v1762 = vld [vmem:[#allocation9 + $0x10] sm:$0xff]
    %v1763 = vld [vmem:[#allocation9 + $0x18] sm:$0xff]
    %v1764 = vld [vmem:[#allocation9 + $0x20] sm:$0xff]
    %v1765 = vld [vmem:[#allocation9 + $0x28] sm:$0xff]
    %v1766 = vld [vmem:[#allocation9 + $0x30] sm:$0xff]
    %v1767 = vld [vmem:[#allocation9 + $0x38] sm:$0xff]
    %v1768 = vld [vmem:[#allocation9 + $0x40] sm:$0xff]
    %v1769 = vld [vmem:[#allocation9 + $0x48] sm:$0xff]
    %v1770 = vld [vmem:[#allocation9 + $0x50] sm:$0xff]
    %v1771 = vld [vmem:[#allocation9 + $0x58] sm:$0xff]
    %v1772 = vld [vmem:[#allocation9 + $0x60] sm:$0xff]
    %v1773 = vld [vmem:[#allocation9 + $0x68] sm:$0xff]
    %v1774 = vld [vmem:[#allocation9 + $0x70] sm:$0xff]
    %v1775 = vld [vmem:[#allocation9 + $0x78] sm:$0xff]
    %v1776 = vld [vmem:[#allocation9 + $0x80] sm:$0xff]
    %v1777 = vld [vmem:[#allocation9 + $0x88] sm:$0xff]
    %v1778 = vld [vmem:[#allocation9 + $0x90] sm:$0xff]
    %v1779 = vld [vmem:[#allocation9 + $0x98] sm:$0xff]
    %v1780 = vld [vmem:[#allocation9 + $0xa0] sm:$0xff]
    %v1781 = vld [vmem:[#allocation9 + $0xa8] sm:$0xff]
    %v1782 = vld [vmem:[#allocation9 + $0xb0] sm:$0xff]
    %v1783 = vld [vmem:[#allocation9 + $0xb8] sm:$0xff]
    %v1784 = vld [vmem:[#allocation9 + $0xc0] sm:$0xff]
    %v1785 = vld [vmem:[#allocation9 + $0xc8] sm:$0xff]
    %v1786 = vld [vmem:[#allocation9 + $0xd0] sm:$0xff]
    %v1787 = vld [vmem:[#allocation9 + $0xd8] sm:$0xff]
    %v1788 = vld [vmem:[#allocation9 + $0xe0] sm:$0xff]
    %v1789 = vld [vmem:[#allocation9 + $0xe8] sm:$0xff]
    %v1790 = vld [vmem:[#allocation9 + $0xf0] sm:$0xff]
    %v1791 = vld [vmem:[#allocation9 + $0xf8] sm:$0xff]
    %v1824 = vunpack.c.l.b16 %v1760
    %v1825 = vunpack.c.h.b16 %v1760
    %v1826 = vunpack.c.l.b16 %v1761
    %v1827 = vunpack.c.h.b16 %v1761
    %v1828 = vunpack.c.l.b16 %v1762
    %v1829 = vunpack.c.h.b16 %v1762
    %v1830 = vunpack.c.l.b16 %v1763
    %v1831 = vunpack.c.h.b16 %v1763
    %v1832 = vunpack.c.l.b16 %v1764
    %v1833 = vunpack.c.h.b16 %v1764
    %v1834 = vunpack.c.l.b16 %v1765
    %v1835 = vunpack.c.h.b16 %v1765
    %v1836 = vunpack.c.l.b16 %v1766
    %v1837 = vunpack.c.h.b16 %v1766
    %v1838 = vunpack.c.l.b16 %v1767
    %v1839 = vunpack.c.h.b16 %v1767
    %v1840 = vunpack.c.l.b16 %v1768
    %v1841 = vunpack.c.h.b16 %v1768
    %v1842 = vunpack.c.l.b16 %v1769
    %v1843 = vunpack.c.h.b16 %v1769
    %v1844 = vunpack.c.l.b16 %v1770
    %v1845 = vunpack.c.h.b16 %v1770
    %v1846 = vunpack.c.l.b16 %v1771
    %v1847 = vunpack.c.h.b16 %v1771
    %v1848 = vunpack.c.l.b16 %v1772
    %v1849 = vunpack.c.h.b16 %v1772
    %v1850 = vunpack.c.l.b16 %v1773
    %v1851 = vunpack.c.h.b16 %v1773
    %v1852 = vunpack.c.l.b16 %v1774
    %v1853 = vunpack.c.h.b16 %v1774
    %v1854 = vunpack.c.l.b16 %v1775
    %v1855 = vunpack.c.h.b16 %v1775
    %v1856 = vunpack.c.l.b16 %v1776
    %v1857 = vunpack.c.h.b16 %v1776
    %v1858 = vunpack.c.l.b16 %v1777
    %v1859 = vunpack.c.h.b16 %v1777
    %v1860 = vunpack.c.l.b16 %v1778
    %v1861 = vunpack.c.h.b16 %v1778
    %v1862 = vunpack.c.l.b16 %v1779
    %v1863 = vunpack.c.h.b16 %v1779
    %v1864 = vunpack.c.l.b16 %v1780
    %v1865 = vunpack.c.h.b16 %v1780
    %v1866 = vunpack.c.l.b16 %v1781
    %v1867 = vunpack.c.h.b16 %v1781
    %v1868 = vunpack.c.l.b16 %v1782
    %v1869 = vunpack.c.h.b16 %v1782
    %v1870 = vunpack.c.l.b16 %v1783
    %v1871 = vunpack.c.h.b16 %v1783
    %v1872 = vunpack.c.l.b16 %v1784
    %v1873 = vunpack.c.h.b16 %v1784
    %v1874 = vunpack.c.l.b16 %v1785
    %v1875 = vunpack.c.h.b16 %v1785
    %v1876 = vunpack.c.l.b16 %v1786
    %v1877 = vunpack.c.h.b16 %v1786
    %v1878 = vunpack.c.l.b16 %v1787
    %v1879 = vunpack.c.h.b16 %v1787
    %v1880 = vunpack.c.l.b16 %v1788
    %v1881 = vunpack.c.h.b16 %v1788
    %v1882 = vunpack.c.l.b16 %v1789
    %v1883 = vunpack.c.h.b16 %v1789
    %v1884 = vunpack.c.l.b16 %v1790
    %v1885 = vunpack.c.h.b16 %v1790
    %v1886 = vunpack.c.l.b16 %v1791
    %v1887 = vunpack.c.h.b16 %v1791
    %v1888 = vpack.c.b16 %v1828, %v1824
    %v1889 = vpack.c.b16 %v1829, %v1825
    %v1890 = vpack.c.b16 %v1830, %v1826
    %v1891 = vpack.c.b16 %v1831, %v1827
    %v1892 = vpack.c.b16 %v1836, %v1832
    %v1893 = vpack.c.b16 %v1837, %v1833
    %v1894 = vpack.c.b16 %v1838, %v1834
    %v1895 = vpack.c.b16 %v1839, %v1835
    %v1896 = vpack.c.b16 %v1844, %v1840
    %v1897 = vpack.c.b16 %v1845, %v1841
    %v1898 = vpack.c.b16 %v1846, %v1842
    %v1899 = vpack.c.b16 %v1847, %v1843
    %v1900 = vpack.c.b16 %v1852, %v1848
    %v1901 = vpack.c.b16 %v1853, %v1849
    %v1902 = vpack.c.b16 %v1854, %v1850
    %v1903 = vpack.c.b16 %v1855, %v1851
    %v1904 = vpack.c.b16 %v1860, %v1856
    %v1905 = vpack.c.b16 %v1861, %v1857
    %v1906 = vpack.c.b16 %v1862, %v1858
    %v1907 = vpack.c.b16 %v1863, %v1859
    %v1908 = vpack.c.b16 %v1868, %v1864
    %v1909 = vpack.c.b16 %v1869, %v1865
    %v1910 = vpack.c.b16 %v1870, %v1866
    %v1911 = vpack.c.b16 %v1871, %v1867
    %v1912 = vpack.c.b16 %v1876, %v1872
    %v1913 = vpack.c.b16 %v1877, %v1873
    %v1914 = vpack.c.b16 %v1878, %v1874
    %v1915 = vpack.c.b16 %v1879, %v1875
    %v1916 = vpack.c.b16 %v1884, %v1880
    %v1917 = vpack.c.b16 %v1885, %v1881
    %v1918 = vpack.c.b16 %v1886, %v1882
    %v1919 = vpack.c.b16 %v1887, %v1883
    %1952 = vmatprep.subr.bf16.mxu0 %v1889
    %1953 = vmatpush1.bf16.msra.mxu0 %v1888
    %1954 = vmatprep.subr.bf16.mxu0 %v1893
    %1955 = vmatpush1.bf16.msra.mxu0 %v1892
    %1956 = vmatprep.subr.bf16.mxu0 %v1897
    %1957 = vmatpush1.bf16.msra.mxu0 %v1896
    %1958 = vmatprep.subr.bf16.mxu0 %v1901
    %1959 = vmatpush1.bf16.msra.mxu0 %v1900
    %1960 = vmatprep.subr.bf16.mxu0 %v1905
    %1961 = vmatpush1.bf16.msra.mxu0 %v1904
    %1962 = vmatprep.subr.bf16.mxu0 %v1909
    %1963 = vmatpush1.bf16.msra.mxu0 %v1908
    %1964 = vmatprep.subr.bf16.mxu0 %v1913
    %1965 = vmatpush1.bf16.msra.mxu0 %v1912
    %1966 = vmatprep.subr.bf16.mxu0 %v1917
    %1967 = vmatpush1.bf16.msra.mxu0 %v1916
    %1968 = vmatprep.subr.bf16.mxu0 0
    %1969 = vmatpush1.bf16.msra.mxu0 0
    %1970 = vmatprep.subr.bf16.mxu0 0
    %1971 = vmatpush1.bf16.msra.mxu0 0
    %1972 = vmatprep.subr.bf16.mxu0 0
    %1973 = vmatpush1.bf16.msra.mxu0 0
    %1974 = vmatprep.subr.bf16.mxu0 0
    %1975 = vmatpush1.bf16.msra.mxu0 0
    %1976 = vmatprep.subr.bf16.mxu0 0
    %1977 = vmatpush1.bf16.msra.mxu0 0
    %1978 = vmatprep.subr.bf16.mxu0 0
    %1979 = vmatpush1.bf16.msra.mxu0 0
    %1980 = vmatprep.subr.bf16.mxu0 0
    %1981 = vmatpush1.bf16.msra.mxu0 0
    %1982 = vmatprep.subr.bf16.mxu0 0
    %1983 = vmatpush1.bf16.msra.mxu0 0
    %1984 = vmatprep.mubr.bf16.mxu0 0
    %1985 = vmatmul.mubr.bf16.gmra.mrb[0].mxu0 %v1759
    %v1986 = vpop.f32.mrb[0].mxu0
    %v1987 = vadd.f32 0.0, %v1986
    %v1988 = vpop.f32.mrb[0].mxu0
    %v1989 = vadd.f32 0.0, %v1988
    %v1990 = vpop.f32.mrb[0].mxu0
    %v1991 = vpop.f32.mrb[0].mxu0
    %1992 = vdwg.mxu0
    %1993 = vmatprep.subr.bf16.mxu0 %v1891
    %1994 = vmatpush1.bf16.msra.mxu0 %v1890
    %1995 = vmatprep.subr.bf16.mxu0 %v1895
    %1996 = vmatpush1.bf16.msra.mxu0 %v1894
    %1997 = vmatprep.subr.bf16.mxu0 %v1899
    %1998 = vmatpush1.bf16.msra.mxu0 %v1898
    %1999 = vmatprep.subr.bf16.mxu0 %v1903
    %2000 = vmatpush1.bf16.msra.mxu0 %v1902
    %2001 = vmatprep.subr.bf16.mxu0 %v1907
    %2002 = vmatpush1.bf16.msra.mxu0 %v1906
    %2003 = vmatprep.subr.bf16.mxu0 %v1911
    %2004 = vmatpush1.bf16.msra.mxu0 %v1910
    %2005 = vmatprep.subr.bf16.mxu0 %v1915
    %2006 = vmatpush1.bf16.msra.mxu0 %v1914
    %2007 = vmatprep.subr.bf16.mxu0 %v1919
    %2008 = vmatpush1.bf16.msra.mxu0 %v1918
    %2009 = vmatprep.subr.bf16.mxu0 0
    %2010 = vmatpush1.bf16.msra.mxu0 0
    %2011 = vmatprep.subr.bf16.mxu0 0
    %2012 = vmatpush1.bf16.msra.mxu0 0
    %2013 = vmatprep.subr.bf16.mxu0 0
    %2014 = vmatpush1.bf16.msra.mxu0 0
    %2015 = vmatprep.subr.bf16.mxu0 0
    %2016 = vmatpush1.bf16.msra.mxu0 0
    %2017 = vmatprep.subr.bf16.mxu0 0
    %2018 = vmatpush1.bf16.msra.mxu0 0
    %2019 = vmatprep.subr.bf16.mxu0 0
    %2020 = vmatpush1.bf16.msra.mxu0 0
    %2021 = vmatprep.subr.bf16.mxu0 0
    %2022 = vmatpush1.bf16.msra.mxu0 0
    %2023 = vmatprep.subr.bf16.mxu0 0
    %2024 = vmatpush1.bf16.msra.mxu0 0
    %2025 = vmatprep.mubr.bf16.mxu0 0
    %2026 = vmatmul.mubr.bf16.gmra.mrb[0].mxu0 %v1759
    %v2027 = vpop.f32.mrb[0].mxu0
    %v2028 = vadd.f32 0.0, %v2027
    %v2029 = vpop.f32.mrb[0].mxu0
    %v2030 = vadd.f32 0.0, %v2029
    %v2031 = vpop.f32.mrb[0].mxu0
    %v2032 = vpop.f32.mrb[0].mxu0
    %2033 = vdwg.mxu0
    %v2034 = vadd.f32 %v1755, %v1987
    %v2035 = vadd.f32 %v1756, %v1989
    %v2036 = vadd.f32 %v1757, %v2028
    %v2037 = vadd.f32 %v1758, %v2030
    %v2038 = vxor.u32 %v2034, 2147483648
    %v2039 = vmul.f32 %v2038, 1.442695
    %v2040 = vpow.pop %v2039
    %v2041 = vadd.f32 %v2040, 1.0
    %v2042 = vrcp.pop %v2041
    %v2043 = vmul.f32 1.0, %v2042
    %v2044 = vxor.u32 %v2035, 2147483648
    %v2045 = vmul.f32 %v2044, 1.442695
    %v2046 = vpow.pop %v2045
    %v2047 = vadd.f32 %v2046, 1.0
    %v2048 = vrcp.pop %v2047
    %v2049 = vmul.f32 1.0, %v2048
    %v2050 = vtanh.pop %v2036
    %v2051 = vxor.u32 %v2037, 2147483648
    %v2052 = vmul.f32 %v2051, 1.442695
    %v2053 = vpow.pop %v2052
    %v2054 = vadd.f32 %v2053, 1.0
    %v2055 = vrcp.pop %v2054
    %v2056 = vmul.f32 1.0, %v2055
    %v2057 = vld [vmem:[#allocation3] sm:$0xff]
    %v2058 = vmul.f32 %v2049, %v2057
    %v2059 = vmul.f32 %v2043, %v2050
    %v2060 = vadd.f32 %v2058, %v2059
    %v2061 = vtanh.pop %v2060
    %v2062 = vmul.f32 %v2056, %v2061
    %v2063 = vpack.c.bf16 %v2062, %v2062
    %2064 = vst [vmem:[#allocation3] sm:$0xff] %v2060
    %2065 = vst [vmem:[#allocation10] sm:$0xf] %v2063
    %s2066 = smul.u32 5, 4
    %s2067 = smul.addr %s2066, 8
    %s2068 = scalar_lea.vmem [#allocation2], %s2067
    %v2069 = vld [vmem:[%s2068] sm:$0xff]
    %v2070 = vld [vmem:[%s2068 + $0x8] sm:$0xff]
    %v2071 = vld [vmem:[%s2068 + $0x10] sm:$0xff]
    %v2072 = vld [vmem:[%s2068 + $0x18] sm:$0xff]
    %v2073 = vld [vmem:[#allocation10] sm:$0xf]
    %v2074 = vld [vmem:[#allocation9] sm:$0xff]
    %v2075 = vld [vmem:[#allocation9 + $0x8] sm:$0xff]
    %v2076 = vld [vmem:[#allocation9 + $0x10] sm:$0xff]
    %v2077 = vld [vmem:[#allocation9 + $0x18] sm:$0xff]
    %v2078 = vld [vmem:[#allocation9 + $0x20] sm:$0xff]
    %v2079 = vld [vmem:[#allocation9 + $0x28] sm:$0xff]
    %v2080 = vld [vmem:[#allocation9 + $0x30] sm:$0xff]
    %v2081 = vld [vmem:[#allocation9 + $0x38] sm:$0xff]
    %v2082 = vld [vmem:[#allocation9 + $0x40] sm:$0xff]
    %v2083 = vld [vmem:[#allocation9 + $0x48] sm:$0xff]
    %v2084 = vld [vmem:[#allocation9 + $0x50] sm:$0xff]
    %v2085 = vld [vmem:[#allocation9 + $0x58] sm:$0xff]
    %v2086 = vld [vmem:[#allocation9 + $0x60] sm:$0xff]
    %v2087 = vld [vmem:[#allocation9 + $0x68] sm:$0xff]
    %v2088 = vld [vmem:[#allocation9 + $0x70] sm:$0xff]
    %v2089 = vld [vmem:[#allocation9 + $0x78] sm:$0xff]
    %v2090 = vld [vmem:[#allocation9 + $0x80] sm:$0xff]
    %v2091 = vld [vmem:[#allocation9 + $0x88] sm:$0xff]
    %v2092 = vld [vmem:[#allocation9 + $0x90] sm:$0xff]
    %v2093 = vld [vmem:[#allocation9 + $0x98] sm:$0xff]
    %v2094 = vld [vmem:[#allocation9 + $0xa0] sm:$0xff]
    %v2095 = vld [vmem:[#allocation9 + $0xa8] sm:$0xff]
    %v2096 = vld [vmem:[#allocation9 + $0xb0] sm:$0xff]
    %v2097 = vld [vmem:[#allocation9 + $0xb8] sm:$0xff]
    %v2098 = vld [vmem:[#allocation9 + $0xc0] sm:$0xff]
    %v2099 = vld [vmem:[#allocation9 + $0xc8] sm:$0xff]
    %v2100 = vld [vmem:[#allocation9 + $0xd0] sm:$0xff]
    %v2101 = vld [vmem:[#allocation9 + $0xd8] sm:$0xff]
    %v2102 = vld [vmem:[#allocation9 + $0xe0] sm:$0xff]
    %v2103 = vld [vmem:[#allocation9 + $0xe8] sm:$0xff]
    %v2104 = vld [vmem:[#allocation9 + $0xf0] sm:$0xff]
    %v2105 = vld [vmem:[#allocation9 + $0xf8] sm:$0xff]
    %v2138 = vunpack.c.l.b16 %v2074
    %v2139 = vunpack.c.h.b16 %v2074
    %v2140 = vunpack.c.l.b16 %v2075
    %v2141 = vunpack.c.h.b16 %v2075
    %v2142 = vunpack.c.l.b16 %v2076
    %v2143 = vunpack.c.h.b16 %v2076
    %v2144 = vunpack.c.l.b16 %v2077
    %v2145 = vunpack.c.h.b16 %v2077
    %v2146 = vunpack.c.l.b16 %v2078
    %v2147 = vunpack.c.h.b16 %v2078
    %v2148 = vunpack.c.l.b16 %v2079
    %v2149 = vunpack.c.h.b16 %v2079
    %v2150 = vunpack.c.l.b16 %v2080
    %v2151 = vunpack.c.h.b16 %v2080
    %v2152 = vunpack.c.l.b16 %v2081
    %v2153 = vunpack.c.h.b16 %v2081
    %v2154 = vunpack.c.l.b16 %v2082
    %v2155 = vunpack.c.h.b16 %v2082
    %v2156 = vunpack.c.l.b16 %v2083
    %v2157 = vunpack.c.h.b16 %v2083
    %v2158 = vunpack.c.l.b16 %v2084
    %v2159 = vunpack.c.h.b16 %v2084
    %v2160 = vunpack.c.l.b16 %v2085
    %v2161 = vunpack.c.h.b16 %v2085
    %v2162 = vunpack.c.l.b16 %v2086
    %v2163 = vunpack.c.h.b16 %v2086
    %v2164 = vunpack.c.l.b16 %v2087
    %v2165 = vunpack.c.h.b16 %v2087
    %v2166 = vunpack.c.l.b16 %v2088
    %v2167 = vunpack.c.h.b16 %v2088
    %v2168 = vunpack.c.l.b16 %v2089
    %v2169 = vunpack.c.h.b16 %v2089
    %v2170 = vunpack.c.l.b16 %v2090
    %v2171 = vunpack.c.h.b16 %v2090
    %v2172 = vunpack.c.l.b16 %v2091
    %v2173 = vunpack.c.h.b16 %v2091
    %v2174 = vunpack.c.l.b16 %v2092
    %v2175 = vunpack.c.h.b16 %v2092
    %v2176 = vunpack.c.l.b16 %v2093
    %v2177 = vunpack.c.h.b16 %v2093
    %v2178 = vunpack.c.l.b16 %v2094
    %v2179 = vunpack.c.h.b16 %v2094
    %v2180 = vunpack.c.l.b16 %v2095
    %v2181 = vunpack.c.h.b16 %v2095
    %v2182 = vunpack.c.l.b16 %v2096
    %v2183 = vunpack.c.h.b16 %v2096
    %v2184 = vunpack.c.l.b16 %v2097
    %v2185 = vunpack.c.h.b16 %v2097
    %v2186 = vunpack.c.l.b16 %v2098
    %v2187 = vunpack.c.h.b16 %v2098
    %v2188 = vunpack.c.l.b16 %v2099
    %v2189 = vunpack.c.h.b16 %v2099
    %v2190 = vunpack.c.l.b16 %v2100
    %v2191 = vunpack.c.h.b16 %v2100
    %v2192 = vunpack.c.l.b16 %v2101
    %v2193 = vunpack.c.h.b16 %v2101
    %v2194 = vunpack.c.l.b16 %v2102
    %v2195 = vunpack.c.h.b16 %v2102
    %v2196 = vunpack.c.l.b16 %v2103
    %v2197 = vunpack.c.h.b16 %v2103
    %v2198 = vunpack.c.l.b16 %v2104
    %v2199 = vunpack.c.h.b16 %v2104
    %v2200 = vunpack.c.l.b16 %v2105
    %v2201 = vunpack.c.h.b16 %v2105
    %v2202 = vpack.c.b16 %v2142, %v2138
    %v2203 = vpack.c.b16 %v2143, %v2139
    %v2204 = vpack.c.b16 %v2144, %v2140
    %v2205 = vpack.c.b16 %v2145, %v2141
    %v2206 = vpack.c.b16 %v2150, %v2146
    %v2207 = vpack.c.b16 %v2151, %v2147
    %v2208 = vpack.c.b16 %v2152, %v2148
    %v2209 = vpack.c.b16 %v2153, %v2149
    %v2210 = vpack.c.b16 %v2158, %v2154
    %v2211 = vpack.c.b16 %v2159, %v2155
    %v2212 = vpack.c.b16 %v2160, %v2156
    %v2213 = vpack.c.b16 %v2161, %v2157
    %v2214 = vpack.c.b16 %v2166, %v2162
    %v2215 = vpack.c.b16 %v2167, %v2163
    %v2216 = vpack.c.b16 %v2168, %v2164
    %v2217 = vpack.c.b16 %v2169, %v2165
    %v2218 = vpack.c.b16 %v2174, %v2170
    %v2219 = vpack.c.b16 %v2175, %v2171
    %v2220 = vpack.c.b16 %v2176, %v2172
    %v2221 = vpack.c.b16 %v2177, %v2173
    %v2222 = vpack.c.b16 %v2182, %v2178
    %v2223 = vpack.c.b16 %v2183, %v2179
    %v2224 = vpack.c.b16 %v2184, %v2180
    %v2225 = vpack.c.b16 %v2185, %v2181
    %v2226 = vpack.c.b16 %v2190, %v2186
    %v2227 = vpack.c.b16 %v2191, %v2187
    %v2228 = vpack.c.b16 %v2192, %v2188
    %v2229 = vpack.c.b16 %v2193, %v2189
    %v2230 = vpack.c.b16 %v2198, %v2194
    %v2231 = vpack.c.b16 %v2199, %v2195
    %v2232 = vpack.c.b16 %v2200, %v2196
    %v2233 = vpack.c.b16 %v2201, %v2197
    %2266 = vmatprep.subr.bf16.mxu0 %v2203
    %2267 = vmatpush1.bf16.msra.mxu0 %v2202
    %2268 = vmatprep.subr.bf16.mxu0 %v2207
    %2269 = vmatpush1.bf16.msra.mxu0 %v2206
    %2270 = vmatprep.subr.bf16.mxu0 %v2211
    %2271 = vmatpush1.bf16.msra.mxu0 %v2210
    %2272 = vmatprep.subr.bf16.mxu0 %v2215
    %2273 = vmatpush1.bf16.msra.mxu0 %v2214
    %2274 = vmatprep.subr.bf16.mxu0 %v2219
    %2275 = vmatpush1.bf16.msra.mxu0 %v2218
    %2276 = vmatprep.subr.bf16.mxu0 %v2223
    %2277 = vmatpush1.bf16.msra.mxu0 %v2222
    %2278 = vmatprep.subr.bf16.mxu0 %v2227
    %2279 = vmatpush1.bf16.msra.mxu0 %v2226
    %2280 = vmatprep.subr.bf16.mxu0 %v2231
    %2281 = vmatpush1.bf16.msra.mxu0 %v2230
    %2282 = vmatprep.subr.bf16.mxu0 0
    %2283 = vmatpush1.bf16.msra.mxu0 0
    %2284 = vmatprep.subr.bf16.mxu0 0
    %2285 = vmatpush1.bf16.msra.mxu0 0
    %2286 = vmatprep.subr.bf16.mxu0 0
    %2287 = vmatpush1.bf16.msra.mxu0 0
    %2288 = vmatprep.subr.bf16.mxu0 0
    %2289 = vmatpush1.bf16.msra.mxu0 0
    %2290 = vmatprep.subr.bf16.mxu0 0
    %2291 = vmatpush1.bf16.msra.mxu0 0
    %2292 = vmatprep.subr.bf16.mxu0 0
    %2293 = vmatpush1.bf16.msra.mxu0 0
    %2294 = vmatprep.subr.bf16.mxu0 0
    %2295 = vmatpush1.bf16.msra.mxu0 0
    %2296 = vmatprep.subr.bf16.mxu0 0
    %2297 = vmatpush1.bf16.msra.mxu0 0
    %2298 = vmatprep.mubr.bf16.mxu0 0
    %2299 = vmatmul.mubr.bf16.gmra.mrb[0].mxu0 %v2073
    %v2300 = vpop.f32.mrb[0].mxu0
    %v2301 = vadd.f32 0.0, %v2300
    %v2302 = vpop.f32.mrb[0].mxu0
    %v2303 = vadd.f32 0.0, %v2302
    %v2304 = vpop.f32.mrb[0].mxu0
    %v2305 = vpop.f32.mrb[0].mxu0
    %2306 = vdwg.mxu0
    %2307 = vmatprep.subr.bf16.mxu0 %v2205
    %2308 = vmatpush1.bf16.msra.mxu0 %v2204
    %2309 = vmatprep.subr.bf16.mxu0 %v2209
    %2310 = vmatpush1.bf16.msra.mxu0 %v2208
    %2311 = vmatprep.subr.bf16.mxu0 %v2213
    %2312 = vmatpush1.bf16.msra.mxu0 %v2212
    %2313 = vmatprep.subr.bf16.mxu0 %v2217
    %2314 = vmatpush1.bf16.msra.mxu0 %v2216
    %2315 = vmatprep.subr.bf16.mxu0 %v2221
    %2316 = vmatpush1.bf16.msra.mxu0 %v2220
    %2317 = vmatprep.subr.bf16.mxu0 %v2225
    %2318 = vmatpush1.bf16.msra.mxu0 %v2224
    %2319 = vmatprep.subr.bf16.mxu0 %v2229
    %2320 = vmatpush1.bf16.msra.mxu0 %v2228
    %2321 = vmatprep.subr.bf16.mxu0 %v2233
    %2322 = vmatpush1.bf16.msra.mxu0 %v2232
    %2323 = vmatprep.subr.bf16.mxu0 0
    %2324 = vmatpush1.bf16.msra.mxu0 0
    %2325 = vmatprep.subr.bf16.mxu0 0
    %2326 = vmatpush1.bf16.msra.mxu0 0
    %2327 = vmatprep.subr.bf16.mxu0 0
    %2328 = vmatpush1.bf16.msra.mxu0 0
    %2329 = vmatprep.subr.bf16.mxu0 0
    %2330 = vmatpush1.bf16.msra.mxu0 0
    %2331 = vmatprep.subr.bf16.mxu0 0
    %2332 = vmatpush1.bf16.msra.mxu0 0
    %2333 = vmatprep.subr.bf16.mxu0 0
    %2334 = vmatpush1.bf16.msra.mxu0 0
    %2335 = vmatprep.subr.bf16.mxu0 0
    %2336 = vmatpush1.bf16.msra.mxu0 0
    %2337 = vmatprep.subr.bf16.mxu0 0
    %2338 = vmatpush1.bf16.msra.mxu0 0
    %2339 = vmatprep.mubr.bf16.mxu0 0
    %2340 = vmatmul.mubr.bf16.gmra.mrb[0].mxu0 %v2073
    %v2341 = vpop.f32.mrb[0].mxu0
    %v2342 = vadd.f32 0.0, %v2341
    %v2343 = vpop.f32.mrb[0].mxu0
    %v2344 = vadd.f32 0.0, %v2343
    %v2345 = vpop.f32.mrb[0].mxu0
    %v2346 = vpop.f32.mrb[0].mxu0
    %2347 = vdwg.mxu0
    %v2348 = vadd.f32 %v2069, %v2301
    %v2349 = vadd.f32 %v2070, %v2303
    %v2350 = vadd.f32 %v2071, %v2342
    %v2351 = vadd.f32 %v2072, %v2344
    %v2352 = vxor.u32 %v2348, 2147483648
    %v2353 = vmul.f32 %v2352, 1.442695
    %v2354 = vpow.pop %v2353
    %v2355 = vadd.f32 %v2354, 1.0
    %v2356 = vrcp.pop %v2355
    %v2357 = vmul.f32 1.0, %v2356
    %v2358 = vxor.u32 %v2349, 2147483648
    %v2359 = vmul.f32 %v2358, 1.442695
    %v2360 = vpow.pop %v2359
    %v2361 = vadd.f32 %v2360, 1.0
    %v2362 = vrcp.pop %v2361
    %v2363 = vmul.f32 1.0, %v2362
    %v2364 = vtanh.pop %v2350
    %v2365 = vxor.u32 %v2351, 2147483648
    %v2366 = vmul.f32 %v2365, 1.442695
    %v2367 = vpow.pop %v2366
    %v2368 = vadd.f32 %v2367, 1.0
    %v2369 = vrcp.pop %v2368
    %v2370 = vmul.f32 1.0, %v2369
    %v2371 = vld [vmem:[#allocation3] sm:$0xff]
    %v2372 = vmul.f32 %v2363, %v2371
    %v2373 = vmul.f32 %v2357, %v2364
    %v2374 = vadd.f32 %v2372, %v2373
    %v2375 = vtanh.pop %v2374
    %v2376 = vmul.f32 %v2370, %v2375
    %v2377 = vpack.c.bf16 %v2376, %v2376
    %2378 = vst [vmem:[#allocation3] sm:$0xff] %v2374
    %2379 = vst [vmem:[#allocation10] sm:$0xf] %v2377
    %s2380 = smul.u32 6, 4
    %s2381 = smul.addr %s2380, 8
    %s2382 = scalar_lea.vmem [#allocation2], %s2381
    %v2383 = vld [vmem:[%s2382] sm:$0xff]
    %v2384 = vld [vmem:[%s2382 + $0x8] sm:$0xff]
    %v2385 = vld [vmem:[%s2382 + $0x10] sm:$0xff]
    %v2386 = vld [vmem:[%s2382 + $0x18] sm:$0xff]
    %v2387 = vld [vmem:[#allocation10] sm:$0xf]
    %v2388 = vld [vmem:[#allocation9] sm:$0xff]
    %v2389 = vld [vmem:[#allocation9 + $0x8] sm:$0xff]
    %v2390 = vld [vmem:[#allocation9 + $0x10] sm:$0xff]
    %v2391 = vld [vmem:[#allocation9 + $0x18] sm:$0xff]
    %v2392 = vld [vmem:[#allocation9 + $0x20] sm:$0xff]
    %v2393 = vld [vmem:[#allocation9 + $0x28] sm:$0xff]
    %v2394 = vld [vmem:[#allocation9 + $0x30] sm:$0xff]
    %v2395 = vld [vmem:[#allocation9 + $0x38] sm:$0xff]
    %v2396 = vld [vmem:[#allocation9 + $0x40] sm:$0xff]
    %v2397 = vld [vmem:[#allocation9 + $0x48] sm:$0xff]
    %v2398 = vld [vmem:[#allocation9 + $0x50] sm:$0xff]
    %v2399 = vld [vmem:[#allocation9 + $0x58] sm:$0xff]
    %v2400 = vld [vmem:[#allocation9 + $0x60] sm:$0xff]
    %v2401 = vld [vmem:[#allocation9 + $0x68] sm:$0xff]
    %v2402 = vld [vmem:[#allocation9 + $0x70] sm:$0xff]
    %v2403 = vld [vmem:[#allocation9 + $0x78] sm:$0xff]
    %v2404 = vld [vmem:[#allocation9 + $0x80] sm:$0xff]
    %v2405 = vld [vmem:[#allocation9 + $0x88] sm:$0xff]
    %v2406 = vld [vmem:[#allocation9 + $0x90] sm:$0xff]
    %v2407 = vld [vmem:[#allocation9 + $0x98] sm:$0xff]
    %v2408 = vld [vmem:[#allocation9 + $0xa0] sm:$0xff]
    %v2409 = vld [vmem:[#allocation9 + $0xa8] sm:$0xff]
    %v2410 = vld [vmem:[#allocation9 + $0xb0] sm:$0xff]
    %v2411 = vld [vmem:[#allocation9 + $0xb8] sm:$0xff]
    %v2412 = vld [vmem:[#allocation9 + $0xc0] sm:$0xff]
    %v2413 = vld [vmem:[#allocation9 + $0xc8] sm:$0xff]
    %v2414 = vld [vmem:[#allocation9 + $0xd0] sm:$0xff]
    %v2415 = vld [vmem:[#allocation9 + $0xd8] sm:$0xff]
    %v2416 = vld [vmem:[#allocation9 + $0xe0] sm:$0xff]
    %v2417 = vld [vmem:[#allocation9 + $0xe8] sm:$0xff]
    %v2418 = vld [vmem:[#allocation9 + $0xf0] sm:$0xff]
    %v2419 = vld [vmem:[#allocation9 + $0xf8] sm:$0xff]
    %v2452 = vunpack.c.l.b16 %v2388
    %v2453 = vunpack.c.h.b16 %v2388
    %v2454 = vunpack.c.l.b16 %v2389
    %v2455 = vunpack.c.h.b16 %v2389
    %v2456 = vunpack.c.l.b16 %v2390
    %v2457 = vunpack.c.h.b16 %v2390
    %v2458 = vunpack.c.l.b16 %v2391
    %v2459 = vunpack.c.h.b16 %v2391
    %v2460 = vunpack.c.l.b16 %v2392
    %v2461 = vunpack.c.h.b16 %v2392
    %v2462 = vunpack.c.l.b16 %v2393
    %v2463 = vunpack.c.h.b16 %v2393
    %v2464 = vunpack.c.l.b16 %v2394
    %v2465 = vunpack.c.h.b16 %v2394
    %v2466 = vunpack.c.l.b16 %v2395
    %v2467 = vunpack.c.h.b16 %v2395
    %v2468 = vunpack.c.l.b16 %v2396
    %v2469 = vunpack.c.h.b16 %v2396
    %v2470 = vunpack.c.l.b16 %v2397
    %v2471 = vunpack.c.h.b16 %v2397
    %v2472 = vunpack.c.l.b16 %v2398
    %v2473 = vunpack.c.h.b16 %v2398
    %v2474 = vunpack.c.l.b16 %v2399
    %v2475 = vunpack.c.h.b16 %v2399
    %v2476 = vunpack.c.l.b16 %v2400
    %v2477 = vunpack.c.h.b16 %v2400
    %v2478 = vunpack.c.l.b16 %v2401
    %v2479 = vunpack.c.h.b16 %v2401
    %v2480 = vunpack.c.l.b16 %v2402
    %v2481 = vunpack.c.h.b16 %v2402
    %v2482 = vunpack.c.l.b16 %v2403
    %v2483 = vunpack.c.h.b16 %v2403
    %v2484 = vunpack.c.l.b16 %v2404
    %v2485 = vunpack.c.h.b16 %v2404
    %v2486 = vunpack.c.l.b16 %v2405
    %v2487 = vunpack.c.h.b16 %v2405
    %v2488 = vunpack.c.l.b16 %v2406
    %v2489 = vunpack.c.h.b16 %v2406
    %v2490 = vunpack.c.l.b16 %v2407
    %v2491 = vunpack.c.h.b16 %v2407
    %v2492 = vunpack.c.l.b16 %v2408
    %v2493 = vunpack.c.h.b16 %v2408
    %v2494 = vunpack.c.l.b16 %v2409
    %v2495 = vunpack.c.h.b16 %v2409
    %v2496 = vunpack.c.l.b16 %v2410
    %v2497 = vunpack.c.h.b16 %v2410
    %v2498 = vunpack.c.l.b16 %v2411
    %v2499 = vunpack.c.h.b16 %v2411
    %v2500 = vunpack.c.l.b16 %v2412
    %v2501 = vunpack.c.h.b16 %v2412
    %v2502 = vunpack.c.l.b16 %v2413
    %v2503 = vunpack.c.h.b16 %v2413
    %v2504 = vunpack.c.l.b16 %v2414
    %v2505 = vunpack.c.h.b16 %v2414
    %v2506 = vunpack.c.l.b16 %v2415
    %v2507 = vunpack.c.h.b16 %v2415
    %v2508 = vunpack.c.l.b16 %v2416
    %v2509 = vunpack.c.h.b16 %v2416
    %v2510 = vunpack.c.l.b16 %v2417
    %v2511 = vunpack.c.h.b16 %v2417
    %v2512 = vunpack.c.l.b16 %v2418
    %v2513 = vunpack.c.h.b16 %v2418
    %v2514 = vunpack.c.l.b16 %v2419
    %v2515 = vunpack.c.h.b16 %v2419
    %v2516 = vpack.c.b16 %v2456, %v2452
    %v2517 = vpack.c.b16 %v2457, %v2453
    %v2518 = vpack.c.b16 %v2458, %v2454
    %v2519 = vpack.c.b16 %v2459, %v2455
    %v2520 = vpack.c.b16 %v2464, %v2460
    %v2521 = vpack.c.b16 %v2465, %v2461
    %v2522 = vpack.c.b16 %v2466, %v2462
    %v2523 = vpack.c.b16 %v2467, %v2463
    %v2524 = vpack.c.b16 %v2472, %v2468
    %v2525 = vpack.c.b16 %v2473, %v2469
    %v2526 = vpack.c.b16 %v2474, %v2470
    %v2527 = vpack.c.b16 %v2475, %v2471
    %v2528 = vpack.c.b16 %v2480, %v2476
    %v2529 = vpack.c.b16 %v2481, %v2477
    %v2530 = vpack.c.b16 %v2482, %v2478
    %v2531 = vpack.c.b16 %v2483, %v2479
    %v2532 = vpack.c.b16 %v2488, %v2484
    %v2533 = vpack.c.b16 %v2489, %v2485
    %v2534 = vpack.c.b16 %v2490, %v2486
    %v2535 = vpack.c.b16 %v2491, %v2487
    %v2536 = vpack.c.b16 %v2496, %v2492
    %v2537 = vpack.c.b16 %v2497, %v2493
    %v2538 = vpack.c.b16 %v2498, %v2494
    %v2539 = vpack.c.b16 %v2499, %v2495
    %v2540 = vpack.c.b16 %v2504, %v2500
    %v2541 = vpack.c.b16 %v2505, %v2501
    %v2542 = vpack.c.b16 %v2506, %v2502
    %v2543 = vpack.c.b16 %v2507, %v2503
    %v2544 = vpack.c.b16 %v2512, %v2508
    %v2545 = vpack.c.b16 %v2513, %v2509
    %v2546 = vpack.c.b16 %v2514, %v2510
    %v2547 = vpack.c.b16 %v2515, %v2511
    %2580 = vmatprep.subr.bf16.mxu0 %v2517
    %2581 = vmatpush1.bf16.msra.mxu0 %v2516
    %2582 = vmatprep.subr.bf16.mxu0 %v2521
    %2583 = vmatpush1.bf16.msra.mxu0 %v2520
    %2584 = vmatprep.subr.bf16.mxu0 %v2525
    %2585 = vmatpush1.bf16.msra.mxu0 %v2524
    %2586 = vmatprep.subr.bf16.mxu0 %v2529
    %2587 = vmatpush1.bf16.msra.mxu0 %v2528
    %2588 = vmatprep.subr.bf16.mxu0 %v2533
    %2589 = vmatpush1.bf16.msra.mxu0 %v2532
    %2590 = vmatprep.subr.bf16.mxu0 %v2537
    %2591 = vmatpush1.bf16.msra.mxu0 %v2536
    %2592 = vmatprep.subr.bf16.mxu0 %v2541
    %2593 = vmatpush1.bf16.msra.mxu0 %v2540
    %2594 = vmatprep.subr.bf16.mxu0 %v2545
    %2595 = vmatpush1.bf16.msra.mxu0 %v2544
    %2596 = vmatprep.subr.bf16.mxu0 0
    %2597 = vmatpush1.bf16.msra.mxu0 0
    %2598 = vmatprep.subr.bf16.mxu0 0
    %2599 = vmatpush1.bf16.msra.mxu0 0
    %2600 = vmatprep.subr.bf16.mxu0 0
    %2601 = vmatpush1.bf16.msra.mxu0 0
    %2602 = vmatprep.subr.bf16.mxu0 0
    %2603 = vmatpush1.bf16.msra.mxu0 0
    %2604 = vmatprep.subr.bf16.mxu0 0
    %2605 = vmatpush1.bf16.msra.mxu0 0
    %2606 = vmatprep.subr.bf16.mxu0 0
    %2607 = vmatpush1.bf16.msra.mxu0 0
    %2608 = vmatprep.subr.bf16.mxu0 0
    %2609 = vmatpush1.bf16.msra.mxu0 0
    %2610 = vmatprep.subr.bf16.mxu0 0
    %2611 = vmatpush1.bf16.msra.mxu0 0
    %2612 = vmatprep.mubr.bf16.mxu0 0
    %2613 = vmatmul.mubr.bf16.gmra.mrb[0].mxu0 %v2387
    %v2614 = vpop.f32.mrb[0].mxu0
    %v2615 = vadd.f32 0.0, %v2614
    %v2616 = vpop.f32.mrb[0].mxu0
    %v2617 = vadd.f32 0.0, %v2616
    %v2618 = vpop.f32.mrb[0].mxu0
    %v2619 = vpop.f32.mrb[0].mxu0
    %2620 = vdwg.mxu0
    %2621 = vmatprep.subr.bf16.mxu0 %v2519
    %2622 = vmatpush1.bf16.msra.mxu0 %v2518
    %2623 = vmatprep.subr.bf16.mxu0 %v2523
    %2624 = vmatpush1.bf16.msra.mxu0 %v2522
    %2625 = vmatprep.subr.bf16.mxu0 %v2527
    %2626 = vmatpush1.bf16.msra.mxu0 %v2526
    %2627 = vmatprep.subr.bf16.mxu0 %v2531
    %2628 = vmatpush1.bf16.msra.mxu0 %v2530
    %2629 = vmatprep.subr.bf16.mxu0 %v2535
    %2630 = vmatpush1.bf16.msra.mxu0 %v2534
    %2631 = vmatprep.subr.bf16.mxu0 %v2539
    %2632 = vmatpush1.bf16.msra.mxu0 %v2538
    %2633 = vmatprep.subr.bf16.mxu0 %v2543
    %2634 = vmatpush1.bf16.msra.mxu0 %v2542
    %2635 = vmatprep.subr.bf16.mxu0 %v2547
    %2636 = vmatpush1.bf16.msra.mxu0 %v2546
    %2637 = vmatprep.subr.bf16.mxu0 0
    %2638 = vmatpush1.bf16.msra.mxu0 0
    %2639 = vmatprep.subr.bf16.mxu0 0
    %2640 = vmatpush1.bf16.msra.mxu0 0
    %2641 = vmatprep.subr.bf16.mxu0 0
    %2642 = vmatpush1.bf16.msra.mxu0 0
    %2643 = vmatprep.subr.bf16.mxu0 0
    %2644 = vmatpush1.bf16.msra.mxu0 0
    %2645 = vmatprep.subr.bf16.mxu0 0
    %2646 = vmatpush1.bf16.msra.mxu0 0
    %2647 = vmatprep.subr.bf16.mxu0 0
    %2648 = vmatpush1.bf16.msra.mxu0 0
    %2649 = vmatprep.subr.bf16.mxu0 0
    %2650 = vmatpush1.bf16.msra.mxu0 0
    %2651 = vmatprep.subr.bf16.mxu0 0
    %2652 = vmatpush1.bf16.msra.mxu0 0
    %2653 = vmatprep.mubr.bf16.mxu0 0
    %2654 = vmatmul.mubr.bf16.gmra.mrb[0].mxu0 %v2387
    %v2655 = vpop.f32.mrb[0].mxu0
    %v2656 = vadd.f32 0.0, %v2655
    %v2657 = vpop.f32.mrb[0].mxu0
    %v2658 = vadd.f32 0.0, %v2657
    %v2659 = vpop.f32.mrb[0].mxu0
    %v2660 = vpop.f32.mrb[0].mxu0
    %2661 = vdwg.mxu0
    %v2662 = vadd.f32 %v2383, %v2615
    %v2663 = vadd.f32 %v2384, %v2617
    %v2664 = vadd.f32 %v2385, %v2656
    %v2665 = vadd.f32 %v2386, %v2658
    %v2666 = vxor.u32 %v2662, 2147483648
    %v2667 = vmul.f32 %v2666, 1.442695
    %v2668 = vpow.pop %v2667
    %v2669 = vadd.f32 %v2668, 1.0
    %v2670 = vrcp.pop %v2669
    %v2671 = vmul.f32 1.0, %v2670
    %v2672 = vxor.u32 %v2663, 2147483648
    %v2673 = vmul.f32 %v2672, 1.442695
    %v2674 = vpow.pop %v2673
    %v2675 = vadd.f32 %v2674, 1.0
    %v2676 = vrcp.pop %v2675
    %v2677 = vmul.f32 1.0, %v2676
    %v2678 = vtanh.pop %v2664
    %v2679 = vxor.u32 %v2665, 2147483648
    %v2680 = vmul.f32 %v2679, 1.442695
    %v2681 = vpow.pop %v2680
    %v2682 = vadd.f32 %v2681, 1.0
    %v2683 = vrcp.pop %v2682
    %v2684 = vmul.f32 1.0, %v2683
    %v2685 = vld [vmem:[#allocation3] sm:$0xff]
    %v2686 = vmul.f32 %v2677, %v2685
    %v2687 = vmul.f32 %v2671, %v2678
    %v2688 = vadd.f32 %v2686, %v2687
    %v2689 = vtanh.pop %v2688
    %v2690 = vmul.f32 %v2684, %v2689
    %v2691 = vpack.c.bf16 %v2690, %v2690
    %2692 = vst [vmem:[#allocation3] sm:$0xff] %v2688
    %2693 = vst [vmem:[#allocation10] sm:$0xf] %v2691
    %s2694 = smul.u32 7, 4
    %s2695 = smul.addr %s2694, 8
    %s2696 = scalar_lea.vmem [#allocation2], %s2695
    %v2697 = vld [vmem:[%s2696] sm:$0xff]
    %v2698 = vld [vmem:[%s2696 + $0x8] sm:$0xff]
    %v2699 = vld [vmem:[%s2696 + $0x10] sm:$0xff]
    %v2700 = vld [vmem:[%s2696 + $0x18] sm:$0xff]
    %v2701 = vld [vmem:[#allocation10] sm:$0xf]
    %v2702 = vld [vmem:[#allocation9] sm:$0xff]
    %v2703 = vld [vmem:[#allocation9 + $0x8] sm:$0xff]
    %v2704 = vld [vmem:[#allocation9 + $0x10] sm:$0xff]
    %v2705 = vld [vmem:[#allocation9 + $0x18] sm:$0xff]
    %v2706 = vld [vmem:[#allocation9 + $0x20] sm:$0xff]
    %v2707 = vld [vmem:[#allocation9 + $0x28] sm:$0xff]
    %v2708 = vld [vmem:[#allocation9 + $0x30] sm:$0xff]
    %v2709 = vld [vmem:[#allocation9 + $0x38] sm:$0xff]
    %v2710 = vld [vmem:[#allocation9 + $0x40] sm:$0xff]
    %v2711 = vld [vmem:[#allocation9 + $0x48] sm:$0xff]
    %v2712 = vld [vmem:[#allocation9 + $0x50] sm:$0xff]
    %v2713 = vld [vmem:[#allocation9 + $0x58] sm:$0xff]
    %v2714 = vld [vmem:[#allocation9 + $0x60] sm:$0xff]
    %v2715 = vld [vmem:[#allocation9 + $0x68] sm:$0xff]
    %v2716 = vld [vmem:[#allocation9 + $0x70] sm:$0xff]
    %v2717 = vld [vmem:[#allocation9 + $0x78] sm:$0xff]
    %v2718 = vld [vmem:[#allocation9 + $0x80] sm:$0xff]
    %v2719 = vld [vmem:[#allocation9 + $0x88] sm:$0xff]
    %v2720 = vld [vmem:[#allocation9 + $0x90] sm:$0xff]
    %v2721 = vld [vmem:[#allocation9 + $0x98] sm:$0xff]
    %v2722 = vld [vmem:[#allocation9 + $0xa0] sm:$0xff]
    %v2723 = vld [vmem:[#allocation9 + $0xa8] sm:$0xff]
    %v2724 = vld [vmem:[#allocation9 + $0xb0] sm:$0xff]
    %v2725 = vld [vmem:[#allocation9 + $0xb8] sm:$0xff]
    %v2726 = vld [vmem:[#allocation9 + $0xc0] sm:$0xff]
    %v2727 = vld [vmem:[#allocation9 + $0xc8] sm:$0xff]
    %v2728 = vld [vmem:[#allocation9 + $0xd0] sm:$0xff]
    %v2729 = vld [vmem:[#allocation9 + $0xd8] sm:$0xff]
    %v2730 = vld [vmem:[#allocation9 + $0xe0] sm:$0xff]
    %v2731 = vld [vmem:[#allocation9 + $0xe8] sm:$0xff]
    %v2732 = vld [vmem:[#allocation9 + $0xf0] sm:$0xff]
    %v2733 = vld [vmem:[#allocation9 + $0xf8] sm:$0xff]
    %v2766 = vunpack.c.l.b16 %v2702
    %v2767 = vunpack.c.h.b16 %v2702
    %v2768 = vunpack.c.l.b16 %v2703
    %v2769 = vunpack.c.h.b16 %v2703
    %v2770 = vunpack.c.l.b16 %v2704
    %v2771 = vunpack.c.h.b16 %v2704
    %v2772 = vunpack.c.l.b16 %v2705
    %v2773 = vunpack.c.h.b16 %v2705
    %v2774 = vunpack.c.l.b16 %v2706
    %v2775 = vunpack.c.h.b16 %v2706
    %v2776 = vunpack.c.l.b16 %v2707
    %v2777 = vunpack.c.h.b16 %v2707
    %v2778 = vunpack.c.l.b16 %v2708
    %v2779 = vunpack.c.h.b16 %v2708
    %v2780 = vunpack.c.l.b16 %v2709
    %v2781 = vunpack.c.h.b16 %v2709
    %v2782 = vunpack.c.l.b16 %v2710
    %v2783 = vunpack.c.h.b16 %v2710
    %v2784 = vunpack.c.l.b16 %v2711
    %v2785 = vunpack.c.h.b16 %v2711
    %v2786 = vunpack.c.l.b16 %v2712
    %v2787 = vunpack.c.h.b16 %v2712
    %v2788 = vunpack.c.l.b16 %v2713
    %v2789 = vunpack.c.h.b16 %v2713
    %v2790 = vunpack.c.l.b16 %v2714
    %v2791 = vunpack.c.h.b16 %v2714
    %v2792 = vunpack.c.l.b16 %v2715
    %v2793 = vunpack.c.h.b16 %v2715
    %v2794 = vunpack.c.l.b16 %v2716
    %v2795 = vunpack.c.h.b16 %v2716
    %v2796 = vunpack.c.l.b16 %v2717
    %v2797 = vunpack.c.h.b16 %v2717
    %v2798 = vunpack.c.l.b16 %v2718
    %v2799 = vunpack.c.h.b16 %v2718
    %v2800 = vunpack.c.l.b16 %v2719
    %v2801 = vunpack.c.h.b16 %v2719
    %v2802 = vunpack.c.l.b16 %v2720
    %v2803 = vunpack.c.h.b16 %v2720
    %v2804 = vunpack.c.l.b16 %v2721
    %v2805 = vunpack.c.h.b16 %v2721
    %v2806 = vunpack.c.l.b16 %v2722
    %v2807 = vunpack.c.h.b16 %v2722
    %v2808 = vunpack.c.l.b16 %v2723
    %v2809 = vunpack.c.h.b16 %v2723
    %v2810 = vunpack.c.l.b16 %v2724
    %v2811 = vunpack.c.h.b16 %v2724
    %v2812 = vunpack.c.l.b16 %v2725
    %v2813 = vunpack.c.h.b16 %v2725
    %v2814 = vunpack.c.l.b16 %v2726
    %v2815 = vunpack.c.h.b16 %v2726
    %v2816 = vunpack.c.l.b16 %v2727
    %v2817 = vunpack.c.h.b16 %v2727
    %v2818 = vunpack.c.l.b16 %v2728
    %v2819 = vunpack.c.h.b16 %v2728
    %v2820 = vunpack.c.l.b16 %v2729
    %v2821 = vunpack.c.h.b16 %v2729
    %v2822 = vunpack.c.l.b16 %v2730
    %v2823 = vunpack.c.h.b16 %v2730
    %v2824 = vunpack.c.l.b16 %v2731
    %v2825 = vunpack.c.h.b16 %v2731
    %v2826 = vunpack.c.l.b16 %v2732
    %v2827 = vunpack.c.h.b16 %v2732
    %v2828 = vunpack.c.l.b16 %v2733
    %v2829 = vunpack.c.h.b16 %v2733
    %v2830 = vpack.c.b16 %v2770, %v2766
    %v2831 = vpack.c.b16 %v2771, %v2767
    %v2832 = vpack.c.b16 %v2772, %v2768
    %v2833 = vpack.c.b16 %v2773, %v2769
    %v2834 = vpack.c.b16 %v2778, %v2774
    %v2835 = vpack.c.b16 %v2779, %v2775
    %v2836 = vpack.c.b16 %v2780, %v2776
    %v2837 = vpack.c.b16 %v2781, %v2777
    %v2838 = vpack.c.b16 %v2786, %v2782
    %v2839 = vpack.c.b16 %v2787, %v2783
    %v2840 = vpack.c.b16 %v2788, %v2784
    %v2841 = vpack.c.b16 %v2789, %v2785
    %v2842 = vpack.c.b16 %v2794, %v2790
    %v2843 = vpack.c.b16 %v2795, %v2791
    %v2844 = vpack.c.b16 %v2796, %v2792
    %v2845 = vpack.c.b16 %v2797, %v2793
    %v2846 = vpack.c.b16 %v2802, %v2798
    %v2847 = vpack.c.b16 %v2803, %v2799
    %v2848 = vpack.c.b16 %v2804, %v2800
    %v2849 = vpack.c.b16 %v2805, %v2801
    %v2850 = vpack.c.b16 %v2810, %v2806
    %v2851 = vpack.c.b16 %v2811, %v2807
    %v2852 = vpack.c.b16 %v2812, %v2808
    %v2853 = vpack.c.b16 %v2813, %v2809
    %v2854 = vpack.c.b16 %v2818, %v2814
    %v2855 = vpack.c.b16 %v2819, %v2815
    %v2856 = vpack.c.b16 %v2820, %v2816
    %v2857 = vpack.c.b16 %v2821, %v2817
    %v2858 = vpack.c.b16 %v2826, %v2822
    %v2859 = vpack.c.b16 %v2827, %v2823
    %v2860 = vpack.c.b16 %v2828, %v2824
    %v2861 = vpack.c.b16 %v2829, %v2825
    %2894 = vmatprep.subr.bf16.mxu0 %v2831
    %2895 = vmatpush1.bf16.msra.mxu0 %v2830
    %2896 = vmatprep.subr.bf16.mxu0 %v2835
    %2897 = vmatpush1.bf16.msra.mxu0 %v2834
    %2898 = vmatprep.subr.bf16.mxu0 %v2839
    %2899 = vmatpush1.bf16.msra.mxu0 %v2838
    %2900 = vmatprep.subr.bf16.mxu0 %v2843
    %2901 = vmatpush1.bf16.msra.mxu0 %v2842
    %2902 = vmatprep.subr.bf16.mxu0 %v2847
    %2903 = vmatpush1.bf16.msra.mxu0 %v2846
    %2904 = vmatprep.subr.bf16.mxu0 %v2851
    %2905 = vmatpush1.bf16.msra.mxu0 %v2850
    %2906 = vmatprep.subr.bf16.mxu0 %v2855
    %2907 = vmatpush1.bf16.msra.mxu0 %v2854
    %2908 = vmatprep.subr.bf16.mxu0 %v2859
    %2909 = vmatpush1.bf16.msra.mxu0 %v2858
    %2910 = vmatprep.subr.bf16.mxu0 0
    %2911 = vmatpush1.bf16.msra.mxu0 0
    %2912 = vmatprep.subr.bf16.mxu0 0
    %2913 = vmatpush1.bf16.msra.mxu0 0
    %2914 = vmatprep.subr.bf16.mxu0 0
    %2915 = vmatpush1.bf16.msra.mxu0 0
    %2916 = vmatprep.subr.bf16.mxu0 0
    %2917 = vmatpush1.bf16.msra.mxu0 0
    %2918 = vmatprep.subr.bf16.mxu0 0
    %2919 = vmatpush1.bf16.msra.mxu0 0
    %2920 = vmatprep.subr.bf16.mxu0 0
    %2921 = vmatpush1.bf16.msra.mxu0 0
    %2922 = vmatprep.subr.bf16.mxu0 0
    %2923 = vmatpush1.bf16.msra.mxu0 0
    %2924 = vmatprep.subr.bf16.mxu0 0
    %2925 = vmatpush1.bf16.msra.mxu0 0
    %2926 = vmatprep.mubr.bf16.mxu0 0
    %2927 = vmatmul.mubr.bf16.gmra.mrb[0].mxu0 %v2701
    %v2928 = vpop.f32.mrb[0].mxu0
    %v2929 = vadd.f32 0.0, %v2928
    %v2930 = vpop.f32.mrb[0].mxu0
    %v2931 = vadd.f32 0.0, %v2930
    %v2932 = vpop.f32.mrb[0].mxu0
    %v2933 = vpop.f32.mrb[0].mxu0
    %2934 = vdwg.mxu0
    %2935 = vmatprep.subr.bf16.mxu0 %v2833
    %2936 = vmatpush1.bf16.msra.mxu0 %v2832
    %2937 = vmatprep.subr.bf16.mxu0 %v2837
    %2938 = vmatpush1.bf16.msra.mxu0 %v2836
    %2939 = vmatprep.subr.bf16.mxu0 %v2841
    %2940 = vmatpush1.bf16.msra.mxu0 %v2840
    %2941 = vmatprep.subr.bf16.mxu0 %v2845
    %2942 = vmatpush1.bf16.msra.mxu0 %v2844
    %2943 = vmatprep.subr.bf16.mxu0 %v2849
    %2944 = vmatpush1.bf16.msra.mxu0 %v2848
    %2945 = vmatprep.subr.bf16.mxu0 %v2853
    %2946 = vmatpush1.bf16.msra.mxu0 %v2852
    %2947 = vmatprep.subr.bf16.mxu0 %v2857
    %2948 = vmatpush1.bf16.msra.mxu0 %v2856
    %2949 = vmatprep.subr.bf16.mxu0 %v2861
    %2950 = vmatpush1.bf16.msra.mxu0 %v2860
    %2951 = vmatprep.subr.bf16.mxu0 0
    %2952 = vmatpush1.bf16.msra.mxu0 0
    %2953 = vmatprep.subr.bf16.mxu0 0
    %2954 = vmatpush1.bf16.msra.mxu0 0
    %2955 = vmatprep.subr.bf16.mxu0 0
    %2956 = vmatpush1.bf16.msra.mxu0 0
    %2957 = vmatprep.subr.bf16.mxu0 0
    %2958 = vmatpush1.bf16.msra.mxu0 0
    %2959 = vmatprep.subr.bf16.mxu0 0
    %2960 = vmatpush1.bf16.msra.mxu0 0
    %2961 = vmatprep.subr.bf16.mxu0 0
    %2962 = vmatpush1.bf16.msra.mxu0 0
    %2963 = vmatprep.subr.bf16.mxu0 0
    %2964 = vmatpush1.bf16.msra.mxu0 0
    %2965 = vmatprep.subr.bf16.mxu0 0
    %2966 = vmatpush1.bf16.msra.mxu0 0
    %2967 = vmatprep.mubr.bf16.mxu0 0
    %2968 = vmatmul.mubr.bf16.gmra.mrb[0].mxu0 %v2701
    %v2969 = vpop.f32.mrb[0].mxu0
    %v2970 = vadd.f32 0.0, %v2969
    %v2971 = vpop.f32.mrb[0].mxu0
    %v2972 = vadd.f32 0.0, %v2971
    %v2973 = vpop.f32.mrb[0].mxu0
    %v2974 = vpop.f32.mrb[0].mxu0
    %2975 = vdwg.mxu0
    %v2976 = vadd.f32 %v2697, %v2929
    %v2977 = vadd.f32 %v2698, %v2931
    %v2978 = vadd.f32 %v2699, %v2970
    %v2979 = vadd.f32 %v2700, %v2972
    %v2980 = vxor.u32 %v2976, 2147483648
    %v2981 = vmul.f32 %v2980, 1.442695
    %v2982 = vpow.pop %v2981
    %v2983 = vadd.f32 %v2982, 1.0
    %v2984 = vrcp.pop %v2983
    %v2985 = vmul.f32 1.0, %v2984
    %v2986 = vxor.u32 %v2977, 2147483648
    %v2987 = vmul.f32 %v2986, 1.442695
    %v2988 = vpow.pop %v2987
    %v2989 = vadd.f32 %v2988, 1.0
    %v2990 = vrcp.pop %v2989
    %v2991 = vmul.f32 1.0, %v2990
    %v2992 = vtanh.pop %v2978
    %v2993 = vxor.u32 %v2979, 2147483648
    %v2994 = vmul.f32 %v2993, 1.442695
    %v2995 = vpow.pop %v2994
    %v2996 = vadd.f32 %v2995, 1.0
    %v2997 = vrcp.pop %v2996
    %v2998 = vmul.f32 1.0, %v2997
    %v2999 = vld [vmem:[#allocation3] sm:$0xff]
    %v3000 = vmul.f32 %v2991, %v2999
    %v3001 = vmul.f32 %v2985, %v2992
    %v3002 = vadd.f32 %v3000, %v3001
    %v3003 = vtanh.pop %v3002
    %v3004 = vmul.f32 %v2998, %v3003
    %v3005 = vpack.c.bf16 %v3004, %v3004
    %3006 = vst [vmem:[#allocation3] sm:$0xff] %v3002
    %3007 = vst [vmem:[#allocation10] sm:$0xf] %v3005
    // Predicated region
    $region34: #{tpu_custom_call.1} parent=1 // pred_check
      _
    $region35: #{tpu_custom_call.1} parent=1 // pred_check_branch
      %3009 = sbr.rel (0) target = $region37
    $region36: #{tpu_custom_call.1} parent=1 // pred_region
      %s3011 = ssub.s32 64, 64
      %3012 = vsyncadd [#allocation6], %s3011
      %s3014 = sshll.u32 [#allocation10], 4
      %s3015 = int_to_ptr.vmem [resolvable:$true] %s3014
      %3017 = dma.vmem_to_hbm [thread:$0]  %s3015, 64, %s4, [#allocation6]
    $region37: #{tpu_custom_call.1} parent=1 // pred_fallthru
      _
    // Predicated region
    $region38: #{tpu_custom_call.1} parent=1 // pred_check
      _
    $region39: #{tpu_custom_call.1} parent=1 // pred_check_branch
      %3019 = sbr.rel (0) target = $region41
    $region40: #{tpu_custom_call.1} parent=1 // pred_region
      %3020 = dma.done [#allocation6], 64
    $region41: #{tpu_custom_call.1} parent=1 // pred_fallthru
      _
    %3021 = vsyncpa [#allocation5], 1
    %3022 = vsyncpa [#allocation8], 1
    %3023 = vsyncpa [#allocation6], 1

</llo_original>
